<compile_context>
chip_gen: v7x
topology: tpu7x:2x2x1
jax: 0.10.0
libtpu: 0.0.40
codegen_flags: <defaults>
</compile_context>

<pallas_src>
import functools

import jax
import jax.numpy as jnp
import numpy as np
from jax import lax
from jax.experimental import pallas as pl
from jax.experimental.pallas import tpu as pltpu


_VMEM = pl.BlockSpec(memory_space=pltpu.MemorySpace.VMEM)


# ----------------------------------------------------------------------------
# Encoder fused with the time-invariant part of the LSTM input projection:
#   vis   = ReLU(cat(ReLU(obj@Wo+bo), ReLU(cxt@Wc+bc), loc) @ Wm + bm)
#   g_vis = vis @ Wih_vis + b_gates          (added to every time step later)
# The concat is expressed as a split-weight sum of matmuls.
# ----------------------------------------------------------------------------
def encoder_visgates_kernel(obj_ref, cxt_ref, loc_ref,
                            wo_ref, bo_ref, wc_ref, bc_ref,
                            wm_obj_ref, wm_cxt_ref, wm_loc_ref, bm_ref,
                            wih_vis_ref, bg_ref,
                            gvis_ref):
    obj_h = jnp.maximum(
        jnp.dot(obj_ref[...], wo_ref[...], preferred_element_type=jnp.float32)
        + bo_ref[...], 0.0)
    cxt_h = jnp.maximum(
        jnp.dot(cxt_ref[...], wc_ref[...], preferred_element_type=jnp.float32)
        + bc_ref[...], 0.0)
    vis = jnp.maximum(
        jnp.dot(obj_h, wm_obj_ref[...], preferred_element_type=jnp.float32)
        + jnp.dot(cxt_h, wm_cxt_ref[...], preferred_element_type=jnp.float32)
        + jnp.dot(loc_ref[...], wm_loc_ref[...], preferred_element_type=jnp.float32)
        + bm_ref[...], 0.0)
    gvis_ref[...] = (jnp.dot(vis, wih_vis_ref[...],
                             preferred_element_type=jnp.float32)
                     + bg_ref[...])


def run_encoder_visgates(obj, cxt, loc, enc, wih_visT, b_gates):
    B = obj.shape[0]
    four_h = wih_visT.shape[1]
    return pl.pallas_call(
        encoder_visgates_kernel,
        out_shape=jax.ShapeDtypeStruct((B, four_h), jnp.float32),
        in_specs=[_VMEM] * 13,
        out_specs=_VMEM,
    )(obj, cxt, loc,
      enc["WoT"], enc["bo"], enc["WcT"], enc["bc"],
      enc["Wm_objT"], enc["Wm_cxtT"], enc["Wm_locT"], enc["bm"],
      wih_visT, b_gates)


# ----------------------------------------------------------------------------
# Generic tiled Linear (x @ W^T + b) used for the batched input projection and
# the batched output FC.  Grid over (M, N) tiles, both axes "parallel" so they
# can shard across TensorCores; K kept resident (it is small: E or H).
# ----------------------------------------------------------------------------
def _linear_kernel(x_ref, w_ref, b_ref, o_ref):
    o_ref[...] = (jnp.dot(x_ref[...], w_ref[...],
                          preferred_element_type=jnp.float32)
                  + b_ref[...])


def _pick_tile(dim, cap, quantum):
    """Largest tile <= cap that divides dim and is a multiple of quantum,
    falling back to the full dim (full-extent blocks are always legal)."""
    if dim <= cap:
        return dim
    t = cap - (cap % quantum)
    while t >= quantum:
        if dim % t == 0:
            return t
        t -= quantum
    return dim


def tiled_linear(x, wT, b, *, tm_cap=512, tn_cap=1024):
    M, K = x.shape
    N = wT.shape[1]
    tm = _pick_tile(M, tm_cap, 8)     # sublane quantum
    tn = _pick_tile(N, tn_cap, 128)   # lane quantum (keeps v7x VMEM in budget)
    grid = (M // tm, N // tn)
    return pl.pallas_call(
        _linear_kernel,
        out_shape=jax.ShapeDtypeStruct((M, N), jnp.float32),
        grid_spec=pltpu.PrefetchScalarGridSpec(
            num_scalar_prefetch=0,
            grid=grid,
            in_specs=[
                pl.BlockSpec((tm, K), lambda i, j: (i, 0)),
                pl.BlockSpec((K, tn), lambda i, j: (0, j)),
                pl.BlockSpec((1, tn), lambda i, j: (0, j)),
            ],
            out_specs=pl.BlockSpec((tm, tn), lambda i, j: (i, j)),
        ),
        compiler_params=pltpu.CompilerParams(
            dimension_semantics=("parallel", "parallel")),
    )(x, wT, b)


# ----------------------------------------------------------------------------
# LSTM recurrence only (single pallas_call, in-kernel unrolled fori_loop).
#   gates_ref : (T, B, 4H)  precomputed  emb_t @ Wih_emb   (time-major)
#   gvis_ref  : (B, 4H)     time-invariant  vis @ Wih_vis + (b_ih + b_hh)
#   whh_ref   : (H, 4H)
# Outputs every h_t (for the hoisted FC) plus the final (h_N, c_N).
# Gate order follows PyTorch nn.LSTM: i, f, g, o.
# ----------------------------------------------------------------------------
def lstm_recurrence_kernel(gates_ref, gvis_ref, whh_ref,
                           hall_ref, hN_ref, cN_ref):
    T, B, _ = gates_ref.shape
    H = hall_ref.shape[-1]
    gvis = gvis_ref[...]        # read once, reused every step
    whh = whh_ref[...]

    def step(t, carry):
        h, c = carry
        g = (gates_ref[t] + gvis
             + jnp.dot(h, whh, preferred_element_type=jnp.float32))
        i_g = jax.nn.sigmoid(g[:, 0:H])
        f_g = jax.nn.sigmoid(g[:, H:2 * H])
        g_g = jnp.tanh(g[:, 2 * H:3 * H])
        o_g = jax.nn.sigmoid(g[:, 3 * H:4 * H])
        c_new = f_g * c + i_g * g_g
        h_new = o_g * jnp.tanh(c_new)
        hall_ref[t] = h_new
        return (h_new, c_new)

    h0 = jnp.zeros((B, H), jnp.float32)   # init_state=None -> zeros
    c0 = jnp.zeros((B, H), jnp.float32)
    h_n, c_n = lax.fori_loop(0, T, step, (h0, c0), unroll=min(8, T))
    hN_ref[...] = h_n                     # written once, after the loop
    cN_ref[...] = c_n


def run_lstm_recurrence(gates_tm, g_vis, whhT):
    T, B, _ = gates_tm.shape
    H = whhT.shape[0]
    return pl.pallas_call(
        lstm_recurrence_kernel,
        out_shape=(
            jax.ShapeDtypeStruct((T, B, H), jnp.float32),
            jax.ShapeDtypeStruct((B, H), jnp.float32),
            jax.ShapeDtypeStruct((B, H), jnp.float32),
        ),
        in_specs=[_VMEM, _VMEM, _VMEM],
        out_specs=(_VMEM, _VMEM, _VMEM),
    )(gates_tm, g_vis, whhT)


# ----------------------------------------------------------------------------
# Speaker forward = encoder(+vis projection) -> embedding gather (glue) ->
#                   batched input projection -> LSTM recurrence -> batched FC
# ----------------------------------------------------------------------------
def speaker_forward(params, obj_feat, cxt_feat, loc_feat, txt_input):
    B, T = txt_input.shape
    enc = params["enc"]
    dec = params["dec"]
    enc_out_dim = enc["bm"].shape[-1]
    H = dec["WhhT"].shape[0]
    E = dec["embedding"].shape[1]
    V = dec["WfcT"].shape[1]

    # Pad batch to a sublane-dense multiple of 8; padded rows are sliced off.
    Bp = ((B + 7) // 8) * 8
    pad = Bp - B
    if pad:
        obj_feat = jnp.pad(obj_feat, ((0, pad), (0, 0)))
        cxt_feat = jnp.pad(cxt_feat, ((0, pad), (0, 0)))
        loc_feat = jnp.pad(loc_feat, ((0, pad), (0, 0)))
        txt_input = jnp.pad(txt_input, ((0, pad), (0, 0)))

    # Split Wih into visual rows (time-invariant) and embedding rows (per token);
    # the concat(broadcast(vis), emb) tensor is never materialized.
    wih_visT = dec["WihT"][:enc_out_dim]
    wih_embT = dec["WihT"][enc_out_dim:]

    # 1) Encoder + time-invariant input-projection contribution.
    g_vis = run_encoder_visgates(obj_feat, cxt_feat, loc_feat, enc,
                                 wih_visT, dec["b_gates"])            # (Bp, 4H)

    # 2) Batched per-token input projection (one MXU-efficient matmul).
    emb = dec["embedding"][txt_input]                                 # (Bp, T, E) gather (glue)
    emb_tm = jnp.transpose(emb, (1, 0, 2)).reshape(T * Bp, E)         # row = t*Bp + b
    zero_bias = jnp.zeros((1, 4 * H), jnp.float32)
    g_emb = tiled_linear(emb_tm, wih_embT, zero_bias)                 # (T*Bp, 4H)
    gates_tm = g_emb.reshape(T, Bp, 4 * H)

    # 3) Sequential LSTM recurrence (only h @ Whh + gate math per step).
    h_all_tm, h_n, c_n = run_lstm_recurrence(gates_tm, g_vis, dec["WhhT"])

    # 4) Batched output FC over all (t, b) rows.
    logits = tiled_linear(h_all_tm.reshape(T * Bp, H), dec["WfcT"], dec["bfc"])
    fc_output = jnp.transpose(logits.reshape(T, Bp, V), (1, 0, 2))[:B]

    hidden = (h_n[None, :B, :], c_n[None, :B, :])                     # (1, B, H) like PyTorch
    return fc_output, hidden


# ----------------------------------------------------------------------------
# Pure-JAX reference for a correctness check.
# ----------------------------------------------------------------------------
def speaker_reference(params, obj, cxt, loc, txt):
    e = params["enc"]
    obj_h = jnp.maximum(obj @ e["WoT"] + e["bo"], 0.0)
    cxt_h = jnp.maximum(cxt @ e["WcT"] + e["bc"], 0.0)
    vis = jnp.maximum(obj_h @ e["Wm_objT"] + cxt_h @ e["Wm_cxtT"]
                      + loc @ e["Wm_locT"] + e["bm"], 0.0)
    d = params["dec"]
    emb = d["embedding"][txt]
    B, T = txt.shape
    x = jnp.concatenate(
        [jnp.broadcast_to(vis[:, None, :], (B, T, vis.shape[-1])), emb], -1)
    H = d["WhhT"].shape[0]
    h = jnp.zeros((B, H), jnp.float32)
    c = jnp.zeros((B, H), jnp.float32)
    outs = []
    for t in range(T):
        g = x[:, t, :] @ d["WihT"] + h @ d["WhhT"] + d["b_gates"]
        i = jax.nn.sigmoid(g[:, 0:H]); f = jax.nn.sigmoid(g[:, H:2*H])
        gg = jnp.tanh(g[:, 2*H:3*H]); o = jax.nn.sigmoid(g[:, 3*H:4*H])
        c = f * c + i * gg
        h = o * jnp.tanh(c)
        outs.append(h @ d["WfcT"] + d["bfc"])
    return jnp.stack(outs, axis=1), (h[None], c[None])


# ----------------------------------------------------------------------------
# Deterministic parameter construction (synthetic; mirrors module __init__ shapes).
# ----------------------------------------------------------------------------
def make_params(key, *, feature_dim, hidden_dim, loc_dim, enc_out_dim,
                vocab_size, embd_dim, lstm_dim):
    ks = jax.random.split(key, 12)
    s = 0.05
    feat_dim = hidden_dim * 2 + loc_dim
    WmT = s * jax.random.normal(ks[4], (feat_dim, enc_out_dim), jnp.float32)
    enc = dict(
        WoT=s * jax.random.normal(ks[0], (feature_dim, hidden_dim), jnp.float32),
        bo=s * jax.random.normal(ks[1], (1, hidden_dim), jnp.float32),
        WcT=s * jax.random.normal(ks[2], (feature_dim, hidden_dim), jnp.float32),
        bc=s * jax.random.normal(ks[3], (1, hidden_dim), jnp.float32),
        Wm_objT=WmT[:hidden_dim],
        Wm_cxtT=WmT[hidden_dim:2 * hidden_dim],
        Wm_locT=WmT[2 * hidden_dim:],
        bm=s * jax.random.normal(ks[5], (1, enc_out_dim), jnp.float32),
    )
    din = enc_out_dim + embd_dim
    dec = dict(
        embedding=s * jax.random.normal(ks[6], (vocab_size, embd_dim), jnp.float32),
        WihT=s * jax.random.normal(ks[7], (din, 4 * lstm_dim), jnp.float32),
        WhhT=s * jax.random.normal(ks[8], (lstm_dim, 4 * lstm_dim), jnp.float32),
        b_gates=s * jax.random.normal(ks[9], (1, 4 * lstm_dim), jnp.float32),  # b_ih + b_hh
        WfcT=s * jax.random.normal(ks[10], (lstm_dim, vocab_size), jnp.float32),
        bfc=s * jax.random.normal(ks[11], (1, vocab_size), jnp.float32),
    )
    return dict(enc=enc, dec=dec)


if __name__ == "__main__":
    # Small synthetic config (real cfg would use feature_dim=4096/2048).
    B, T = 4, 8
    feature_dim, hidden_dim, loc_dim, enc_out_dim = 128, 64, 16, 128
    vocab_size, embd_dim, lstm_dim = 64, 64, 128

    key = jax.random.PRNGKey(0)
    kp, k1, k2, k3, k4 = jax.random.split(key, 5)
    params = make_params(kp, feature_dim=feature_dim, hidden_dim=hidden_dim,
                         loc_dim=loc_dim, enc_out_dim=enc_out_dim,
                         vocab_size=vocab_size, embd_dim=embd_dim,
                         lstm_dim=lstm_dim)

    obj_feat = jax.random.normal(k1, (B, feature_dim), jnp.float32)
    cxt_feat = jax.random.normal(k2, (B, feature_dim), jnp.float32)
    loc_feat = jax.random.normal(k3, (B, loc_dim), jnp.float32)
    txt_input = jax.random.randint(k4, (B, T), 0, vocab_size, dtype=jnp.int32)

    fwd = jax.jit(functools.partial(speaker_forward, params))
    fc_output, (h_n, c_n) = fwd(obj_feat, cxt_feat, loc_feat, txt_input)
    jax.block_until_ready((fc_output, h_n, c_n))

    ref_out, (ref_h, ref_c) = speaker_reference(params, obj_feat, cxt_feat,
                                                loc_feat, txt_input)
    np.testing.assert_allclose(np.asarray(fc_output), np.asarray(ref_out),
                               rtol=1e-4, atol=1e-4)
    np.testing.assert_allclose(np.asarray(h_n), np.asarray(ref_h),
                               rtol=1e-4, atol=1e-4)
    np.testing.assert_allclose(np.asarray(c_n), np.asarray(ref_c),
                               rtol=1e-4, atol=1e-4)

    assert fc_output.shape == (B, T, vocab_size)
    assert h_n.shape == (1, B, lstm_dim) and c_n.shape == (1, B, lstm_dim)
    print("KERNEL_OK")
</pallas_src>

<mosaic_0001>
module attributes {stable_mosaic.version = 11 : i64} {
  func.func @encoder_visgates_kernel(%arg0: memref<8x128xf32, #tpu.memory_space<vmem>>, %arg1: memref<8x128xf32, #tpu.memory_space<vmem>>, %arg2: memref<8x16xf32, #tpu.memory_space<vmem>>, %arg3: memref<128x64xf32, #tpu.memory_space<vmem>>, %arg4: memref<1x64xf32, #tpu.memory_space<vmem>>, %arg5: memref<128x64xf32, #tpu.memory_space<vmem>>, %arg6: memref<1x64xf32, #tpu.memory_space<vmem>>, %arg7: memref<64x128xf32, #tpu.memory_space<vmem>>, %arg8: memref<64x128xf32, #tpu.memory_space<vmem>>, %arg9: memref<16x128xf32, #tpu.memory_space<vmem>>, %arg10: memref<1x128xf32, #tpu.memory_space<vmem>>, %arg11: memref<128x512xf32, #tpu.memory_space<vmem>>, %arg12: memref<1x512xf32, #tpu.memory_space<vmem>>, %arg13: memref<8x512xf32, #tpu.memory_space<vmem>>) attributes {dimension_semantics = [], scalar_prefetch = 0 : i64, scratch_operands = 0 : i64, tpu.core_type = #tpu.core_type<tc>} {
    %c0 = arith.constant 0 : index
    %c0_0 = arith.constant 0 : index
    %0 = vector.load %arg0[%c0, %c0_0] : memref<8x128xf32, #tpu.memory_space<vmem>>, vector<8x128xf32>
    %c0_1 = arith.constant 0 : index
    %c0_2 = arith.constant 0 : index
    %1 = vector.load %arg3[%c0_1, %c0_2] : memref<128x64xf32, #tpu.memory_space<vmem>>, vector<128x64xf32>
    %cst = arith.constant dense<0.000000e+00> : vector<8x64xf32>
    %2 = tpu.matmul %0, %1, %cst {dimension_numbers = #tpu.dot_dimension_numbers<[1], [0], [0], [1], [0, 0, 1, 1], [], []>} : vector<8x128xf32>, vector<128x64xf32>, vector<8x64xf32> -> vector<8x64xf32>
    %c0_3 = arith.constant 0 : index
    %c0_4 = arith.constant 0 : index
    %3 = vector.load %arg4[%c0_3, %c0_4] : memref<1x64xf32, #tpu.memory_space<vmem>>, vector<1x64xf32>
    %4 = vector.broadcast %3 : vector<1x64xf32> to vector<8x64xf32>
    %5 = arith.addf %2, %4 : vector<8x64xf32>
    %cst_5 = arith.constant 0.000000e+00 : f32
    %6 = vector.broadcast %cst_5 : f32 to vector<8x64xf32>
    %7 = arith.maximumf %5, %6 : vector<8x64xf32>
    %c0_6 = arith.constant 0 : index
    %c0_7 = arith.constant 0 : index
    %8 = vector.load %arg1[%c0_6, %c0_7] : memref<8x128xf32, #tpu.memory_space<vmem>>, vector<8x128xf32>
    %c0_8 = arith.constant 0 : index
    %c0_9 = arith.constant 0 : index
    %9 = vector.load %arg5[%c0_8, %c0_9] : memref<128x64xf32, #tpu.memory_space<vmem>>, vector<128x64xf32>
    %cst_10 = arith.constant dense<0.000000e+00> : vector<8x64xf32>
    %10 = tpu.matmul %8, %9, %cst_10 {dimension_numbers = #tpu.dot_dimension_numbers<[1], [0], [0], [1], [0, 0, 1, 1], [], []>} : vector<8x128xf32>, vector<128x64xf32>, vector<8x64xf32> -> vector<8x64xf32>
    %c0_11 = arith.constant 0 : index
    %c0_12 = arith.constant 0 : index
    %11 = vector.load %arg6[%c0_11, %c0_12] : memref<1x64xf32, #tpu.memory_space<vmem>>, vector<1x64xf32>
    %12 = vector.broadcast %11 : vector<1x64xf32> to vector<8x64xf32>
    %13 = arith.addf %10, %12 : vector<8x64xf32>
    %cst_13 = arith.constant 0.000000e+00 : f32
    %14 = vector.broadcast %cst_13 : f32 to vector<8x64xf32>
    %15 = arith.maximumf %13, %14 : vector<8x64xf32>
    %c0_14 = arith.constant 0 : index
    %c0_15 = arith.constant 0 : index
    %16 = vector.load %arg7[%c0_14, %c0_15] : memref<64x128xf32, #tpu.memory_space<vmem>>, vector<64x128xf32>
    %cst_16 = arith.constant dense<0.000000e+00> : vector<8x128xf32>
    %17 = tpu.matmul %7, %16, %cst_16 {dimension_numbers = #tpu.dot_dimension_numbers<[1], [0], [0], [1], [0, 0, 1, 1], [], []>} : vector<8x64xf32>, vector<64x128xf32>, vector<8x128xf32> -> vector<8x128xf32>
    %c0_17 = arith.constant 0 : index
    %c0_18 = arith.constant 0 : index
    %18 = vector.load %arg8[%c0_17, %c0_18] : memref<64x128xf32, #tpu.memory_space<vmem>>, vector<64x128xf32>
    %cst_19 = arith.constant dense<0.000000e+00> : vector<8x128xf32>
    %19 = tpu.matmul %15, %18, %cst_19 {dimension_numbers = #tpu.dot_dimension_numbers<[1], [0], [0], [1], [0, 0, 1, 1], [], []>} : vector<8x64xf32>, vector<64x128xf32>, vector<8x128xf32> -> vector<8x128xf32>
    %20 = arith.addf %17, %19 : vector<8x128xf32>
    %c0_20 = arith.constant 0 : index
    %c0_21 = arith.constant 0 : index
    %21 = vector.load %arg2[%c0_20, %c0_21] : memref<8x16xf32, #tpu.memory_space<vmem>>, vector<8x16xf32>
    %c0_22 = arith.constant 0 : index
    %c0_23 = arith.constant 0 : index
    %22 = vector.load %arg9[%c0_22, %c0_23] : memref<16x128xf32, #tpu.memory_space<vmem>>, vector<16x128xf32>
    %cst_24 = arith.constant dense<0.000000e+00> : vector<8x128xf32>
    %23 = tpu.matmul %21, %22, %cst_24 {dimension_numbers = #tpu.dot_dimension_numbers<[1], [0], [0], [1], [0, 0, 1, 1], [], []>} : vector<8x16xf32>, vector<16x128xf32>, vector<8x128xf32> -> vector<8x128xf32>
    %24 = arith.addf %20, %23 : vector<8x128xf32>
    %c0_25 = arith.constant 0 : index
    %c0_26 = arith.constant 0 : index
    %25 = vector.load %arg10[%c0_25, %c0_26] : memref<1x128xf32, #tpu.memory_space<vmem>>, vector<1x128xf32>
    %26 = vector.broadcast %25 : vector<1x128xf32> to vector<8x128xf32>
    %27 = arith.addf %24, %26 : vector<8x128xf32>
    %cst_27 = arith.constant 0.000000e+00 : f32
    %28 = vector.broadcast %cst_27 : f32 to vector<8x128xf32>
    %29 = arith.maximumf %27, %28 : vector<8x128xf32>
    %c0_28 = arith.constant 0 : index
    %c0_29 = arith.constant 0 : index
    %30 = vector.load %arg11[%c0_28, %c0_29] : memref<128x512xf32, #tpu.memory_space<vmem>>, vector<128x512xf32>
    %cst_30 = arith.constant dense<0.000000e+00> : vector<8x512xf32>
    %31 = tpu.matmul %29, %30, %cst_30 {dimension_numbers = #tpu.dot_dimension_numbers<[1], [0], [0], [1], [0, 0, 1, 1], [], []>} : vector<8x128xf32>, vector<128x512xf32>, vector<8x512xf32> -> vector<8x512xf32>
    %c0_31 = arith.constant 0 : index
    %c0_32 = arith.constant 0 : index
    %32 = vector.load %arg12[%c0_31, %c0_32] : memref<1x512xf32, #tpu.memory_space<vmem>>, vector<1x512xf32>
    %33 = vector.broadcast %32 : vector<1x512xf32> to vector<8x512xf32>
    %34 = arith.addf %31, %33 : vector<8x512xf32>
    %c0_33 = arith.constant 0 : index
    %c0_34 = arith.constant 0 : index
    %35 = vector.load %arg13[%c0_33, %c0_34] : memref<8x512xf32, #tpu.memory_space<vmem>>, vector<8x512xf32>
    tpu.vector_store %arg13[%c0_33, %c0_34], %34 {strides = array<i32>} : memref<8x512xf32, #tpu.memory_space<vmem>>, vector<8x512xf32>,
    return
  }
}

module attributes {stable_mosaic.version = 11 : i64} {
  func.func @_linear_kernel(%arg0: i32, %arg1: i32, %arg2: memref<64x64xf32, #tpu.memory_space<vmem>>, %arg3: memref<64x512xf32, #tpu.memory_space<vmem>>, %arg4: memref<1x512xf32, #tpu.memory_space<vmem>>, %arg5: memref<64x512xf32, #tpu.memory_space<vmem>>) attributes {dimension_semantics = [#tpu.dimension_semantics<parallel>, #tpu.dimension_semantics<parallel>], iteration_bounds = array<i64: 1, 1>, scalar_prefetch = 0 : i64, scratch_operands = 0 : i64, tpu.core_type = #tpu.core_type<tc>, window_params = [{transform_indices = @transform_0, window_bounds = array<i64: 64, 64>}, {transform_indices = @transform_1, window_bounds = array<i64: 64, 512>}, {transform_indices = @transform_2, window_bounds = array<i64: 1, 512>}, {transform_indices = @transform_3, window_bounds = array<i64: 64, 512>}]} {
    %c0 = arith.constant 0 : index
    %c0_0 = arith.constant 0 : index
    %0 = vector.load %arg2[%c0, %c0_0] : memref<64x64xf32, #tpu.memory_space<vmem>>, vector<64x64xf32>
    %c0_1 = arith.constant 0 : index
    %c0_2 = arith.constant 0 : index
    %1 = vector.load %arg3[%c0_1, %c0_2] : memref<64x512xf32, #tpu.memory_space<vmem>>, vector<64x512xf32>
    %cst = arith.constant dense<0.000000e+00> : vector<64x512xf32>
    %2 = tpu.matmul %0, %1, %cst {dimension_numbers = #tpu.dot_dimension_numbers<[1], [0], [0], [1], [0, 0, 1, 1], [], []>} : vector<64x64xf32>, vector<64x512xf32>, vector<64x512xf32> -> vector<64x512xf32>
    %c0_3 = arith.constant 0 : index
    %c0_4 = arith.constant 0 : index
    %3 = vector.load %arg4[%c0_3, %c0_4] : memref<1x512xf32, #tpu.memory_space<vmem>>, vector<1x512xf32>
    %4 = vector.broadcast %3 : vector<1x512xf32> to vector<64x512xf32>
    %5 = arith.addf %2, %4 : vector<64x512xf32>
    %c0_5 = arith.constant 0 : index
    %c0_6 = arith.constant 0 : index
    %6 = vector.load %arg5[%c0_5, %c0_6] : memref<64x512xf32, #tpu.memory_space<vmem>>, vector<64x512xf32>
    tpu.vector_store %arg5[%c0_5, %c0_6], %5 {strides = array<i32>} : memref<64x512xf32, #tpu.memory_space<vmem>>, vector<64x512xf32>,
    return
  }
  func.func @transform_0(%arg0: i32, %arg1: i32) -> (i32, i32) {
    %c0_i32 = arith.constant 0 : i32
    %c0_i32_0 = arith.constant 0 : i32
    return %arg0, %c0_i32 : i32, i32
  }
  func.func @transform_1(%arg0: i32, %arg1: i32) -> (i32, i32) {
    %c0_i32 = arith.constant 0 : i32
    %c0_i32_0 = arith.constant 0 : i32
    return %c0_i32, %arg1 : i32, i32
  }
  func.func @transform_2(%arg0: i32, %arg1: i32) -> (i32, i32) {
    %c0_i32 = arith.constant 0 : i32
    %c0_i32_0 = arith.constant 0 : i32
    return %c0_i32, %arg1 : i32, i32
  }
  func.func @transform_3(%arg0: i32, %arg1: i32) -> (i32, i32) {
    %c0_i32 = arith.constant 0 : i32
    return %arg0, %arg1 : i32, i32
  }
}

module attributes {stable_mosaic.version = 11 : i64} {
  func.func @_linear_kernel(%arg0: i32, %arg1: i32, %arg2: memref<64x128xf32, #tpu.memory_space<vmem>>, %arg3: memref<128x64xf32, #tpu.memory_space<vmem>>, %arg4: memref<1x64xf32, #tpu.memory_space<vmem>>, %arg5: memref<64x64xf32, #tpu.memory_space<vmem>>) attributes {dimension_semantics = [#tpu.dimension_semantics<parallel>, #tpu.dimension_semantics<parallel>], iteration_bounds = array<i64: 1, 1>, scalar_prefetch = 0 : i64, scratch_operands = 0 : i64, tpu.core_type = #tpu.core_type<tc>, window_params = [{transform_indices = @transform_0, window_bounds = array<i64: 64, 128>}, {transform_indices = @transform_1, window_bounds = array<i64: 128, 64>}, {transform_indices = @transform_2, window_bounds = array<i64: 1, 64>}, {transform_indices = @transform_3, window_bounds = array<i64: 64, 64>}]} {
    %c0 = arith.constant 0 : index
    %c0_0 = arith.constant 0 : index
    %0 = vector.load %arg2[%c0, %c0_0] : memref<64x128xf32, #tpu.memory_space<vmem>>, vector<64x128xf32>
    %c0_1 = arith.constant 0 : index
    %c0_2 = arith.constant 0 : index
    %1 = vector.load %arg3[%c0_1, %c0_2] : memref<128x64xf32, #tpu.memory_space<vmem>>, vector<128x64xf32>
    %cst = arith.constant dense<0.000000e+00> : vector<64x64xf32>
    %2 = tpu.matmul %0, %1, %cst {dimension_numbers = #tpu.dot_dimension_numbers<[1], [0], [0], [1], [0, 0, 1, 1], [], []>} : vector<64x128xf32>, vector<128x64xf32>, vector<64x64xf32> -> vector<64x64xf32>
    %c0_3 = arith.constant 0 : index
    %c0_4 = arith.constant 0 : index
    %3 = vector.load %arg4[%c0_3, %c0_4] : memref<1x64xf32, #tpu.memory_space<vmem>>, vector<1x64xf32>
    %4 = vector.broadcast %3 : vector<1x64xf32> to vector<64x64xf32>
    %5 = arith.addf %2, %4 : vector<64x64xf32>
    %c0_5 = arith.constant 0 : index
    %c0_6 = arith.constant 0 : index
    %6 = vector.load %arg5[%c0_5, %c0_6] : memref<64x64xf32, #tpu.memory_space<vmem>>, vector<64x64xf32>
    tpu.vector_store %arg5[%c0_5, %c0_6], %5 {strides = array<i32>} : memref<64x64xf32, #tpu.memory_space<vmem>>, vector<64x64xf32>,
    return
  }
  func.func @transform_0(%arg0: i32, %arg1: i32) -> (i32, i32) {
    %c0_i32 = arith.constant 0 : i32
    %c0_i32_0 = arith.constant 0 : i32
    return %arg0, %c0_i32 : i32, i32
  }
  func.func @transform_1(%arg0: i32, %arg1: i32) -> (i32, i32) {
    %c0_i32 = arith.constant 0 : i32
    %c0_i32_0 = arith.constant 0 : i32
    return %c0_i32, %arg1 : i32, i32
  }
  func.func @transform_2(%arg0: i32, %arg1: i32) -> (i32, i32) {
    %c0_i32 = arith.constant 0 : i32
    %c0_i32_0 = arith.constant 0 : i32
    return %c0_i32, %arg1 : i32, i32
  }
  func.func @transform_3(%arg0: i32, %arg1: i32) -> (i32, i32) {
    %c0_i32 = arith.constant 0 : i32
    return %arg0, %arg1 : i32, i32
  }
}

module attributes {stable_mosaic.version = 11 : i64} {
  func.func @lstm_recurrence_kernel(%arg0: memref<8x8x512xf32, #tpu.memory_space<vmem>>, %arg1: memref<8x512xf32, #tpu.memory_space<vmem>>, %arg2: memref<128x512xf32, #tpu.memory_space<vmem>>, %arg3: memref<8x8x128xf32, #tpu.memory_space<vmem>>, %arg4: memref<8x128xf32, #tpu.memory_space<vmem>>, %arg5: memref<8x128xf32, #tpu.memory_space<vmem>>) attributes {dimension_semantics = [], scalar_prefetch = 0 : i64, scratch_operands = 0 : i64, tpu.core_type = #tpu.core_type<tc>} {
    %c0 = arith.constant 0 : index
    %c0_0 = arith.constant 0 : index
    %0 = vector.load %arg1[%c0, %c0_0] : memref<8x512xf32, #tpu.memory_space<vmem>>, vector<8x512xf32>
    %c0_1 = arith.constant 0 : index
    %c0_2 = arith.constant 0 : index
    %1 = vector.load %arg2[%c0_1, %c0_2] : memref<128x512xf32, #tpu.memory_space<vmem>>, vector<128x512xf32>
    %cst = arith.constant 0.000000e+00 : f32
    %2 = vector.broadcast %cst : f32 to vector<8x128xf32>
    %cst_3 = arith.constant 0.000000e+00 : f32
    %3 = vector.broadcast %cst_3 : f32 to vector<8x128xf32>
    %c0_i32 = arith.constant 0 : i32
    %4 = arith.index_cast %c0_i32 : i32 to index
    %c0_4 = arith.constant 0 : index
    %c0_5 = arith.constant 0 : index
    %5 = vector.load %arg0[%4, %c0_4, %c0_5] : memref<8x8x512xf32, #tpu.memory_space<vmem>>, vector<1x8x512xf32>
    %6 = vector.shape_cast %5 : vector<1x8x512xf32> to vector<8x512xf32>
    %7 = arith.addf %6, %0 : vector<8x512xf32>
    %cst_6 = arith.constant dense<0.000000e+00> : vector<8x512xf32>
    %8 = tpu.matmul %2, %1, %cst_6 {dimension_numbers = #tpu.dot_dimension_numbers<[1], [0], [0], [1], [0, 0, 1, 1], [], []>} : vector<8x128xf32>, vector<128x512xf32>, vector<8x512xf32> -> vector<8x512xf32>
    %9 = arith.addf %7, %8 : vector<8x512xf32>
    %10 = vector.extract_strided_slice %9 {offsets = [0, 0], sizes = [8, 128], strides = [1, 1]} : vector<8x512xf32> to vector<8x128xf32>
    %11 = arith.negf %10 : vector<8x128xf32>
    %12 = math.exp %11 : vector<8x128xf32>
    %cst_7 = arith.constant 1.000000e+00 : f32
    %13 = vector.broadcast %cst_7 : f32 to vector<8x128xf32>
    %14 = arith.addf %13, %12 : vector<8x128xf32>
    %15 = arith.divf %13, %14 : vector<8x128xf32>
    %16 = vector.extract_strided_slice %9 {offsets = [0, 128], sizes = [8, 128], strides = [1, 1]} : vector<8x512xf32> to vector<8x128xf32>
    %17 = arith.negf %16 : vector<8x128xf32>
    %18 = math.exp %17 : vector<8x128xf32>
    %cst_8 = arith.constant 1.000000e+00 : f32
    %19 = vector.broadcast %cst_8 : f32 to vector<8x128xf32>
    %20 = arith.addf %19, %18 : vector<8x128xf32>
    %21 = arith.divf %19, %20 : vector<8x128xf32>
    %22 = vector.extract_strided_slice %9 {offsets = [0, 256], sizes = [8, 128], strides = [1, 1]} : vector<8x512xf32> to vector<8x128xf32>
    %23 = math.tanh %22 : vector<8x128xf32>
    %24 = vector.extract_strided_slice %9 {offsets = [0, 384], sizes = [8, 128], strides = [1, 1]} : vector<8x512xf32> to vector<8x128xf32>
    %25 = arith.negf %24 : vector<8x128xf32>
    %26 = math.exp %25 : vector<8x128xf32>
    %cst_9 = arith.constant 1.000000e+00 : f32
    %27 = vector.broadcast %cst_9 : f32 to vector<8x128xf32>
    %28 = arith.addf %27, %26 : vector<8x128xf32>
    %29 = arith.divf %27, %28 : vector<8x128xf32>
    %30 = arith.mulf %21, %3 : vector<8x128xf32>
    %31 = arith.mulf %15, %23 : vector<8x128xf32>
    %32 = arith.addf %30, %31 : vector<8x128xf32>
    %33 = math.tanh %32 : vector<8x128xf32>
    %34 = arith.mulf %29, %33 : vector<8x128xf32>
    %35 = arith.index_cast %c0_i32 : i32 to index
    %c0_10 = arith.constant 0 : index
    %c0_11 = arith.constant 0 : index
    %36 = vector.load %arg3[%35, %c0_10, %c0_11] : memref<8x8x128xf32, #tpu.memory_space<vmem>>, vector<1x8x128xf32>
    %37 = vector.shape_cast %36 : vector<1x8x128xf32> to vector<8x128xf32>
    %38 = vector.shape_cast %34 : vector<8x128xf32> to vector<1x8x128xf32>
    tpu.vector_store %arg3[%35, %c0_10, %c0_11], %38 {strides = array<i32>} : memref<8x8x128xf32, #tpu.memory_space<vmem>>, vector<1x8x128xf32>,
    %c1_i32 = arith.constant 1 : i32
    %39 = arith.index_cast %c1_i32 : i32 to index
    %c0_12 = arith.constant 0 : index
    %c0_13 = arith.constant 0 : index
    %40 = vector.load %arg0[%39, %c0_12, %c0_13] : memref<8x8x512xf32, #tpu.memory_space<vmem>>, vector<1x8x512xf32>
    %41 = vector.shape_cast %40 : vector<1x8x512xf32> to vector<8x512xf32>
    %42 = arith.addf %41, %0 : vector<8x512xf32>
    %cst_14 = arith.constant dense<0.000000e+00> : vector<8x512xf32>
    %43 = tpu.matmul %34, %1, %cst_14 {dimension_numbers = #tpu.dot_dimension_numbers<[1], [0], [0], [1], [0, 0, 1, 1], [], []>} : vector<8x128xf32>, vector<128x512xf32>, vector<8x512xf32> -> vector<8x512xf32>
    %44 = arith.addf %42, %43 : vector<8x512xf32>
    %45 = vector.extract_strided_slice %44 {offsets = [0, 0], sizes = [8, 128], strides = [1, 1]} : vector<8x512xf32> to vector<8x128xf32>
    %46 = arith.negf %45 : vector<8x128xf32>
    %47 = math.exp %46 : vector<8x128xf32>
    %cst_15 = arith.constant 1.000000e+00 : f32
    %48 = vector.broadcast %cst_15 : f32 to vector<8x128xf32>
    %49 = arith.addf %48, %47 : vector<8x128xf32>
    %50 = arith.divf %48, %49 : vector<8x128xf32>
    %51 = vector.extract_strided_slice %44 {offsets = [0, 128], sizes = [8, 128], strides = [1, 1]} : vector<8x512xf32> to vector<8x128xf32>
    %52 = arith.negf %51 : vector<8x128xf32>
    %53 = math.exp %52 : vector<8x128xf32>
    %cst_16 = arith.constant 1.000000e+00 : f32
    %54 = vector.broadcast %cst_16 : f32 to vector<8x128xf32>
    %55 = arith.addf %54, %53 : vector<8x128xf32>
    %56 = arith.divf %54, %55 : vector<8x128xf32>
    %57 = vector.extract_strided_slice %44 {offsets = [0, 256], sizes = [8, 128], strides = [1, 1]} : vector<8x512xf32> to vector<8x128xf32>
    %58 = math.tanh %57 : vector<8x128xf32>
    %59 = vector.extract_strided_slice %44 {offsets = [0, 384], sizes = [8, 128], strides = [1, 1]} : vector<8x512xf32> to vector<8x128xf32>
    %60 = arith.negf %59 : vector<8x128xf32>
    %61 = math.exp %60 : vector<8x128xf32>
    %cst_17 = arith.constant 1.000000e+00 : f32
    %62 = vector.broadcast %cst_17 : f32 to vector<8x128xf32>
    %63 = arith.addf %62, %61 : vector<8x128xf32>
    %64 = arith.divf %62, %63 : vector<8x128xf32>
    %65 = arith.mulf %56, %32 : vector<8x128xf32>
    %66 = arith.mulf %50, %58 : vector<8x128xf32>
    %67 = arith.addf %65, %66 : vector<8x128xf32>
    %68 = math.tanh %67 : vector<8x128xf32>
    %69 = arith.mulf %64, %68 : vector<8x128xf32>
    %70 = arith.index_cast %c1_i32 : i32 to index
    %c0_18 = arith.constant 0 : index
    %c0_19 = arith.constant 0 : index
    %71 = vector.load %arg3[%70, %c0_18, %c0_19] : memref<8x8x128xf32, #tpu.memory_space<vmem>>, vector<1x8x128xf32>
    %72 = vector.shape_cast %71 : vector<1x8x128xf32> to vector<8x128xf32>
    %73 = vector.shape_cast %69 : vector<8x128xf32> to vector<1x8x128xf32>
    tpu.vector_store %arg3[%70, %c0_18, %c0_19], %73 {strides = array<i32>} : memref<8x8x128xf32, #tpu.memory_space<vmem>>, vector<1x8x128xf32>,
    %c2_i32 = arith.constant 2 : i32
    %74 = arith.index_cast %c2_i32 : i32 to index
    %c0_20 = arith.constant 0 : index
    %c0_21 = arith.constant 0 : index
    %75 = vector.load %arg0[%74, %c0_20, %c0_21] : memref<8x8x512xf32, #tpu.memory_space<vmem>>, vector<1x8x512xf32>
    %76 = vector.shape_cast %75 : vector<1x8x512xf32> to vector<8x512xf32>
    %77 = arith.addf %76, %0 : vector<8x512xf32>
    %cst_22 = arith.constant dense<0.000000e+00> : vector<8x512xf32>
    %78 = tpu.matmul %69, %1, %cst_22 {dimension_numbers = #tpu.dot_dimension_numbers<[1], [0], [0], [1], [0, 0, 1, 1], [], []>} : vector<8x128xf32>, vector<128x512xf32>, vector<8x512xf32> -> vector<8x512xf32>
    %79 = arith.addf %77, %78 : vector<8x512xf32>
    %80 = vector.extract_strided_slice %79 {offsets = [0, 0], sizes = [8, 128], strides = [1, 1]} : vector<8x512xf32> to vector<8x128xf32>
    %81 = arith.negf %80 : vector<8x128xf32>
    %82 = math.exp %81 : vector<8x128xf32>
    %cst_23 = arith.constant 1.000000e+00 : f32
    %83 = vector.broadcast %cst_23 : f32 to vector<8x128xf32>
    %84 = arith.addf %83, %82 : vector<8x128xf32>
    %85 = arith.divf %83, %84 : vector<8x128xf32>
    %86 = vector.extract_strided_slice %79 {offsets = [0, 128], sizes = [8, 128], strides = [1, 1]} : vector<8x512xf32> to vector<8x128xf32>
    %87 = arith.negf %86 : vector<8x128xf32>
    %88 = math.exp %87 : vector<8x128xf32>
    %cst_24 = arith.constant 1.000000e+00 : f32
    %89 = vector.broadcast %cst_24 : f32 to vector<8x128xf32>
    %90 = arith.addf %89, %88 : vector<8x128xf32>
    %91 = arith.divf %89, %90 : vector<8x128xf32>
    %92 = vector.extract_strided_slice %79 {offsets = [0, 256], sizes = [8, 128], strides = [1, 1]} : vector<8x512xf32> to vector<8x128xf32>
    %93 = math.tanh %92 : vector<8x128xf32>
    %94 = vector.extract_strided_slice %79 {offsets = [0, 384], sizes = [8, 128], strides = [1, 1]} : vector<8x512xf32> to vector<8x128xf32>
    %95 = arith.negf %94 : vector<8x128xf32>
    %96 = math.exp %95 : vector<8x128xf32>
    %cst_25 = arith.constant 1.000000e+00 : f32
    %97 = vector.broadcast %cst_25 : f32 to vector<8x128xf32>
    %98 = arith.addf %97, %96 : vector<8x128xf32>
    %99 = arith.divf %97, %98 : vector<8x128xf32>
    %100 = arith.mulf %91, %67 : vector<8x128xf32>
    %101 = arith.mulf %85, %93 : vector<8x128xf32>
    %102 = arith.addf %100, %101 : vector<8x128xf32>
    %103 = math.tanh %102 : vector<8x128xf32>
    %104 = arith.mulf %99, %103 : vector<8x128xf32>
    %105 = arith.index_cast %c2_i32 : i32 to index
    %c0_26 = arith.constant 0 : index
    %c0_27 = arith.constant 0 : index
    %106 = vector.load %arg3[%105, %c0_26, %c0_27] : memref<8x8x128xf32, #tpu.memory_space<vmem>>, vector<1x8x128xf32>
    %107 = vector.shape_cast %106 : vector<1x8x128xf32> to vector<8x128xf32>
    %108 = vector.shape_cast %104 : vector<8x128xf32> to vector<1x8x128xf32>
    tpu.vector_store %arg3[%105, %c0_26, %c0_27], %108 {strides = array<i32>} : memref<8x8x128xf32, #tpu.memory_space<vmem>>, vector<1x8x128xf32>,
    %c3_i32 = arith.constant 3 : i32
    %109 = arith.index_cast %c3_i32 : i32 to index
    %c0_28 = arith.constant 0 : index
    %c0_29 = arith.constant 0 : index
    %110 = vector.load %arg0[%109, %c0_28, %c0_29] : memref<8x8x512xf32, #tpu.memory_space<vmem>>, vector<1x8x512xf32>
    %111 = vector.shape_cast %110 : vector<1x8x512xf32> to vector<8x512xf32>
    %112 = arith.addf %111, %0 : vector<8x512xf32>
    %cst_30 = arith.constant dense<0.000000e+00> : vector<8x512xf32>
    %113 = tpu.matmul %104, %1, %cst_30 {dimension_numbers = #tpu.dot_dimension_numbers<[1], [0], [0], [1], [0, 0, 1, 1], [], []>} : vector<8x128xf32>, vector<128x512xf32>, vector<8x512xf32> -> vector<8x512xf32>
    %114 = arith.addf %112, %113 : vector<8x512xf32>
    %115 = vector.extract_strided_slice %114 {offsets = [0, 0], sizes = [8, 128], strides = [1, 1]} : vector<8x512xf32> to vector<8x128xf32>
    %116 = arith.negf %115 : vector<8x128xf32>
    %117 = math.exp %116 : vector<8x128xf32>
    %cst_31 = arith.constant 1.000000e+00 : f32
    %118 = vector.broadcast %cst_31 : f32 to vector<8x128xf32>
    %119 = arith.addf %118, %117 : vector<8x128xf32>
    %120 = arith.divf %118, %119 : vector<8x128xf32>
    %121 = vector.extract_strided_slice %114 {offsets = [0, 128], sizes = [8, 128], strides = [1, 1]} : vector<8x512xf32> to vector<8x128xf32>
    %122 = arith.negf %121 : vector<8x128xf32>
    %123 = math.exp %122 : vector<8x128xf32>
    %cst_32 = arith.constant 1.000000e+00 : f32
    %124 = vector.broadcast %cst_32 : f32 to vector<8x128xf32>
    %125 = arith.addf %124, %123 : vector<8x128xf32>
    %126 = arith.divf %124, %125 : vector<8x128xf32>
    %127 = vector.extract_strided_slice %114 {offsets = [0, 256], sizes = [8, 128], strides = [1, 1]} : vector<8x512xf32> to vector<8x128xf32>
    %128 = math.tanh %127 : vector<8x128xf32>
    %129 = vector.extract_strided_slice %114 {offsets = [0, 384], sizes = [8, 128], strides = [1, 1]} : vector<8x512xf32> to vector<8x128xf32>
    %130 = arith.negf %129 : vector<8x128xf32>
    %131 = math.exp %130 : vector<8x128xf32>
    %cst_33 = arith.constant 1.000000e+00 : f32
    %132 = vector.broadcast %cst_33 : f32 to vector<8x128xf32>
    %133 = arith.addf %132, %131 : vector<8x128xf32>
    %134 = arith.divf %132, %133 : vector<8x128xf32>
    %135 = arith.mulf %126, %102 : vector<8x128xf32>
    %136 = arith.mulf %120, %128 : vector<8x128xf32>
    %137 = arith.addf %135, %136 : vector<8x128xf32>
    %138 = math.tanh %137 : vector<8x128xf32>
    %139 = arith.mulf %134, %138 : vector<8x128xf32>
    %140 = arith.index_cast %c3_i32 : i32 to index
    %c0_34 = arith.constant 0 : index
    %c0_35 = arith.constant 0 : index
    %141 = vector.load %arg3[%140, %c0_34, %c0_35] : memref<8x8x128xf32, #tpu.memory_space<vmem>>, vector<1x8x128xf32>
    %142 = vector.shape_cast %141 : vector<1x8x128xf32> to vector<8x128xf32>
    %143 = vector.shape_cast %139 : vector<8x128xf32> to vector<1x8x128xf32>
    tpu.vector_store %arg3[%140, %c0_34, %c0_35], %143 {strides = array<i32>} : memref<8x8x128xf32, #tpu.memory_space<vmem>>, vector<1x8x128xf32>,
    %c4_i32 = arith.constant 4 : i32
    %144 = arith.index_cast %c4_i32 : i32 to index
    %c0_36 = arith.constant 0 : index
    %c0_37 = arith.constant 0 : index
    %145 = vector.load %arg0[%144, %c0_36, %c0_37] : memref<8x8x512xf32, #tpu.memory_space<vmem>>, vector<1x8x512xf32>
    %146 = vector.shape_cast %145 : vector<1x8x512xf32> to vector<8x512xf32>
    %147 = arith.addf %146, %0 : vector<8x512xf32>
    %cst_38 = arith.constant dense<0.000000e+00> : vector<8x512xf32>
    %148 = tpu.matmul %139, %1, %cst_38 {dimension_numbers = #tpu.dot_dimension_numbers<[1], [0], [0], [1], [0, 0, 1, 1], [], []>} : vector<8x128xf32>, vector<128x512xf32>, vector<8x512xf32> -> vector<8x512xf32>
    %149 = arith.addf %147, %148 : vector<8x512xf32>
    %150 = vector.extract_strided_slice %149 {offsets = [0, 0], sizes = [8, 128], strides = [1, 1]} : vector<8x512xf32> to vector<8x128xf32>
    %151 = arith.negf %150 : vector<8x128xf32>
    %152 = math.exp %151 : vector<8x128xf32>
    %cst_39 = arith.constant 1.000000e+00 : f32
    %153 = vector.broadcast %cst_39 : f32 to vector<8x128xf32>
    %154 = arith.addf %153, %152 : vector<8x128xf32>
    %155 = arith.divf %153, %154 : vector<8x128xf32>
    %156 = vector.extract_strided_slice %149 {offsets = [0, 128], sizes = [8, 128], strides = [1, 1]} : vector<8x512xf32> to vector<8x128xf32>
    %157 = arith.negf %156 : vector<8x128xf32>
    %158 = math.exp %157 : vector<8x128xf32>
    %cst_40 = arith.constant 1.000000e+00 : f32
    %159 = vector.broadcast %cst_40 : f32 to vector<8x128xf32>
    %160 = arith.addf %159, %158 : vector<8x128xf32>
    %161 = arith.divf %159, %160 : vector<8x128xf32>
    %162 = vector.extract_strided_slice %149 {offsets = [0, 256], sizes = [8, 128], strides = [1, 1]} : vector<8x512xf32> to vector<8x128xf32>
    %163 = math.tanh %162 : vector<8x128xf32>
    %164 = vector.extract_strided_slice %149 {offsets = [0, 384], sizes = [8, 128], strides = [1, 1]} : vector<8x512xf32> to vector<8x128xf32>
    %165 = arith.negf %164 : vector<8x128xf32>
    %166 = math.exp %165 : vector<8x128xf32>
    %cst_41 = arith.constant 1.000000e+00 : f32
    %167 = vector.broadcast %cst_41 : f32 to vector<8x128xf32>
    %168 = arith.addf %167, %166 : vector<8x128xf32>
    %169 = arith.divf %167, %168 : vector<8x128xf32>
    %170 = arith.mulf %161, %137 : vector<8x128xf32>
    %171 = arith.mulf %155, %163 : vector<8x128xf32>
    %172 = arith.addf %170, %171 : vector<8x128xf32>
    %173 = math.tanh %172 : vector<8x128xf32>
    %174 = arith.mulf %169, %173 : vector<8x128xf32>
    %175 = arith.index_cast %c4_i32 : i32 to index
    %c0_42 = arith.constant 0 : index
    %c0_43 = arith.constant 0 : index
    %176 = vector.load %arg3[%175, %c0_42, %c0_43] : memref<8x8x128xf32, #tpu.memory_space<vmem>>, vector<1x8x128xf32>
    %177 = vector.shape_cast %176 : vector<1x8x128xf32> to vector<8x128xf32>
    %178 = vector.shape_cast %174 : vector<8x128xf32> to vector<1x8x128xf32>
    tpu.vector_store %arg3[%175, %c0_42, %c0_43], %178 {strides = array<i32>} : memref<8x8x128xf32, #tpu.memory_space<vmem>>, vector<1x8x128xf32>,
    %c5_i32 = arith.constant 5 : i32
    %179 = arith.index_cast %c5_i32 : i32 to index
    %c0_44 = arith.constant 0 : index
    %c0_45 = arith.constant 0 : index
    %180 = vector.load %arg0[%179, %c0_44, %c0_45] : memref<8x8x512xf32, #tpu.memory_space<vmem>>, vector<1x8x512xf32>
    %181 = vector.shape_cast %180 : vector<1x8x512xf32> to vector<8x512xf32>
    %182 = arith.addf %181, %0 : vector<8x512xf32>
    %cst_46 = arith.constant dense<0.000000e+00> : vector<8x512xf32>
    %183 = tpu.matmul %174, %1, %cst_46 {dimension_numbers = #tpu.dot_dimension_numbers<[1], [0], [0], [1], [0, 0, 1, 1], [], []>} : vector<8x128xf32>, vector<128x512xf32>, vector<8x512xf32> -> vector<8x512xf32>
    %184 = arith.addf %182, %183 : vector<8x512xf32>
    %185 = vector.extract_strided_slice %184 {offsets = [0, 0], sizes = [8, 128], strides = [1, 1]} : vector<8x512xf32> to vector<8x128xf32>
    %186 = arith.negf %185 : vector<8x128xf32>
    %187 = math.exp %186 : vector<8x128xf32>
    %cst_47 = arith.constant 1.000000e+00 : f32
    %188 = vector.broadcast %cst_47 : f32 to vector<8x128xf32>
    %189 = arith.addf %188, %187 : vector<8x128xf32>
    %190 = arith.divf %188, %189 : vector<8x128xf32>
    %191 = vector.extract_strided_slice %184 {offsets = [0, 128], sizes = [8, 128], strides = [1, 1]} : vector<8x512xf32> to vector<8x128xf32>
    %192 = arith.negf %191 : vector<8x128xf32>
    %193 = math.exp %192 : vector<8x128xf32>
    %cst_48 = arith.constant 1.000000e+00 : f32
    %194 = vector.broadcast %cst_48 : f32 to vector<8x128xf32>
    %195 = arith.addf %194, %193 : vector<8x128xf32>
    %196 = arith.divf %194, %195 : vector<8x128xf32>
    %197 = vector.extract_strided_slice %184 {offsets = [0, 256], sizes = [8, 128], strides = [1, 1]} : vector<8x512xf32> to vector<8x128xf32>
    %198 = math.tanh %197 : vector<8x128xf32>
    %199 = vector.extract_strided_slice %184 {offsets = [0, 384], sizes = [8, 128], strides = [1, 1]} : vector<8x512xf32> to vector<8x128xf32>
    %200 = arith.negf %199 : vector<8x128xf32>
    %201 = math.exp %200 : vector<8x128xf32>
    %cst_49 = arith.constant 1.000000e+00 : f32
    %202 = vector.broadcast %cst_49 : f32 to vector<8x128xf32>
    %203 = arith.addf %202, %201 : vector<8x128xf32>
    %204 = arith.divf %202, %203 : vector<8x128xf32>
    %205 = arith.mulf %196, %172 : vector<8x128xf32>
    %206 = arith.mulf %190, %198 : vector<8x128xf32>
    %207 = arith.addf %205, %206 : vector<8x128xf32>
    %208 = math.tanh %207 : vector<8x128xf32>
    %209 = arith.mulf %204, %208 : vector<8x128xf32>
    %210 = arith.index_cast %c5_i32 : i32 to index
    %c0_50 = arith.constant 0 : index
    %c0_51 = arith.constant 0 : index
    %211 = vector.load %arg3[%210, %c0_50, %c0_51] : memref<8x8x128xf32, #tpu.memory_space<vmem>>, vector<1x8x128xf32>
    %212 = vector.shape_cast %211 : vector<1x8x128xf32> to vector<8x128xf32>
    %213 = vector.shape_cast %209 : vector<8x128xf32> to vector<1x8x128xf32>
    tpu.vector_store %arg3[%210, %c0_50, %c0_51], %213 {strides = array<i32>} : memref<8x8x128xf32, #tpu.memory_space<vmem>>, vector<1x8x128xf32>,
    %c6_i32 = arith.constant 6 : i32
    %214 = arith.index_cast %c6_i32 : i32 to index
    %c0_52 = arith.constant 0 : index
    %c0_53 = arith.constant 0 : index
    %215 = vector.load %arg0[%214, %c0_52, %c0_53] : memref<8x8x512xf32, #tpu.memory_space<vmem>>, vector<1x8x512xf32>
    %216 = vector.shape_cast %215 : vector<1x8x512xf32> to vector<8x512xf32>
    %217 = arith.addf %216, %0 : vector<8x512xf32>
    %cst_54 = arith.constant dense<0.000000e+00> : vector<8x512xf32>
    %218 = tpu.matmul %209, %1, %cst_54 {dimension_numbers = #tpu.dot_dimension_numbers<[1], [0], [0], [1], [0, 0, 1, 1], [], []>} : vector<8x128xf32>, vector<128x512xf32>, vector<8x512xf32> -> vector<8x512xf32>
    %219 = arith.addf %217, %218 : vector<8x512xf32>
    %220 = vector.extract_strided_slice %219 {offsets = [0, 0], sizes = [8, 128], strides = [1, 1]} : vector<8x512xf32> to vector<8x128xf32>
    %221 = arith.negf %220 : vector<8x128xf32>
    %222 = math.exp %221 : vector<8x128xf32>
    %cst_55 = arith.constant 1.000000e+00 : f32
    %223 = vector.broadcast %cst_55 : f32 to vector<8x128xf32>
    %224 = arith.addf %223, %222 : vector<8x128xf32>
    %225 = arith.divf %223, %224 : vector<8x128xf32>
    %226 = vector.extract_strided_slice %219 {offsets = [0, 128], sizes = [8, 128], strides = [1, 1]} : vector<8x512xf32> to vector<8x128xf32>
    %227 = arith.negf %226 : vector<8x128xf32>
    %228 = math.exp %227 : vector<8x128xf32>
    %cst_56 = arith.constant 1.000000e+00 : f32
    %229 = vector.broadcast %cst_56 : f32 to vector<8x128xf32>
    %230 = arith.addf %229, %228 : vector<8x128xf32>
    %231 = arith.divf %229, %230 : vector<8x128xf32>
    %232 = vector.extract_strided_slice %219 {offsets = [0, 256], sizes = [8, 128], strides = [1, 1]} : vector<8x512xf32> to vector<8x128xf32>
    %233 = math.tanh %232 : vector<8x128xf32>
    %234 = vector.extract_strided_slice %219 {offsets = [0, 384], sizes = [8, 128], strides = [1, 1]} : vector<8x512xf32> to vector<8x128xf32>
    %235 = arith.negf %234 : vector<8x128xf32>
    %236 = math.exp %235 : vector<8x128xf32>
    %cst_57 = arith.constant 1.000000e+00 : f32
    %237 = vector.broadcast %cst_57 : f32 to vector<8x128xf32>
    %238 = arith.addf %237, %236 : vector<8x128xf32>
    %239 = arith.divf %237, %238 : vector<8x128xf32>
    %240 = arith.mulf %231, %207 : vector<8x128xf32>
    %241 = arith.mulf %225, %233 : vector<8x128xf32>
    %242 = arith.addf %240, %241 : vector<8x128xf32>
    %243 = math.tanh %242 : vector<8x128xf32>
    %244 = arith.mulf %239, %243 : vector<8x128xf32>
    %245 = arith.index_cast %c6_i32 : i32 to index
    %c0_58 = arith.constant 0 : index
    %c0_59 = arith.constant 0 : index
    %246 = vector.load %arg3[%245, %c0_58, %c0_59] : memref<8x8x128xf32, #tpu.memory_space<vmem>>, vector<1x8x128xf32>
    %247 = vector.shape_cast %246 : vector<1x8x128xf32> to vector<8x128xf32>
    %248 = vector.shape_cast %244 : vector<8x128xf32> to vector<1x8x128xf32>
    tpu.vector_store %arg3[%245, %c0_58, %c0_59], %248 {strides = array<i32>} : memref<8x8x128xf32, #tpu.memory_space<vmem>>, vector<1x8x128xf32>,
    %c7_i32 = arith.constant 7 : i32
    %249 = arith.index_cast %c7_i32 : i32 to index
    %c0_60 = arith.constant 0 : index
    %c0_61 = arith.constant 0 : index
    %250 = vector.load %arg0[%249, %c0_60, %c0_61] : memref<8x8x512xf32, #tpu.memory_space<vmem>>, vector<1x8x512xf32>
    %251 = vector.shape_cast %250 : vector<1x8x512xf32> to vector<8x512xf32>
    %252 = arith.addf %251, %0 : vector<8x512xf32>
    %cst_62 = arith.constant dense<0.000000e+00> : vector<8x512xf32>
    %253 = tpu.matmul %244, %1, %cst_62 {dimension_numbers = #tpu.dot_dimension_numbers<[1], [0], [0], [1], [0, 0, 1, 1], [], []>} : vector<8x128xf32>, vector<128x512xf32>, vector<8x512xf32> -> vector<8x512xf32>
    %254 = arith.addf %252, %253 : vector<8x512xf32>
    %255 = vector.extract_strided_slice %254 {offsets = [0, 0], sizes = [8, 128], strides = [1, 1]} : vector<8x512xf32> to vector<8x128xf32>
    %256 = arith.negf %255 : vector<8x128xf32>
    %257 = math.exp %256 : vector<8x128xf32>
    %cst_63 = arith.constant 1.000000e+00 : f32
    %258 = vector.broadcast %cst_63 : f32 to vector<8x128xf32>
    %259 = arith.addf %258, %257 : vector<8x128xf32>
    %260 = arith.divf %258, %259 : vector<8x128xf32>
    %261 = vector.extract_strided_slice %254 {offsets = [0, 128], sizes = [8, 128], strides = [1, 1]} : vector<8x512xf32> to vector<8x128xf32>
    %262 = arith.negf %261 : vector<8x128xf32>
    %263 = math.exp %262 : vector<8x128xf32>
    %cst_64 = arith.constant 1.000000e+00 : f32
    %264 = vector.broadcast %cst_64 : f32 to vector<8x128xf32>
    %265 = arith.addf %264, %263 : vector<8x128xf32>
    %266 = arith.divf %264, %265 : vector<8x128xf32>
    %267 = vector.extract_strided_slice %254 {offsets = [0, 256], sizes = [8, 128], strides = [1, 1]} : vector<8x512xf32> to vector<8x128xf32>
    %268 = math.tanh %267 : vector<8x128xf32>
    %269 = vector.extract_strided_slice %254 {offsets = [0, 384], sizes = [8, 128], strides = [1, 1]} : vector<8x512xf32> to vector<8x128xf32>
    %270 = arith.negf %269 : vector<8x128xf32>
    %271 = math.exp %270 : vector<8x128xf32>
    %cst_65 = arith.constant 1.000000e+00 : f32
    %272 = vector.broadcast %cst_65 : f32 to vector<8x128xf32>
    %273 = arith.addf %272, %271 : vector<8x128xf32>
    %274 = arith.divf %272, %273 : vector<8x128xf32>
    %275 = arith.mulf %266, %242 : vector<8x128xf32>
    %276 = arith.mulf %260, %268 : vector<8x128xf32>
    %277 = arith.addf %275, %276 : vector<8x128xf32>
    %278 = math.tanh %277 : vector<8x128xf32>
    %279 = arith.mulf %274, %278 : vector<8x128xf32>
    %280 = arith.index_cast %c7_i32 : i32 to index
    %c0_66 = arith.constant 0 : index
    %c0_67 = arith.constant 0 : index
    %281 = vector.load %arg3[%280, %c0_66, %c0_67] : memref<8x8x128xf32, #tpu.memory_space<vmem>>, vector<1x8x128xf32>
    %282 = vector.shape_cast %281 : vector<1x8x128xf32> to vector<8x128xf32>
    %283 = vector.shape_cast %279 : vector<8x128xf32> to vector<1x8x128xf32>
    tpu.vector_store %arg3[%280, %c0_66, %c0_67], %283 {strides = array<i32>} : memref<8x8x128xf32, #tpu.memory_space<vmem>>, vector<1x8x128xf32>,
    %c8_i32 = arith.constant 8 : i32
    %c0_68 = arith.constant 0 : index
    %c0_69 = arith.constant 0 : index
    %284 = vector.load %arg4[%c0_68, %c0_69] : memref<8x128xf32, #tpu.memory_space<vmem>>, vector<8x128xf32>
    tpu.vector_store %arg4[%c0_68, %c0_69], %279 {strides = array<i32>} : memref<8x128xf32, #tpu.memory_space<vmem>>, vector<8x128xf32>,
    %c0_70 = arith.constant 0 : index
    %c0_71 = arith.constant 0 : index
    %285 = vector.load %arg5[%c0_70, %c0_71] : memref<8x128xf32, #tpu.memory_space<vmem>>, vector<8x128xf32>
    tpu.vector_store %arg5[%c0_70, %c0_71], %277 {strides = array<i32>} : memref<8x128xf32, #tpu.memory_space<vmem>>, vector<8x128xf32>,
    return
  }
}

</mosaic_0001>

<llo_original>
// kernel: speaker_forward.7
$region0: #{speaker_forward.7}
  #allocation0 [shape = 'u32[]', space=smem, size = 0x4, offset = 0x4, fixed_abs, tag = 'smem constant byte address 0x4 - core index']
  #allocation1 [shape = 'u32[144,128]{1,0:T(1,128)}', space=vmem, size = 0x12000, scoped, tag = 'internal scratch']
  %s0 = inlined_call_operand.vmem [shape: f32[64,128], index: 0, kind: input, shape index: {}]
  %s1 = inlined_call_operand.vmem [shape: f32[128,64], index: 1, kind: input, shape index: {}]
  %s2 = inlined_call_operand.vmem [shape: f32[1,64], index: 2, kind: input, shape index: {}]
  %s3 = inlined_call_operand.vmem [shape: f32[64,64], index: 3, kind: output, shape index: {}]
  %s4 = sld [smem:[#allocation0]]
  $region22: #{speaker_forward.7} parent=0
    _
  %s6 = ssub.s32 1, %s4
  %s7 = scalar_select 0, %s6, %s4
  // Predicated region
  $region2: #{speaker_forward.7} parent=0 // pred_check
    _
  $region3: #{speaker_forward.7} parent=0 // pred_check_branch
    %9 = sbr.rel (0) target = $region5
  $region4: #{speaker_forward.7} parent=0 // pred_region
    _
  $region5: #{speaker_forward.7} parent=0 // pred_fallthru
    _
  // Predicated region
  $region6: #{speaker_forward.7} parent=0 // pred_check
    _
  $region7: #{speaker_forward.7} parent=0 // pred_check_branch
    %11 = sbr.rel (0) target = $region9
  $region8: #{speaker_forward.7} parent=0 // pred_region
    _
  $region9: #{speaker_forward.7} parent=0 // pred_fallthru
    _
  // Predicated region
  $region10: #{speaker_forward.7} parent=0 // pred_check
    _
  $region11: #{speaker_forward.7} parent=0 // pred_check_branch
    %13 = sbr.rel (0) target = $region13
  $region12: #{speaker_forward.7} parent=0 // pred_region
    _
  $region13: #{speaker_forward.7} parent=0 // pred_fallthru
    _
  %v14 = vld [vmem:[%s0] sm:$0xff]
  %v15 = vld [vmem:[%s0 + $0x8] sm:$0xff]
  %v16 = vld [vmem:[%s0 + $0x10] sm:$0xff]
  %v17 = vld [vmem:[%s0 + $0x18] sm:$0xff]
  %v18 = vld [vmem:[%s0 + $0x20] sm:$0xff]
  %v19 = vld [vmem:[%s0 + $0x28] sm:$0xff]
  %v20 = vld [vmem:[%s0 + $0x30] sm:$0xff]
  %v21 = vld [vmem:[%s0 + $0x38] sm:$0xff]
  %v22 = vld [vmem:[%s1] sm:$0xff]
  %v23 = vld [vmem:[%s1 + $0x8] sm:$0xff]
  %v24 = vld [vmem:[%s1 + $0x10] sm:$0xff]
  %v25 = vld [vmem:[%s1 + $0x18] sm:$0xff]
  %v26 = vld [vmem:[%s1 + $0x20] sm:$0xff]
  %v27 = vld [vmem:[%s1 + $0x28] sm:$0xff]
  %v28 = vld [vmem:[%s1 + $0x30] sm:$0xff]
  %v29 = vld [vmem:[%s1 + $0x38] sm:$0xff]
  %v30 = vld [vmem:[%s1 + $0x40] sm:$0xff]
  %v31 = vld [vmem:[%s1 + $0x48] sm:$0xff]
  %v32 = vld [vmem:[%s1 + $0x50] sm:$0xff]
  %v33 = vld [vmem:[%s1 + $0x58] sm:$0xff]
  %v34 = vld [vmem:[%s1 + $0x60] sm:$0xff]
  %v35 = vld [vmem:[%s1 + $0x68] sm:$0xff]
  %v36 = vld [vmem:[%s1 + $0x70] sm:$0xff]
  %v37 = vld [vmem:[%s1 + $0x78] sm:$0xff]
  %v38 = vld [vmem:[%s2] sm:$0x1]
  %v40 = vlaneseq
  %v41 = vshrl.u32 %v40, 7
  %v42 = vsub.s32 0, %v41
  %v43 = vrot.slane %v38, %v42
  %45 = vmatprep.subr.mxu0 0.0
  %46 = vmatpush1.msra.mxu0 %v22
  %47 = vmatprep.subr.mxu0 0.0
  %48 = vmatpush1.msra.mxu0 %v23
  %49 = vmatprep.subr.mxu0 0.0
  %50 = vmatpush1.msra.mxu0 %v24
  %51 = vmatprep.subr.mxu0 0.0
  %52 = vmatpush1.msra.mxu0 %v25
  %53 = vmatprep.subr.mxu0 0.0
  %54 = vmatpush1.msra.mxu0 %v26
  %55 = vmatprep.subr.mxu0 0.0
  %56 = vmatpush1.msra.mxu0 %v27
  %57 = vmatprep.subr.mxu0 0.0
  %58 = vmatpush1.msra.mxu0 %v28
  %59 = vmatprep.subr.mxu0 0.0
  %60 = vmatpush1.msra.mxu0 %v29
  %61 = vmatprep.subr.mxu0 0.0
  %62 = vmatpush1.msra.mxu0 %v30
  %63 = vmatprep.subr.mxu0 0.0
  %64 = vmatpush1.msra.mxu0 %v31
  %65 = vmatprep.subr.mxu0 0.0
  %66 = vmatpush1.msra.mxu0 %v32
  %67 = vmatprep.subr.mxu0 0.0
  %68 = vmatpush1.msra.mxu0 %v33
  %69 = vmatprep.subr.mxu0 0.0
  %70 = vmatpush1.msra.mxu0 %v34
  %71 = vmatprep.subr.mxu0 0.0
  %72 = vmatpush1.msra.mxu0 %v35
  %73 = vmatprep.subr.mxu0 0.0
  %74 = vmatpush1.msra.mxu0 %v36
  %75 = vmatprep.subr.mxu0 0.0
  %76 = vmatpush1.msra.mxu0 %v37
  %77 = vmatprep.subr.mxu0 0.0
  %78 = vmatpush1.msra.mxu0 0.0
  %79 = vmatprep.subr.mxu0 0.0
  %80 = vmatpush1.msra.mxu0 0.0
  %81 = vmatprep.subr.mxu0 0.0
  %82 = vmatpush1.msra.mxu0 0.0
  %83 = vmatprep.subr.mxu0 0.0
  %84 = vmatpush1.msra.mxu0 0.0
  %85 = vmatprep.subr.mxu0 0.0
  %86 = vmatpush1.msra.mxu0 0.0
  %87 = vmatprep.subr.mxu0 0.0
  %88 = vmatpush1.msra.mxu0 0.0
  %89 = vmatprep.subr.mxu0 0.0
  %90 = vmatpush1.msra.mxu0 0.0
  %91 = vmatprep.subr.mxu0 0.0
  %92 = vmatpush1.msra.mxu0 0.0
  %93 = vmatprep.subr.mxu0 0.0
  %94 = vmatpush1.msra.mxu0 0.0
  %95 = vmatprep.subr.mxu0 0.0
  %96 = vmatpush1.msra.mxu0 0.0
  %97 = vmatprep.subr.mxu0 0.0
  %98 = vmatpush1.msra.mxu0 0.0
  %99 = vmatprep.subr.mxu0 0.0
  %100 = vmatpush1.msra.mxu0 0.0
  %101 = vmatprep.subr.mxu0 0.0
  %102 = vmatpush1.msra.mxu0 0.0
  %103 = vmatprep.subr.mxu0 0.0
  %104 = vmatpush1.msra.mxu0 0.0
  %105 = vmatprep.subr.mxu0 0.0
  %106 = vmatpush1.msra.mxu0 0.0
  %107 = vmatprep.subr.mxu0 0.0
  %108 = vmatpush1.msra.mxu0 0.0
  %109 = vmatprep.mubr.f32.mxu0 0.0
  %110 = vmatmul.mubr.f32.gmra.mrb[0].mxu0 %v14
  %v111 = vpop.f32.mrb[0].mxu0
  %v112 = vadd.f32 %v43, %v111
  %v113 = vpop.f32.mrb[0].mxu0
  %114 = vmatprep.mubr.f32.mxu0 0.0
  %115 = vmatmul.mubr.f32.gmra.mrb[0].mxu0 %v15
  %v116 = vpop.f32.mrb[0].mxu0
  %v117 = vadd.f32 %v43, %v116
  %v118 = vpop.f32.mrb[0].mxu0
  %119 = vmatprep.mubr.f32.mxu0 0.0
  %120 = vmatmul.mubr.f32.gmra.mrb[0].mxu0 %v16
  %v121 = vpop.f32.mrb[0].mxu0
  %v122 = vadd.f32 %v43, %v121
  %v123 = vpop.f32.mrb[0].mxu0
  %124 = vmatprep.mubr.f32.mxu0 0.0
  %125 = vmatmul.mubr.f32.gmra.mrb[0].mxu0 %v17
  %v126 = vpop.f32.mrb[0].mxu0
  %v127 = vadd.f32 %v43, %v126
  %v128 = vpop.f32.mrb[0].mxu0
  %129 = vmatprep.mubr.f32.mxu0 0.0
  %130 = vmatmul.mubr.f32.gmra.mrb[0].mxu0 %v18
  %v131 = vpop.f32.mrb[0].mxu0
  %v132 = vadd.f32 %v43, %v131
  %v133 = vpop.f32.mrb[0].mxu0
  %134 = vmatprep.mubr.f32.mxu0 0.0
  %135 = vmatmul.mubr.f32.gmra.mrb[0].mxu0 %v19
  %v136 = vpop.f32.mrb[0].mxu0
  %v137 = vadd.f32 %v43, %v136
  %v138 = vpop.f32.mrb[0].mxu0
  %139 = vmatprep.mubr.f32.mxu0 0.0
  %140 = vmatmul.mubr.f32.gmra.mrb[0].mxu0 %v20
  %v141 = vpop.f32.mrb[0].mxu0
  %v142 = vadd.f32 %v43, %v141
  %v143 = vpop.f32.mrb[0].mxu0
  %144 = vmatprep.mubr.f32.mxu0 0.0
  %145 = vmatmul.mubr.f32.gmra.mrb[0].mxu0 %v21
  %v146 = vpop.f32.mrb[0].mxu0
  %v147 = vadd.f32 %v43, %v146
  %v148 = vpop.f32.mrb[0].mxu0
  %149 = vdwg.mxu0
  %vm150 = vcmask 523264
  %151 = vst.msk [vmem:[%s3] sm:$0xff] %vm150, %v112
  %152 = vst.msk [vmem:[%s3 + $0x8] sm:$0xff] %vm150, %v117
  %153 = vst.msk [vmem:[%s3 + $0x10] sm:$0xff] %vm150, %v122
  %154 = vst.msk [vmem:[%s3 + $0x18] sm:$0xff] %vm150, %v127
  %155 = vst.msk [vmem:[%s3 + $0x20] sm:$0xff] %vm150, %v132
  %156 = vst.msk [vmem:[%s3 + $0x28] sm:$0xff] %vm150, %v137
  %157 = vst.msk [vmem:[%s3 + $0x30] sm:$0xff] %vm150, %v142
  %158 = vst.msk [vmem:[%s3 + $0x38] sm:$0xff] %vm150, %v147
  // Predicated region
  $region14: #{speaker_forward.7} parent=0 // pred_check
    _
  $region15: #{speaker_forward.7} parent=0 // pred_check_branch
    %160 = sbr.rel (0) target = $region17
  $region16: #{speaker_forward.7} parent=0 // pred_region
    _
  $region17: #{speaker_forward.7} parent=0 // pred_fallthru
    _
  // Predicated region
  $region18: #{speaker_forward.7} parent=0 // pred_check
    _
  $region19: #{speaker_forward.7} parent=0 // pred_check_branch
    %162 = sbr.rel (0) target = $region21
  $region20: #{speaker_forward.7} parent=0 // pred_region
    _
  $region21: #{speaker_forward.7} parent=0 // pred_fallthru
    _

// kernel: speaker_forward.5
$region0: #{speaker_forward.5}
  #allocation0 [shape = 'u32[]', space=smem, size = 0x4, offset = 0x4, fixed_abs, tag = 'smem constant byte address 0x4 - core index']
  #allocation1 [shape = 'u32[144,128]{1,0:T(1,128)}', space=vmem, size = 0x12000, scoped, tag = 'internal scratch']
  %s0 = inlined_call_operand.vmem [shape: f32[64,64], index: 0, kind: input, shape index: {}]
  %s1 = inlined_call_operand.vmem [shape: f32[64,512], index: 1, kind: input, shape index: {}]
  %s2 = inlined_call_operand.vmem [shape: f32[1,512], index: 2, kind: input, shape index: {}]
  %s3 = inlined_call_operand.vmem [shape: f32[64,512], index: 3, kind: output, shape index: {}]
  %s4 = sld [smem:[#allocation0]]
  $region22: #{speaker_forward.5} parent=0
    _
  %s6 = ssub.s32 1, %s4
  %s7 = scalar_select 0, %s6, %s4
  // Predicated region
  $region2: #{speaker_forward.5} parent=0 // pred_check
    _
  $region3: #{speaker_forward.5} parent=0 // pred_check_branch
    %9 = sbr.rel (0) target = $region5
  $region4: #{speaker_forward.5} parent=0 // pred_region
    _
  $region5: #{speaker_forward.5} parent=0 // pred_fallthru
    _
  // Predicated region
  $region6: #{speaker_forward.5} parent=0 // pred_check
    _
  $region7: #{speaker_forward.5} parent=0 // pred_check_branch
    %11 = sbr.rel (0) target = $region9
  $region8: #{speaker_forward.5} parent=0 // pred_region
    _
  $region9: #{speaker_forward.5} parent=0 // pred_fallthru
    _
  // Predicated region
  $region10: #{speaker_forward.5} parent=0 // pred_check
    _
  $region11: #{speaker_forward.5} parent=0 // pred_check_branch
    %13 = sbr.rel (0) target = $region13
  $region12: #{speaker_forward.5} parent=0 // pred_region
    _
  $region13: #{speaker_forward.5} parent=0 // pred_fallthru
    _
  %v14 = vld [vmem:[%s0] sm:$0xff]
  %v15 = vld [vmem:[%s0 + $0x8] sm:$0xff]
  %v16 = vld [vmem:[%s0 + $0x10] sm:$0xff]
  %v17 = vld [vmem:[%s0 + $0x18] sm:$0xff]
  %v18 = vld [vmem:[%s0 + $0x20] sm:$0xff]
  %v19 = vld [vmem:[%s0 + $0x28] sm:$0xff]
  %v20 = vld [vmem:[%s0 + $0x30] sm:$0xff]
  %v21 = vld [vmem:[%s0 + $0x38] sm:$0xff]
  %v22 = vld [vmem:[%s1] sm:$0xff]
  %v23 = vld [vmem:[%s1 + $0x8] sm:$0xff]
  %v24 = vld [vmem:[%s1 + $0x10] sm:$0xff]
  %v25 = vld [vmem:[%s1 + $0x18] sm:$0xff]
  %v26 = vld [vmem:[%s1 + $0x20] sm:$0xff]
  %v27 = vld [vmem:[%s1 + $0x28] sm:$0xff]
  %v28 = vld [vmem:[%s1 + $0x30] sm:$0xff]
  %v29 = vld [vmem:[%s1 + $0x38] sm:$0xff]
  %v30 = vld [vmem:[%s1 + $0x40] sm:$0xff]
  %v31 = vld [vmem:[%s1 + $0x48] sm:$0xff]
  %v32 = vld [vmem:[%s1 + $0x50] sm:$0xff]
  %v33 = vld [vmem:[%s1 + $0x58] sm:$0xff]
  %v34 = vld [vmem:[%s1 + $0x60] sm:$0xff]
  %v35 = vld [vmem:[%s1 + $0x68] sm:$0xff]
  %v36 = vld [vmem:[%s1 + $0x70] sm:$0xff]
  %v37 = vld [vmem:[%s1 + $0x78] sm:$0xff]
  %v38 = vld [vmem:[%s1 + $0x80] sm:$0xff]
  %v39 = vld [vmem:[%s1 + $0x88] sm:$0xff]
  %v40 = vld [vmem:[%s1 + $0x90] sm:$0xff]
  %v41 = vld [vmem:[%s1 + $0x98] sm:$0xff]
  %v42 = vld [vmem:[%s1 + $0xa0] sm:$0xff]
  %v43 = vld [vmem:[%s1 + $0xa8] sm:$0xff]
  %v44 = vld [vmem:[%s1 + $0xb0] sm:$0xff]
  %v45 = vld [vmem:[%s1 + $0xb8] sm:$0xff]
  %v46 = vld [vmem:[%s1 + $0xc0] sm:$0xff]
  %v47 = vld [vmem:[%s1 + $0xc8] sm:$0xff]
  %v48 = vld [vmem:[%s1 + $0xd0] sm:$0xff]
  %v49 = vld [vmem:[%s1 + $0xd8] sm:$0xff]
  %v50 = vld [vmem:[%s1 + $0xe0] sm:$0xff]
  %v51 = vld [vmem:[%s1 + $0xe8] sm:$0xff]
  %v52 = vld [vmem:[%s1 + $0xf0] sm:$0xff]
  %v53 = vld [vmem:[%s1 + $0xf8] sm:$0xff]
  %v54 = vld [vmem:[%s2] sm:$0xf]
  %v56 = vlaneseq
  %v57 = vshrl.u32 %v56, 7
  %v58 = vsub.s32 0, %v57
  %v59 = vrot.slane %v54, %v58
  %v60 = vlaneseq
  %v61 = vshrl.u32 %v60, 7
  %v62 = vsub.s32 1, %v61
  %v63 = vrot.slane %v54, %v62
  %v64 = vlaneseq
  %v65 = vshrl.u32 %v64, 7
  %v66 = vsub.s32 2, %v65
  %v67 = vrot.slane %v54, %v66
  %v68 = vlaneseq
  %v69 = vshrl.u32 %v68, 7
  %v70 = vsub.s32 3, %v69
  %v71 = vrot.slane %v54, %v70
  %vm76 = vcmask 523264
  %v78 = vsel %vm76, %v14, 0
  %v81 = vsel %vm76, %v15, 0
  %v84 = vsel %vm76, %v16, 0
  %v87 = vsel %vm76, %v17, 0
  %v90 = vsel %vm76, %v18, 0
  %v93 = vsel %vm76, %v19, 0
  %v96 = vsel %vm76, %v20, 0
  %v99 = vsel %vm76, %v21, 0
  %101 = vmatprep.subr.mxu0 %v23
  %102 = vmatpush1.msra.mxu0 %v22
  %103 = vmatprep.subr.mxu0 %v27
  %104 = vmatpush1.msra.mxu0 %v26
  %105 = vmatprep.subr.mxu0 %v31
  %106 = vmatpush1.msra.mxu0 %v30
  %107 = vmatprep.subr.mxu0 %v35
  %108 = vmatpush1.msra.mxu0 %v34
  %109 = vmatprep.subr.mxu0 %v39
  %110 = vmatpush1.msra.mxu0 %v38
  %111 = vmatprep.subr.mxu0 %v43
  %112 = vmatpush1.msra.mxu0 %v42
  %113 = vmatprep.subr.mxu0 %v47
  %114 = vmatpush1.msra.mxu0 %v46
  %115 = vmatprep.subr.mxu0 %v51
  %116 = vmatpush1.msra.mxu0 %v50
  %117 = vmatprep.subr.mxu0 0.0
  %118 = vmatpush1.msra.mxu0 0.0
  %119 = vmatprep.subr.mxu0 0.0
  %120 = vmatpush1.msra.mxu0 0.0
  %121 = vmatprep.subr.mxu0 0.0
  %122 = vmatpush1.msra.mxu0 0.0
  %123 = vmatprep.subr.mxu0 0.0
  %124 = vmatpush1.msra.mxu0 0.0
  %125 = vmatprep.subr.mxu0 0.0
  %126 = vmatpush1.msra.mxu0 0.0
  %127 = vmatprep.subr.mxu0 0.0
  %128 = vmatpush1.msra.mxu0 0.0
  %129 = vmatprep.subr.mxu0 0.0
  %130 = vmatpush1.msra.mxu0 0.0
  %131 = vmatprep.subr.mxu0 0.0
  %132 = vmatpush1.msra.mxu0 0.0
  %133 = vmatprep.subr.mxu0 0.0
  %134 = vmatpush1.msra.mxu0 0.0
  %135 = vmatprep.subr.mxu0 0.0
  %136 = vmatpush1.msra.mxu0 0.0
  %137 = vmatprep.subr.mxu0 0.0
  %138 = vmatpush1.msra.mxu0 0.0
  %139 = vmatprep.subr.mxu0 0.0
  %140 = vmatpush1.msra.mxu0 0.0
  %141 = vmatprep.subr.mxu0 0.0
  %142 = vmatpush1.msra.mxu0 0.0
  %143 = vmatprep.subr.mxu0 0.0
  %144 = vmatpush1.msra.mxu0 0.0
  %145 = vmatprep.subr.mxu0 0.0
  %146 = vmatpush1.msra.mxu0 0.0
  %147 = vmatprep.subr.mxu0 0.0
  %148 = vmatpush1.msra.mxu0 0.0
  %149 = vmatprep.subr.mxu0 0.0
  %150 = vmatpush1.msra.mxu0 0.0
  %151 = vmatprep.subr.mxu0 0.0
  %152 = vmatpush1.msra.mxu0 0.0
  %153 = vmatprep.subr.mxu0 0.0
  %154 = vmatpush1.msra.mxu0 0.0
  %155 = vmatprep.subr.mxu0 0.0
  %156 = vmatpush1.msra.mxu0 0.0
  %157 = vmatprep.subr.mxu0 0.0
  %158 = vmatpush1.msra.mxu0 0.0
  %159 = vmatprep.subr.mxu0 0.0
  %160 = vmatpush1.msra.mxu0 0.0
  %161 = vmatprep.subr.mxu0 0.0
  %162 = vmatpush1.msra.mxu0 0.0
  %163 = vmatprep.subr.mxu0 0.0
  %164 = vmatpush1.msra.mxu0 0.0
  %165 = vmatprep.mubr.f32.mxu0 0.0
  %166 = vmatmul.mubr.f32.gmra.mrb[0].mxu0 %v78
  %v167 = vpop.f32.mrb[0].mxu0
  %v168 = vadd.f32 %v59, %v167
  %v169 = vpop.f32.mrb[0].mxu0
  %v170 = vadd.f32 %v63, %v169
  %171 = vmatprep.mubr.f32.mxu0 0.0
  %172 = vmatmul.mubr.f32.gmra.mrb[0].mxu0 %v81
  %v173 = vpop.f32.mrb[0].mxu0
  %v174 = vadd.f32 %v59, %v173
  %v175 = vpop.f32.mrb[0].mxu0
  %v176 = vadd.f32 %v63, %v175
  %177 = vmatprep.mubr.f32.mxu0 0.0
  %178 = vmatmul.mubr.f32.gmra.mrb[0].mxu0 %v84
  %v179 = vpop.f32.mrb[0].mxu0
  %v180 = vadd.f32 %v59, %v179
  %v181 = vpop.f32.mrb[0].mxu0
  %v182 = vadd.f32 %v63, %v181
  %183 = vmatprep.mubr.f32.mxu0 0.0
  %184 = vmatmul.mubr.f32.gmra.mrb[0].mxu0 %v87
  %v185 = vpop.f32.mrb[0].mxu0
  %v186 = vadd.f32 %v59, %v185
  %v187 = vpop.f32.mrb[0].mxu0
  %v188 = vadd.f32 %v63, %v187
  %189 = vmatprep.mubr.f32.mxu0 0.0
  %190 = vmatmul.mubr.f32.gmra.mrb[0].mxu0 %v90
  %v191 = vpop.f32.mrb[0].mxu0
  %v192 = vadd.f32 %v59, %v191
  %v193 = vpop.f32.mrb[0].mxu0
  %v194 = vadd.f32 %v63, %v193
  %195 = vmatprep.mubr.f32.mxu0 0.0
  %196 = vmatmul.mubr.f32.gmra.mrb[0].mxu0 %v93
  %v197 = vpop.f32.mrb[0].mxu0
  %v198 = vadd.f32 %v59, %v197
  %v199 = vpop.f32.mrb[0].mxu0
  %v200 = vadd.f32 %v63, %v199
  %201 = vmatprep.mubr.f32.mxu0 0.0
  %202 = vmatmul.mubr.f32.gmra.mrb[0].mxu0 %v96
  %v203 = vpop.f32.mrb[0].mxu0
  %v204 = vadd.f32 %v59, %v203
  %v205 = vpop.f32.mrb[0].mxu0
  %v206 = vadd.f32 %v63, %v205
  %207 = vmatprep.mubr.f32.mxu0 0.0
  %208 = vmatmul.mubr.f32.gmra.mrb[0].mxu0 %v99
  %v209 = vpop.f32.mrb[0].mxu0
  %v210 = vadd.f32 %v59, %v209
  %v211 = vpop.f32.mrb[0].mxu0
  %v212 = vadd.f32 %v63, %v211
  %213 = vdwg.mxu0
  %214 = vmatprep.subr.mxu0 %v25
  %215 = vmatpush1.msra.mxu0 %v24
  %216 = vmatprep.subr.mxu0 %v29
  %217 = vmatpush1.msra.mxu0 %v28
  %218 = vmatprep.subr.mxu0 %v33
  %219 = vmatpush1.msra.mxu0 %v32
  %220 = vmatprep.subr.mxu0 %v37
  %221 = vmatpush1.msra.mxu0 %v36
  %222 = vmatprep.subr.mxu0 %v41
  %223 = vmatpush1.msra.mxu0 %v40
  %224 = vmatprep.subr.mxu0 %v45
  %225 = vmatpush1.msra.mxu0 %v44
  %226 = vmatprep.subr.mxu0 %v49
  %227 = vmatpush1.msra.mxu0 %v48
  %228 = vmatprep.subr.mxu0 %v53
  %229 = vmatpush1.msra.mxu0 %v52
  %230 = vmatprep.subr.mxu0 0.0
  %231 = vmatpush1.msra.mxu0 0.0
  %232 = vmatprep.subr.mxu0 0.0
  %233 = vmatpush1.msra.mxu0 0.0
  %234 = vmatprep.subr.mxu0 0.0
  %235 = vmatpush1.msra.mxu0 0.0
  %236 = vmatprep.subr.mxu0 0.0
  %237 = vmatpush1.msra.mxu0 0.0
  %238 = vmatprep.subr.mxu0 0.0
  %239 = vmatpush1.msra.mxu0 0.0
  %240 = vmatprep.subr.mxu0 0.0
  %241 = vmatpush1.msra.mxu0 0.0
  %242 = vmatprep.subr.mxu0 0.0
  %243 = vmatpush1.msra.mxu0 0.0
  %244 = vmatprep.subr.mxu0 0.0
  %245 = vmatpush1.msra.mxu0 0.0
  %246 = vmatprep.subr.mxu0 0.0
  %247 = vmatpush1.msra.mxu0 0.0
  %248 = vmatprep.subr.mxu0 0.0
  %249 = vmatpush1.msra.mxu0 0.0
  %250 = vmatprep.subr.mxu0 0.0
  %251 = vmatpush1.msra.mxu0 0.0
  %252 = vmatprep.subr.mxu0 0.0
  %253 = vmatpush1.msra.mxu0 0.0
  %254 = vmatprep.subr.mxu0 0.0
  %255 = vmatpush1.msra.mxu0 0.0
  %256 = vmatprep.subr.mxu0 0.0
  %257 = vmatpush1.msra.mxu0 0.0
  %258 = vmatprep.subr.mxu0 0.0
  %259 = vmatpush1.msra.mxu0 0.0
  %260 = vmatprep.subr.mxu0 0.0
  %261 = vmatpush1.msra.mxu0 0.0
  %262 = vmatprep.subr.mxu0 0.0
  %263 = vmatpush1.msra.mxu0 0.0
  %264 = vmatprep.subr.mxu0 0.0
  %265 = vmatpush1.msra.mxu0 0.0
  %266 = vmatprep.subr.mxu0 0.0
  %267 = vmatpush1.msra.mxu0 0.0
  %268 = vmatprep.subr.mxu0 0.0
  %269 = vmatpush1.msra.mxu0 0.0
  %270 = vmatprep.subr.mxu0 0.0
  %271 = vmatpush1.msra.mxu0 0.0
  %272 = vmatprep.subr.mxu0 0.0
  %273 = vmatpush1.msra.mxu0 0.0
  %274 = vmatprep.subr.mxu0 0.0
  %275 = vmatpush1.msra.mxu0 0.0
  %276 = vmatprep.subr.mxu0 0.0
  %277 = vmatpush1.msra.mxu0 0.0
  %278 = vmatprep.mubr.f32.mxu0 0.0
  %279 = vmatmul.mubr.f32.gmra.mrb[0].mxu0 %v78
  %v280 = vpop.f32.mrb[0].mxu0
  %v281 = vadd.f32 %v67, %v280
  %v282 = vpop.f32.mrb[0].mxu0
  %v283 = vadd.f32 %v71, %v282
  %284 = vmatprep.mubr.f32.mxu0 0.0
  %285 = vmatmul.mubr.f32.gmra.mrb[0].mxu0 %v81
  %v286 = vpop.f32.mrb[0].mxu0
  %v287 = vadd.f32 %v67, %v286
  %v288 = vpop.f32.mrb[0].mxu0
  %v289 = vadd.f32 %v71, %v288
  %290 = vmatprep.mubr.f32.mxu0 0.0
  %291 = vmatmul.mubr.f32.gmra.mrb[0].mxu0 %v84
  %v292 = vpop.f32.mrb[0].mxu0
  %v293 = vadd.f32 %v67, %v292
  %v294 = vpop.f32.mrb[0].mxu0
  %v295 = vadd.f32 %v71, %v294
  %296 = vmatprep.mubr.f32.mxu0 0.0
  %297 = vmatmul.mubr.f32.gmra.mrb[0].mxu0 %v87
  %v298 = vpop.f32.mrb[0].mxu0
  %v299 = vadd.f32 %v67, %v298
  %v300 = vpop.f32.mrb[0].mxu0
  %v301 = vadd.f32 %v71, %v300
  %302 = vmatprep.mubr.f32.mxu0 0.0
  %303 = vmatmul.mubr.f32.gmra.mrb[0].mxu0 %v90
  %v304 = vpop.f32.mrb[0].mxu0
  %v305 = vadd.f32 %v67, %v304
  %v306 = vpop.f32.mrb[0].mxu0
  %v307 = vadd.f32 %v71, %v306
  %308 = vmatprep.mubr.f32.mxu0 0.0
  %309 = vmatmul.mubr.f32.gmra.mrb[0].mxu0 %v93
  %v310 = vpop.f32.mrb[0].mxu0
  %v311 = vadd.f32 %v67, %v310
  %v312 = vpop.f32.mrb[0].mxu0
  %v313 = vadd.f32 %v71, %v312
  %314 = vmatprep.mubr.f32.mxu0 0.0
  %315 = vmatmul.mubr.f32.gmra.mrb[0].mxu0 %v96
  %v316 = vpop.f32.mrb[0].mxu0
  %v317 = vadd.f32 %v67, %v316
  %v318 = vpop.f32.mrb[0].mxu0
  %v319 = vadd.f32 %v71, %v318
  %320 = vmatprep.mubr.f32.mxu0 0.0
  %321 = vmatmul.mubr.f32.gmra.mrb[0].mxu0 %v99
  %v322 = vpop.f32.mrb[0].mxu0
  %v323 = vadd.f32 %v67, %v322
  %v324 = vpop.f32.mrb[0].mxu0
  %v325 = vadd.f32 %v71, %v324
  %326 = vdwg.mxu0
  %327 = vst [vmem:[%s3] sm:$0xff] %v168
  %328 = vst [vmem:[%s3 + $0x8] sm:$0xff] %v170
  %329 = vst [vmem:[%s3 + $0x10] sm:$0xff] %v281
  %330 = vst [vmem:[%s3 + $0x18] sm:$0xff] %v283
  %331 = vst [vmem:[%s3 + $0x20] sm:$0xff] %v174
  %332 = vst [vmem:[%s3 + $0x28] sm:$0xff] %v176
  %333 = vst [vmem:[%s3 + $0x30] sm:$0xff] %v287
  %334 = vst [vmem:[%s3 + $0x38] sm:$0xff] %v289
  %335 = vst [vmem:[%s3 + $0x40] sm:$0xff] %v180
  %336 = vst [vmem:[%s3 + $0x48] sm:$0xff] %v182
  %337 = vst [vmem:[%s3 + $0x50] sm:$0xff] %v293
  %338 = vst [vmem:[%s3 + $0x58] sm:$0xff] %v295
  %339 = vst [vmem:[%s3 + $0x60] sm:$0xff] %v186
  %340 = vst [vmem:[%s3 + $0x68] sm:$0xff] %v188
  %341 = vst [vmem:[%s3 + $0x70] sm:$0xff] %v299
  %342 = vst [vmem:[%s3 + $0x78] sm:$0xff] %v301
  %343 = vst [vmem:[%s3 + $0x80] sm:$0xff] %v192
  %344 = vst [vmem:[%s3 + $0x88] sm:$0xff] %v194
  %345 = vst [vmem:[%s3 + $0x90] sm:$0xff] %v305
  %346 = vst [vmem:[%s3 + $0x98] sm:$0xff] %v307
  %347 = vst [vmem:[%s3 + $0xa0] sm:$0xff] %v198
  %348 = vst [vmem:[%s3 + $0xa8] sm:$0xff] %v200
  %349 = vst [vmem:[%s3 + $0xb0] sm:$0xff] %v311
  %350 = vst [vmem:[%s3 + $0xb8] sm:$0xff] %v313
  %351 = vst [vmem:[%s3 + $0xc0] sm:$0xff] %v204
  %352 = vst [vmem:[%s3 + $0xc8] sm:$0xff] %v206
  %353 = vst [vmem:[%s3 + $0xd0] sm:$0xff] %v317
  %354 = vst [vmem:[%s3 + $0xd8] sm:$0xff] %v319
  %355 = vst [vmem:[%s3 + $0xe0] sm:$0xff] %v210
  %356 = vst [vmem:[%s3 + $0xe8] sm:$0xff] %v212
  %357 = vst [vmem:[%s3 + $0xf0] sm:$0xff] %v323
  %358 = vst [vmem:[%s3 + $0xf8] sm:$0xff] %v325
  // Predicated region
  $region14: #{speaker_forward.5} parent=0 // pred_check
    _
  $region15: #{speaker_forward.5} parent=0 // pred_check_branch
    %360 = sbr.rel (0) target = $region17
  $region16: #{speaker_forward.5} parent=0 // pred_region
    _
  $region17: #{speaker_forward.5} parent=0 // pred_fallthru
    _
  // Predicated region
  $region18: #{speaker_forward.5} parent=0 // pred_check
    _
  $region19: #{speaker_forward.5} parent=0 // pred_check_branch
    %362 = sbr.rel (0) target = $region21
  $region20: #{speaker_forward.5} parent=0 // pred_region
    _
  $region21: #{speaker_forward.5} parent=0 // pred_fallthru
    _

// kernel: speaker_forward.4
$region0: #{speaker_forward.4}
  #allocation0 [shape = 'u32[]', space=smem, size = 0x4, offset = 0x4, fixed_abs, tag = 'smem constant byte address 0x4 - core index']
  #allocation1 [shape = 'u32[144,128]{1,0:T(1,128)}', space=vmem, size = 0x12000, scoped, tag = 'internal scratch']
  %s0 = inlined_call_operand.vmem [shape: f32[8,128], index: 0, kind: input, shape index: {}]
  %s1 = inlined_call_operand.vmem [shape: f32[8,128], index: 1, kind: input, shape index: {}]
  %s2 = inlined_call_operand.vmem [shape: f32[8,16], index: 2, kind: input, shape index: {}]
  %s3 = inlined_call_operand.hbm [shape: f32[128,64], index: 3, kind: input, shape index: {}]
  %s4 = inlined_call_operand.vmem [shape: f32[1,64], index: 4, kind: input, shape index: {}]
  %s5 = inlined_call_operand.hbm [shape: f32[128,64], index: 5, kind: input, shape index: {}]
  %s6 = inlined_call_operand.vmem [shape: f32[1,64], index: 6, kind: input, shape index: {}]
  %s7 = inlined_call_operand.hbm [shape: f32[64,128], index: 7, kind: input, shape index: {}]
  %s8 = inlined_call_operand.vmem [shape: f32[64,128], index: 8, kind: input, shape index: {}]
  %s9 = inlined_call_operand.vmem [shape: f32[16,128], index: 9, kind: input, shape index: {}]
  %s10 = inlined_call_operand.vmem [shape: f32[1,128], index: 10, kind: input, shape index: {}]
  %s11 = inlined_call_operand.hbm [shape: f32[128,512], index: 11, kind: input, shape index: {}]
  %s12 = inlined_call_operand.vmem [shape: f32[1,512], index: 12, kind: input, shape index: {}]
  %s13 = inlined_call_operand.vmem [shape: f32[8,512], index: 13, kind: output, shape index: {}]
  %s14 = sld [smem:[#allocation0]]
  $region78: #{speaker_forward.4} parent=0
    _
  %s16 = ssub.s32 1, %s14
  %s17 = scalar_select 0, %s16, %s14
  $region1: #{speaker_forward.4} parent=0
    #allocation2 [shape = 'u8[65536]{0}', space=vmem, size = 0x10000, scoped, tag = 'input window, operand 3, single buffered']
    #allocation3 [shape = 's32[1]{0}', space=sflag, size = 0x4, scoped, tag = 'scoped memory for speaker_forward.4']
    #allocation4 [shape = 'u8[65536]{0}', space=vmem, size = 0x10000, scoped, tag = 'input window, operand 5, single buffered']
    #allocation5 [shape = 's32[1]{0}', space=sflag, size = 0x4, scoped, tag = 'scoped memory for speaker_forward.4']
    #allocation6 [shape = 'u8[32768]{0}', space=vmem, size = 0x8000, scoped, tag = 'input window, operand 7, single buffered']
    #allocation7 [shape = 'u8[262144]{0}', space=vmem, size = 0x40000, scoped, tag = 'input window, operand 11, single buffered']
    #allocation8 [shape = 's32[1]{0}', space=sflag, size = 0x4, scoped, tag = 'scoped memory for speaker_forward.4']
    %18 = vsyncpa [#allocation3], 0
    %19 = vsyncpa [#allocation5], 0
    %20 = vsyncpa [#allocation8], 0
    // Predicated region
    $region2: #{speaker_forward.4} parent=1 // pred_check
      _
    $region3: #{speaker_forward.4} parent=1 // pred_check_branch
      %22 = sbr.rel (0) target = $region5
    $region4: #{speaker_forward.4} parent=1 // pred_region
      _
    $region5: #{speaker_forward.4} parent=1 // pred_fallthru
      _
    // Predicated region
    $region6: #{speaker_forward.4} parent=1 // pred_check
      _
    $region7: #{speaker_forward.4} parent=1 // pred_check_branch
      %24 = sbr.rel (0) target = $region9
    $region8: #{speaker_forward.4} parent=1 // pred_region
      _
    $region9: #{speaker_forward.4} parent=1 // pred_fallthru
      _
    // Predicated region
    $region10: #{speaker_forward.4} parent=1 // pred_check
      _
    $region11: #{speaker_forward.4} parent=1 // pred_check_branch
      %26 = sbr.rel (0) target = $region13
    $region12: #{speaker_forward.4} parent=1 // pred_region
      _
    $region13: #{speaker_forward.4} parent=1 // pred_fallthru
      _
    // Predicated region
    $region14: #{speaker_forward.4} parent=1 // pred_check
      _
    $region15: #{speaker_forward.4} parent=1 // pred_check_branch
      %28 = sbr.rel (0) target = $region17
    $region16: #{speaker_forward.4} parent=1 // pred_region
      %s30 = ssub.s32 2048, 2048
      %31 = vsyncadd [#allocation3], %s30
      %s32 = sshll.u32 [#allocation2], 4
      %s33 = int_to_ptr.vmem [resolvable:$true] %s32
      %38 = dma.hbm_to_vmem [thread:$0]  %s3, 2048, %s33, [#allocation3], 128, 128, 8
    $region17: #{speaker_forward.4} parent=1 // pred_fallthru
      _
    // Predicated region
    $region18: #{speaker_forward.4} parent=1 // pred_check
      _
    $region19: #{speaker_forward.4} parent=1 // pred_check_branch
      %40 = sbr.rel (0) target = $region21
    $region20: #{speaker_forward.4} parent=1 // pred_region
      _
    $region21: #{speaker_forward.4} parent=1 // pred_fallthru
      _
    // Predicated region
    $region22: #{speaker_forward.4} parent=1 // pred_check
      _
    $region23: #{speaker_forward.4} parent=1 // pred_check_branch
      %42 = sbr.rel (0) target = $region25
    $region24: #{speaker_forward.4} parent=1 // pred_region
      %s44 = ssub.s32 2048, 2048
      %45 = vsyncadd [#allocation5], %s44
      %s46 = sshll.u32 [#allocation4], 4
      %s47 = int_to_ptr.vmem [resolvable:$true] %s46
      %52 = dma.hbm_to_vmem [thread:$0]  %s5, 2048, %s47, [#allocation5], 128, 128, 8
    $region25: #{speaker_forward.4} parent=1 // pred_fallthru
      _
    // Predicated region
    $region26: #{speaker_forward.4} parent=1 // pred_check
      _
    $region27: #{speaker_forward.4} parent=1 // pred_check_branch
      %54 = sbr.rel (0) target = $region29
    $region28: #{speaker_forward.4} parent=1 // pred_region
      _
    $region29: #{speaker_forward.4} parent=1 // pred_fallthru
      _
    // Predicated region
    $region30: #{speaker_forward.4} parent=1 // pred_check
      _
    $region31: #{speaker_forward.4} parent=1 // pred_check_branch
      %56 = sbr.rel (0) target = $region33
    $region32: #{speaker_forward.4} parent=1 // pred_region
      %s58 = ssub.s32 1024, 1024
      %59 = vsyncadd [#allocation5], %s58
      %s60 = sshll.u32 [#allocation6], 4
      %s61 = int_to_ptr.vmem [resolvable:$true] %s60
      %66 = dma.hbm_to_vmem [thread:$0]  %s7, 1024, %s61, [#allocation5], 128, 128, 8
    $region33: #{speaker_forward.4} parent=1 // pred_fallthru
      _
    // Predicated region
    $region34: #{speaker_forward.4} parent=1 // pred_check
      _
    $region35: #{speaker_forward.4} parent=1 // pred_check_branch
      %68 = sbr.rel (0) target = $region37
    $region36: #{speaker_forward.4} parent=1 // pred_region
      _
    $region37: #{speaker_forward.4} parent=1 // pred_fallthru
      _
    // Predicated region
    $region38: #{speaker_forward.4} parent=1 // pred_check
      _
    $region39: #{speaker_forward.4} parent=1 // pred_check_branch
      %70 = sbr.rel (0) target = $region41
    $region40: #{speaker_forward.4} parent=1 // pred_region
      _
    $region41: #{speaker_forward.4} parent=1 // pred_fallthru
      _
    // Predicated region
    $region42: #{speaker_forward.4} parent=1 // pred_check
      _
    $region43: #{speaker_forward.4} parent=1 // pred_check_branch
      %72 = sbr.rel (0) target = $region45
    $region44: #{speaker_forward.4} parent=1 // pred_region
      _
    $region45: #{speaker_forward.4} parent=1 // pred_fallthru
      _
    // Predicated region
    $region46: #{speaker_forward.4} parent=1 // pred_check
      _
    $region47: #{speaker_forward.4} parent=1 // pred_check_branch
      %74 = sbr.rel (0) target = $region49
    $region48: #{speaker_forward.4} parent=1 // pred_region
      %s76 = ssub.s32 8192, 8192
      %77 = vsyncadd [#allocation8], %s76
      %s78 = sshll.u32 [#allocation7], 4
      %s79 = int_to_ptr.vmem [resolvable:$true] %s78
      %84 = dma.hbm_to_vmem [thread:$0]  %s11, 8192, %s79, [#allocation8], 512, 512, 32
    $region49: #{speaker_forward.4} parent=1 // pred_fallthru
      _
    // Predicated region
    $region50: #{speaker_forward.4} parent=1 // pred_check
      _
    $region51: #{speaker_forward.4} parent=1 // pred_check_branch
      %86 = sbr.rel (0) target = $region53
    $region52: #{speaker_forward.4} parent=1 // pred_region
      _
    $region53: #{speaker_forward.4} parent=1 // pred_fallthru
      _
    // Predicated region
    $region54: #{speaker_forward.4} parent=1 // pred_check
      _
    $region55: #{speaker_forward.4} parent=1 // pred_check_branch
      %88 = sbr.rel (0) target = $region57
    $region56: #{speaker_forward.4} parent=1 // pred_region
      %89 = dma.done [#allocation3], 2048
    $region57: #{speaker_forward.4} parent=1 // pred_fallthru
      _
    // Predicated region
    $region58: #{speaker_forward.4} parent=1 // pred_check
      _
    $region59: #{speaker_forward.4} parent=1 // pred_check_branch
      %91 = sbr.rel (0) target = $region61
    $region60: #{speaker_forward.4} parent=1 // pred_region
      %92 = dma.done [#allocation5], 2048
    $region61: #{speaker_forward.4} parent=1 // pred_fallthru
      _
    // Predicated region
    $region62: #{speaker_forward.4} parent=1 // pred_check
      _
    $region63: #{speaker_forward.4} parent=1 // pred_check_branch
      %94 = sbr.rel (0) target = $region65
    $region64: #{speaker_forward.4} parent=1 // pred_region
      %95 = dma.done [#allocation5], 1024
    $region65: #{speaker_forward.4} parent=1 // pred_fallthru
      _
    // Predicated region
    $region66: #{speaker_forward.4} parent=1 // pred_check
      _
    $region67: #{speaker_forward.4} parent=1 // pred_check_branch
      %97 = sbr.rel (0) target = $region69
    $region68: #{speaker_forward.4} parent=1 // pred_region
      %98 = dma.done [#allocation8], 8192
    $region69: #{speaker_forward.4} parent=1 // pred_fallthru
      _
    %v99 = vld [vmem:[%s0] sm:$0xff]
    %v100 = vld [vmem:[#allocation2] sm:$0xff]
    %v101 = vld [vmem:[#allocation2 + $0x8] sm:$0xff]
    %v102 = vld [vmem:[#allocation2 + $0x10] sm:$0xff]
    %v103 = vld [vmem:[#allocation2 + $0x18] sm:$0xff]
    %v104 = vld [vmem:[#allocation2 + $0x20] sm:$0xff]
    %v105 = vld [vmem:[#allocation2 + $0x28] sm:$0xff]
    %v106 = vld [vmem:[#allocation2 + $0x30] sm:$0xff]
    %v107 = vld [vmem:[#allocation2 + $0x38] sm:$0xff]
    %v108 = vld [vmem:[#allocation2 + $0x40] sm:$0xff]
    %v109 = vld [vmem:[#allocation2 + $0x48] sm:$0xff]
    %v110 = vld [vmem:[#allocation2 + $0x50] sm:$0xff]
    %v111 = vld [vmem:[#allocation2 + $0x58] sm:$0xff]
    %v112 = vld [vmem:[#allocation2 + $0x60] sm:$0xff]
    %v113 = vld [vmem:[#allocation2 + $0x68] sm:$0xff]
    %v114 = vld [vmem:[#allocation2 + $0x70] sm:$0xff]
    %v115 = vld [vmem:[#allocation2 + $0x78] sm:$0xff]
    %v116 = vld [vmem:[%s4] sm:$0x1]
    %v118 = vlaneseq
    %v119 = vshrl.u32 %v118, 7
    %v120 = vsub.s32 0, %v119
    %v121 = vrot.slane %v116, %v120
    %123 = vmatprep.subr.mxu0 0.0
    %124 = vmatpush1.msra.mxu0 %v100
    %125 = vmatprep.subr.mxu0 0.0
    %126 = vmatpush1.msra.mxu0 %v101
    %127 = vmatprep.subr.mxu0 0.0
    %128 = vmatpush1.msra.mxu0 %v102
    %129 = vmatprep.subr.mxu0 0.0
    %130 = vmatpush1.msra.mxu0 %v103
    %131 = vmatprep.subr.mxu0 0.0
    %132 = vmatpush1.msra.mxu0 %v104
    %133 = vmatprep.subr.mxu0 0.0
    %134 = vmatpush1.msra.mxu0 %v105
    %135 = vmatprep.subr.mxu0 0.0
    %136 = vmatpush1.msra.mxu0 %v106
    %137 = vmatprep.subr.mxu0 0.0
    %138 = vmatpush1.msra.mxu0 %v107
    %139 = vmatprep.subr.mxu0 0.0
    %140 = vmatpush1.msra.mxu0 %v108
    %141 = vmatprep.subr.mxu0 0.0
    %142 = vmatpush1.msra.mxu0 %v109
    %143 = vmatprep.subr.mxu0 0.0
    %144 = vmatpush1.msra.mxu0 %v110
    %145 = vmatprep.subr.mxu0 0.0
    %146 = vmatpush1.msra.mxu0 %v111
    %147 = vmatprep.subr.mxu0 0.0
    %148 = vmatpush1.msra.mxu0 %v112
    %149 = vmatprep.subr.mxu0 0.0
    %150 = vmatpush1.msra.mxu0 %v113
    %151 = vmatprep.subr.mxu0 0.0
    %152 = vmatpush1.msra.mxu0 %v114
    %153 = vmatprep.subr.mxu0 0.0
    %154 = vmatpush1.msra.mxu0 %v115
    %155 = vmatprep.subr.mxu0 0.0
    %156 = vmatpush1.msra.mxu0 0.0
    %157 = vmatprep.subr.mxu0 0.0
    %158 = vmatpush1.msra.mxu0 0.0
    %159 = vmatprep.subr.mxu0 0.0
    %160 = vmatpush1.msra.mxu0 0.0
    %161 = vmatprep.subr.mxu0 0.0
    %162 = vmatpush1.msra.mxu0 0.0
    %163 = vmatprep.subr.mxu0 0.0
    %164 = vmatpush1.msra.mxu0 0.0
    %165 = vmatprep.subr.mxu0 0.0
    %166 = vmatpush1.msra.mxu0 0.0
    %167 = vmatprep.subr.mxu0 0.0
    %168 = vmatpush1.msra.mxu0 0.0
    %169 = vmatprep.subr.mxu0 0.0
    %170 = vmatpush1.msra.mxu0 0.0
    %171 = vmatprep.subr.mxu0 0.0
    %172 = vmatpush1.msra.mxu0 0.0
    %173 = vmatprep.subr.mxu0 0.0
    %174 = vmatpush1.msra.mxu0 0.0
    %175 = vmatprep.subr.mxu0 0.0
    %176 = vmatpush1.msra.mxu0 0.0
    %177 = vmatprep.subr.mxu0 0.0
    %178 = vmatpush1.msra.mxu0 0.0
    %179 = vmatprep.subr.mxu0 0.0
    %180 = vmatpush1.msra.mxu0 0.0
    %181 = vmatprep.subr.mxu0 0.0
    %182 = vmatpush1.msra.mxu0 0.0
    %183 = vmatprep.subr.mxu0 0.0
    %184 = vmatpush1.msra.mxu0 0.0
    %185 = vmatprep.subr.mxu0 0.0
    %186 = vmatpush1.msra.mxu0 0.0
    %187 = vmatprep.mubr.f32.mxu0 0.0
    %188 = vmatmul.mubr.f32.gmra.mrb[0].mxu0 %v99
    %v189 = vpop.f32.mrb[0].mxu0
    %v190 = vadd.f32 %v121, %v189
    %v191 = vpop.f32.mrb[0].mxu0
    %192 = vdwg.mxu0
    %v193 = vmax.f32 %v190, 0.0
    %v194 = vld [vmem:[%s1] sm:$0xff]
    %v195 = vld [vmem:[#allocation4] sm:$0xff]
    %v196 = vld [vmem:[#allocation4 + $0x8] sm:$0xff]
    %v197 = vld [vmem:[#allocation4 + $0x10] sm:$0xff]
    %v198 = vld [vmem:[#allocation4 + $0x18] sm:$0xff]
    %v199 = vld [vmem:[#allocation4 + $0x20] sm:$0xff]
    %v200 = vld [vmem:[#allocation4 + $0x28] sm:$0xff]
    %v201 = vld [vmem:[#allocation4 + $0x30] sm:$0xff]
    %v202 = vld [vmem:[#allocation4 + $0x38] sm:$0xff]
    %v203 = vld [vmem:[#allocation4 + $0x40] sm:$0xff]
    %v204 = vld [vmem:[#allocation4 + $0x48] sm:$0xff]
    %v205 = vld [vmem:[#allocation4 + $0x50] sm:$0xff]
    %v206 = vld [vmem:[#allocation4 + $0x58] sm:$0xff]
    %v207 = vld [vmem:[#allocation4 + $0x60] sm:$0xff]
    %v208 = vld [vmem:[#allocation4 + $0x68] sm:$0xff]
    %v209 = vld [vmem:[#allocation4 + $0x70] sm:$0xff]
    %v210 = vld [vmem:[#allocation4 + $0x78] sm:$0xff]
    %v211 = vld [vmem:[%s6] sm:$0x1]
    %v213 = vlaneseq
    %v214 = vshrl.u32 %v213, 7
    %v215 = vsub.s32 0, %v214
    %v216 = vrot.slane %v211, %v215
    %218 = vmatprep.subr.mxu0 0.0
    %219 = vmatpush1.msra.mxu0 %v195
    %220 = vmatprep.subr.mxu0 0.0
    %221 = vmatpush1.msra.mxu0 %v196
    %222 = vmatprep.subr.mxu0 0.0
    %223 = vmatpush1.msra.mxu0 %v197
    %224 = vmatprep.subr.mxu0 0.0
    %225 = vmatpush1.msra.mxu0 %v198
    %226 = vmatprep.subr.mxu0 0.0
    %227 = vmatpush1.msra.mxu0 %v199
    %228 = vmatprep.subr.mxu0 0.0
    %229 = vmatpush1.msra.mxu0 %v200
    %230 = vmatprep.subr.mxu0 0.0
    %231 = vmatpush1.msra.mxu0 %v201
    %232 = vmatprep.subr.mxu0 0.0
    %233 = vmatpush1.msra.mxu0 %v202
    %234 = vmatprep.subr.mxu0 0.0
    %235 = vmatpush1.msra.mxu0 %v203
    %236 = vmatprep.subr.mxu0 0.0
    %237 = vmatpush1.msra.mxu0 %v204
    %238 = vmatprep.subr.mxu0 0.0
    %239 = vmatpush1.msra.mxu0 %v205
    %240 = vmatprep.subr.mxu0 0.0
    %241 = vmatpush1.msra.mxu0 %v206
    %242 = vmatprep.subr.mxu0 0.0
    %243 = vmatpush1.msra.mxu0 %v207
    %244 = vmatprep.subr.mxu0 0.0
    %245 = vmatpush1.msra.mxu0 %v208
    %246 = vmatprep.subr.mxu0 0.0
    %247 = vmatpush1.msra.mxu0 %v209
    %248 = vmatprep.subr.mxu0 0.0
    %249 = vmatpush1.msra.mxu0 %v210
    %250 = vmatprep.subr.mxu0 0.0
    %251 = vmatpush1.msra.mxu0 0.0
    %252 = vmatprep.subr.mxu0 0.0
    %253 = vmatpush1.msra.mxu0 0.0
    %254 = vmatprep.subr.mxu0 0.0
    %255 = vmatpush1.msra.mxu0 0.0
    %256 = vmatprep.subr.mxu0 0.0
    %257 = vmatpush1.msra.mxu0 0.0
    %258 = vmatprep.subr.mxu0 0.0
    %259 = vmatpush1.msra.mxu0 0.0
    %260 = vmatprep.subr.mxu0 0.0
    %261 = vmatpush1.msra.mxu0 0.0
    %262 = vmatprep.subr.mxu0 0.0
    %263 = vmatpush1.msra.mxu0 0.0
    %264 = vmatprep.subr.mxu0 0.0
    %265 = vmatpush1.msra.mxu0 0.0
    %266 = vmatprep.subr.mxu0 0.0
    %267 = vmatpush1.msra.mxu0 0.0
    %268 = vmatprep.subr.mxu0 0.0
    %269 = vmatpush1.msra.mxu0 0.0
    %270 = vmatprep.subr.mxu0 0.0
    %271 = vmatpush1.msra.mxu0 0.0
    %272 = vmatprep.subr.mxu0 0.0
    %273 = vmatpush1.msra.mxu0 0.0
    %274 = vmatprep.subr.mxu0 0.0
    %275 = vmatpush1.msra.mxu0 0.0
    %276 = vmatprep.subr.mxu0 0.0
    %277 = vmatpush1.msra.mxu0 0.0
    %278 = vmatprep.subr.mxu0 0.0
    %279 = vmatpush1.msra.mxu0 0.0
    %280 = vmatprep.subr.mxu0 0.0
    %281 = vmatpush1.msra.mxu0 0.0
    %282 = vmatprep.mubr.f32.mxu0 0.0
    %283 = vmatmul.mubr.f32.gmra.mrb[0].mxu0 %v194
    %v284 = vpop.f32.mrb[0].mxu0
    %v285 = vadd.f32 %v216, %v284
    %v286 = vpop.f32.mrb[0].mxu0
    %287 = vdwg.mxu0
    %v288 = vmax.f32 %v285, 0.0
    %v289 = vld [vmem:[#allocation6] sm:$0xff]
    %v290 = vld [vmem:[#allocation6 + $0x8] sm:$0xff]
    %v291 = vld [vmem:[#allocation6 + $0x10] sm:$0xff]
    %v292 = vld [vmem:[#allocation6 + $0x18] sm:$0xff]
    %v293 = vld [vmem:[#allocation6 + $0x20] sm:$0xff]
    %v294 = vld [vmem:[#allocation6 + $0x28] sm:$0xff]
    %v295 = vld [vmem:[#allocation6 + $0x30] sm:$0xff]
    %v296 = vld [vmem:[#allocation6 + $0x38] sm:$0xff]
    %v297 = vld [vmem:[%s8] sm:$0xff]
    %v298 = vld [vmem:[%s8 + $0x8] sm:$0xff]
    %v299 = vld [vmem:[%s8 + $0x10] sm:$0xff]
    %v300 = vld [vmem:[%s8 + $0x18] sm:$0xff]
    %v301 = vld [vmem:[%s8 + $0x20] sm:$0xff]
    %v302 = vld [vmem:[%s8 + $0x28] sm:$0xff]
    %v303 = vld [vmem:[%s8 + $0x30] sm:$0xff]
    %v304 = vld [vmem:[%s8 + $0x38] sm:$0xff]
    %vm305 = vcmask 523264
    %v307 = vsel %vm305, %v288, 0
    %309 = vmatprep.subr.mxu0 0.0
    %310 = vmatpush1.msra.mxu0 %v297
    %311 = vmatprep.subr.mxu0 0.0
    %312 = vmatpush1.msra.mxu0 %v298
    %313 = vmatprep.subr.mxu0 0.0
    %314 = vmatpush1.msra.mxu0 %v299
    %315 = vmatprep.subr.mxu0 0.0
    %316 = vmatpush1.msra.mxu0 %v300
    %317 = vmatprep.subr.mxu0 0.0
    %318 = vmatpush1.msra.mxu0 %v301
    %319 = vmatprep.subr.mxu0 0.0
    %320 = vmatpush1.msra.mxu0 %v302
    %321 = vmatprep.subr.mxu0 0.0
    %322 = vmatpush1.msra.mxu0 %v303
    %323 = vmatprep.subr.mxu0 0.0
    %324 = vmatpush1.msra.mxu0 %v304
    %325 = vmatprep.subr.mxu0 0.0
    %326 = vmatpush1.msra.mxu0 0.0
    %327 = vmatprep.subr.mxu0 0.0
    %328 = vmatpush1.msra.mxu0 0.0
    %329 = vmatprep.subr.mxu0 0.0
    %330 = vmatpush1.msra.mxu0 0.0
    %331 = vmatprep.subr.mxu0 0.0
    %332 = vmatpush1.msra.mxu0 0.0
    %333 = vmatprep.subr.mxu0 0.0
    %334 = vmatpush1.msra.mxu0 0.0
    %335 = vmatprep.subr.mxu0 0.0
    %336 = vmatpush1.msra.mxu0 0.0
    %337 = vmatprep.subr.mxu0 0.0
    %338 = vmatpush1.msra.mxu0 0.0
    %339 = vmatprep.subr.mxu0 0.0
    %340 = vmatpush1.msra.mxu0 0.0
    %341 = vmatprep.subr.mxu0 0.0
    %342 = vmatpush1.msra.mxu0 0.0
    %343 = vmatprep.subr.mxu0 0.0
    %344 = vmatpush1.msra.mxu0 0.0
    %345 = vmatprep.subr.mxu0 0.0
    %346 = vmatpush1.msra.mxu0 0.0
    %347 = vmatprep.subr.mxu0 0.0
    %348 = vmatpush1.msra.mxu0 0.0
    %349 = vmatprep.subr.mxu0 0.0
    %350 = vmatpush1.msra.mxu0 0.0
    %351 = vmatprep.subr.mxu0 0.0
    %352 = vmatpush1.msra.mxu0 0.0
    %353 = vmatprep.subr.mxu0 0.0
    %354 = vmatpush1.msra.mxu0 0.0
    %355 = vmatprep.subr.mxu0 0.0
    %356 = vmatpush1.msra.mxu0 0.0
    %357 = vmatprep.subr.mxu0 0.0
    %358 = vmatpush1.msra.mxu0 0.0
    %359 = vmatprep.subr.mxu0 0.0
    %360 = vmatpush1.msra.mxu0 0.0
    %361 = vmatprep.subr.mxu0 0.0
    %362 = vmatpush1.msra.mxu0 0.0
    %363 = vmatprep.subr.mxu0 0.0
    %364 = vmatpush1.msra.mxu0 0.0
    %365 = vmatprep.subr.mxu0 0.0
    %366 = vmatpush1.msra.mxu0 0.0
    %367 = vmatprep.subr.mxu0 0.0
    %368 = vmatpush1.msra.mxu0 0.0
    %369 = vmatprep.subr.mxu0 0.0
    %370 = vmatpush1.msra.mxu0 0.0
    %371 = vmatprep.subr.mxu0 0.0
    %372 = vmatpush1.msra.mxu0 0.0
    %373 = vmatprep.mubr.f32.mxu0 0.0
    %374 = vmatmul.mubr.f32.gmra.mrb[0].mxu0 %v307
    %v375 = vpop.f32.mrb[0].mxu0
    %v376 = vadd.f32 0.0, %v375
    %v377 = vpop.f32.mrb[0].mxu0
    %378 = vdwg.mxu0
    %v380 = vsel %vm305, %v193, 0
    %382 = vmatprep.subr.mxu0 0.0
    %383 = vmatpush1.msra.mxu0 %v289
    %384 = vmatprep.subr.mxu0 0.0
    %385 = vmatpush1.msra.mxu0 %v290
    %386 = vmatprep.subr.mxu0 0.0
    %387 = vmatpush1.msra.mxu0 %v291
    %388 = vmatprep.subr.mxu0 0.0
    %389 = vmatpush1.msra.mxu0 %v292
    %390 = vmatprep.subr.mxu0 0.0
    %391 = vmatpush1.msra.mxu0 %v293
    %392 = vmatprep.subr.mxu0 0.0
    %393 = vmatpush1.msra.mxu0 %v294
    %394 = vmatprep.subr.mxu0 0.0
    %395 = vmatpush1.msra.mxu0 %v295
    %396 = vmatprep.subr.mxu0 0.0
    %397 = vmatpush1.msra.mxu0 %v296
    %398 = vmatprep.subr.mxu0 0.0
    %399 = vmatpush1.msra.mxu0 0.0
    %400 = vmatprep.subr.mxu0 0.0
    %401 = vmatpush1.msra.mxu0 0.0
    %402 = vmatprep.subr.mxu0 0.0
    %403 = vmatpush1.msra.mxu0 0.0
    %404 = vmatprep.subr.mxu0 0.0
    %405 = vmatpush1.msra.mxu0 0.0
    %406 = vmatprep.subr.mxu0 0.0
    %407 = vmatpush1.msra.mxu0 0.0
    %408 = vmatprep.subr.mxu0 0.0
    %409 = vmatpush1.msra.mxu0 0.0
    %410 = vmatprep.subr.mxu0 0.0
    %411 = vmatpush1.msra.mxu0 0.0
    %412 = vmatprep.subr.mxu0 0.0
    %413 = vmatpush1.msra.mxu0 0.0
    %414 = vmatprep.subr.mxu0 0.0
    %415 = vmatpush1.msra.mxu0 0.0
    %416 = vmatprep.subr.mxu0 0.0
    %417 = vmatpush1.msra.mxu0 0.0
    %418 = vmatprep.subr.mxu0 0.0
    %419 = vmatpush1.msra.mxu0 0.0
    %420 = vmatprep.subr.mxu0 0.0
    %421 = vmatpush1.msra.mxu0 0.0
    %422 = vmatprep.subr.mxu0 0.0
    %423 = vmatpush1.msra.mxu0 0.0
    %424 = vmatprep.subr.mxu0 0.0
    %425 = vmatpush1.msra.mxu0 0.0
    %426 = vmatprep.subr.mxu0 0.0
    %427 = vmatpush1.msra.mxu0 0.0
    %428 = vmatprep.subr.mxu0 0.0
    %429 = vmatpush1.msra.mxu0 0.0
    %430 = vmatprep.subr.mxu0 0.0
    %431 = vmatpush1.msra.mxu0 0.0
    %432 = vmatprep.subr.mxu0 0.0
    %433 = vmatpush1.msra.mxu0 0.0
    %434 = vmatprep.subr.mxu0 0.0
    %435 = vmatpush1.msra.mxu0 0.0
    %436 = vmatprep.subr.mxu0 0.0
    %437 = vmatpush1.msra.mxu0 0.0
    %438 = vmatprep.subr.mxu0 0.0
    %439 = vmatpush1.msra.mxu0 0.0
    %440 = vmatprep.subr.mxu0 0.0
    %441 = vmatpush1.msra.mxu0 0.0
    %442 = vmatprep.subr.mxu0 0.0
    %443 = vmatpush1.msra.mxu0 0.0
    %444 = vmatprep.subr.mxu0 0.0
    %445 = vmatpush1.msra.mxu0 0.0
    %446 = vmatprep.mubr.f32.mxu0 0.0
    %447 = vmatmul.mubr.f32.gmra.mrb[0].mxu0 %v380
    %v448 = vpop.f32.mrb[0].mxu0
    %v449 = vadd.f32 %v376, %v448
    %v450 = vpop.f32.mrb[0].mxu0
    %451 = vdwg.mxu0
    %v452 = vld [vmem:[%s2] sm:$0xff]
    %v453 = vld [vmem:[%s9] sm:$0xff]
    %v454 = vld [vmem:[%s9 + $0x8] sm:$0xff]
    %vm455 = vcmask 130048
    %v457 = vsel %vm455, %v452, 0
    %459 = vmatprep.subr.mxu0 0.0
    %460 = vmatpush1.msra.mxu0 %v453
    %461 = vmatprep.subr.mxu0 0.0
    %462 = vmatpush1.msra.mxu0 %v454
    %463 = vmatprep.subr.mxu0 0.0
    %464 = vmatpush1.msra.mxu0 0.0
    %465 = vmatprep.subr.mxu0 0.0
    %466 = vmatpush1.msra.mxu0 0.0
    %467 = vmatprep.subr.mxu0 0.0
    %468 = vmatpush1.msra.mxu0 0.0
    %469 = vmatprep.subr.mxu0 0.0
    %470 = vmatpush1.msra.mxu0 0.0
    %471 = vmatprep.subr.mxu0 0.0
    %472 = vmatpush1.msra.mxu0 0.0
    %473 = vmatprep.subr.mxu0 0.0
    %474 = vmatpush1.msra.mxu0 0.0
    %475 = vmatprep.subr.mxu0 0.0
    %476 = vmatpush1.msra.mxu0 0.0
    %477 = vmatprep.subr.mxu0 0.0
    %478 = vmatpush1.msra.mxu0 0.0
    %479 = vmatprep.subr.mxu0 0.0
    %480 = vmatpush1.msra.mxu0 0.0
    %481 = vmatprep.subr.mxu0 0.0
    %482 = vmatpush1.msra.mxu0 0.0
    %483 = vmatprep.subr.mxu0 0.0
    %484 = vmatpush1.msra.mxu0 0.0
    %485 = vmatprep.subr.mxu0 0.0
    %486 = vmatpush1.msra.mxu0 0.0
    %487 = vmatprep.subr.mxu0 0.0
    %488 = vmatpush1.msra.mxu0 0.0
    %489 = vmatprep.subr.mxu0 0.0
    %490 = vmatpush1.msra.mxu0 0.0
    %491 = vmatprep.subr.mxu0 0.0
    %492 = vmatpush1.msra.mxu0 0.0
    %493 = vmatprep.subr.mxu0 0.0
    %494 = vmatpush1.msra.mxu0 0.0
    %495 = vmatprep.subr.mxu0 0.0
    %496 = vmatpush1.msra.mxu0 0.0
    %497 = vmatprep.subr.mxu0 0.0
    %498 = vmatpush1.msra.mxu0 0.0
    %499 = vmatprep.subr.mxu0 0.0
    %500 = vmatpush1.msra.mxu0 0.0
    %501 = vmatprep.subr.mxu0 0.0
    %502 = vmatpush1.msra.mxu0 0.0
    %503 = vmatprep.subr.mxu0 0.0
    %504 = vmatpush1.msra.mxu0 0.0
    %505 = vmatprep.subr.mxu0 0.0
    %506 = vmatpush1.msra.mxu0 0.0
    %507 = vmatprep.subr.mxu0 0.0
    %508 = vmatpush1.msra.mxu0 0.0
    %509 = vmatprep.subr.mxu0 0.0
    %510 = vmatpush1.msra.mxu0 0.0
    %511 = vmatprep.subr.mxu0 0.0
    %512 = vmatpush1.msra.mxu0 0.0
    %513 = vmatprep.subr.mxu0 0.0
    %514 = vmatpush1.msra.mxu0 0.0
    %515 = vmatprep.subr.mxu0 0.0
    %516 = vmatpush1.msra.mxu0 0.0
    %517 = vmatprep.subr.mxu0 0.0
    %518 = vmatpush1.msra.mxu0 0.0
    %519 = vmatprep.subr.mxu0 0.0
    %520 = vmatpush1.msra.mxu0 0.0
    %521 = vmatprep.subr.mxu0 0.0
    %522 = vmatpush1.msra.mxu0 0.0
    %523 = vmatprep.mubr.f32.mxu0 0.0
    %524 = vmatmul.mubr.f32.gmra.mrb[0].mxu0 %v457
    %v525 = vpop.f32.mrb[0].mxu0
    %v526 = vadd.f32 0.0, %v525
    %v527 = vpop.f32.mrb[0].mxu0
    %528 = vdwg.mxu0
    %v529 = vadd.f32 %v449, %v526
    %v530 = vld [vmem:[%s10] sm:$0x1]
    %v532 = vlaneseq
    %v533 = vshrl.u32 %v532, 7
    %v534 = vsub.s32 0, %v533
    %v535 = vrot.slane %v530, %v534
    %v537 = vadd.f32 %v529, %v535
    %v538 = vmax.f32 %v537, 0.0
    %v539 = vld [vmem:[#allocation7] sm:$0xff]
    %v540 = vld [vmem:[#allocation7 + $0x8] sm:$0xff]
    %v541 = vld [vmem:[#allocation7 + $0x10] sm:$0xff]
    %v542 = vld [vmem:[#allocation7 + $0x18] sm:$0xff]
    %v543 = vld [vmem:[#allocation7 + $0x20] sm:$0xff]
    %v544 = vld [vmem:[#allocation7 + $0x28] sm:$0xff]
    %v545 = vld [vmem:[#allocation7 + $0x30] sm:$0xff]
    %v546 = vld [vmem:[#allocation7 + $0x38] sm:$0xff]
    %v547 = vld [vmem:[#allocation7 + $0x40] sm:$0xff]
    %v548 = vld [vmem:[#allocation7 + $0x48] sm:$0xff]
    %v549 = vld [vmem:[#allocation7 + $0x50] sm:$0xff]
    %v550 = vld [vmem:[#allocation7 + $0x58] sm:$0xff]
    %v551 = vld [vmem:[#allocation7 + $0x60] sm:$0xff]
    %v552 = vld [vmem:[#allocation7 + $0x68] sm:$0xff]
    %v553 = vld [vmem:[#allocation7 + $0x70] sm:$0xff]
    %v554 = vld [vmem:[#allocation7 + $0x78] sm:$0xff]
    %v555 = vld [vmem:[#allocation7 + $0x80] sm:$0xff]
    %v556 = vld [vmem:[#allocation7 + $0x88] sm:$0xff]
    %v557 = vld [vmem:[#allocation7 + $0x90] sm:$0xff]
    %v558 = vld [vmem:[#allocation7 + $0x98] sm:$0xff]
    %v559 = vld [vmem:[#allocation7 + $0xa0] sm:$0xff]
    %v560 = vld [vmem:[#allocation7 + $0xa8] sm:$0xff]
    %v561 = vld [vmem:[#allocation7 + $0xb0] sm:$0xff]
    %v562 = vld [vmem:[#allocation7 + $0xb8] sm:$0xff]
    %v563 = vld [vmem:[#allocation7 + $0xc0] sm:$0xff]
    %v564 = vld [vmem:[#allocation7 + $0xc8] sm:$0xff]
    %v565 = vld [vmem:[#allocation7 + $0xd0] sm:$0xff]
    %v566 = vld [vmem:[#allocation7 + $0xd8] sm:$0xff]
    %v567 = vld [vmem:[#allocation7 + $0xe0] sm:$0xff]
    %v568 = vld [vmem:[#allocation7 + $0xe8] sm:$0xff]
    %v569 = vld [vmem:[#allocation7 + $0xf0] sm:$0xff]
    %v570 = vld [vmem:[#allocation7 + $0xf8] sm:$0xff]
    %v571 = vld [vmem:[#allocation7 + $0x100] sm:$0xff]
    %v572 = vld [vmem:[#allocation7 + $0x108] sm:$0xff]
    %v573 = vld [vmem:[#allocation7 + $0x110] sm:$0xff]
    %v574 = vld [vmem:[#allocation7 + $0x118] sm:$0xff]
    %v575 = vld [vmem:[#allocation7 + $0x120] sm:$0xff]
    %v576 = vld [vmem:[#allocation7 + $0x128] sm:$0xff]
    %v577 = vld [vmem:[#allocation7 + $0x130] sm:$0xff]
    %v578 = vld [vmem:[#allocation7 + $0x138] sm:$0xff]
    %v579 = vld [vmem:[#allocation7 + $0x140] sm:$0xff]
    %v580 = vld [vmem:[#allocation7 + $0x148] sm:$0xff]
    %v581 = vld [vmem:[#allocation7 + $0x150] sm:$0xff]
    %v582 = vld [vmem:[#allocation7 + $0x158] sm:$0xff]
    %v583 = vld [vmem:[#allocation7 + $0x160] sm:$0xff]
    %v584 = vld [vmem:[#allocation7 + $0x168] sm:$0xff]
    %v585 = vld [vmem:[#allocation7 + $0x170] sm:$0xff]
    %v586 = vld [vmem:[#allocation7 + $0x178] sm:$0xff]
    %v587 = vld [vmem:[#allocation7 + $0x180] sm:$0xff]
    %v588 = vld [vmem:[#allocation7 + $0x188] sm:$0xff]
    %v589 = vld [vmem:[#allocation7 + $0x190] sm:$0xff]
    %v590 = vld [vmem:[#allocation7 + $0x198] sm:$0xff]
    %v591 = vld [vmem:[#allocation7 + $0x1a0] sm:$0xff]
    %v592 = vld [vmem:[#allocation7 + $0x1a8] sm:$0xff]
    %v593 = vld [vmem:[#allocation7 + $0x1b0] sm:$0xff]
    %v594 = vld [vmem:[#allocation7 + $0x1b8] sm:$0xff]
    %v595 = vld [vmem:[#allocation7 + $0x1c0] sm:$0xff]
    %v596 = vld [vmem:[#allocation7 + $0x1c8] sm:$0xff]
    %v597 = vld [vmem:[#allocation7 + $0x1d0] sm:$0xff]
    %v598 = vld [vmem:[#allocation7 + $0x1d8] sm:$0xff]
    %v599 = vld [vmem:[#allocation7 + $0x1e0] sm:$0xff]
    %v600 = vld [vmem:[#allocation7 + $0x1e8] sm:$0xff]
    %v601 = vld [vmem:[#allocation7 + $0x1f0] sm:$0xff]
    %v602 = vld [vmem:[#allocation7 + $0x1f8] sm:$0xff]
    %v603 = vld [vmem:[%s12] sm:$0xf]
    %v605 = vlaneseq
    %v606 = vshrl.u32 %v605, 7
    %v607 = vsub.s32 0, %v606
    %v608 = vrot.slane %v603, %v607
    %v609 = vlaneseq
    %v610 = vshrl.u32 %v609, 7
    %v611 = vsub.s32 1, %v610
    %v612 = vrot.slane %v603, %v611
    %v613 = vlaneseq
    %v614 = vshrl.u32 %v613, 7
    %v615 = vsub.s32 2, %v614
    %v616 = vrot.slane %v603, %v615
    %v617 = vlaneseq
    %v618 = vshrl.u32 %v617, 7
    %v619 = vsub.s32 3, %v618
    %v620 = vrot.slane %v603, %v619
    %625 = vmatprep.subr.mxu0 %v540
    %626 = vmatpush1.msra.mxu0 %v539
    %627 = vmatprep.subr.mxu0 %v544
    %628 = vmatpush1.msra.mxu0 %v543
    %629 = vmatprep.subr.mxu0 %v548
    %630 = vmatpush1.msra.mxu0 %v547
    %631 = vmatprep.subr.mxu0 %v552
    %632 = vmatpush1.msra.mxu0 %v551
    %633 = vmatprep.subr.mxu0 %v556
    %634 = vmatpush1.msra.mxu0 %v555
    %635 = vmatprep.subr.mxu0 %v560
    %636 = vmatpush1.msra.mxu0 %v559
    %637 = vmatprep.subr.mxu0 %v564
    %638 = vmatpush1.msra.mxu0 %v563
    %639 = vmatprep.subr.mxu0 %v568
    %640 = vmatpush1.msra.mxu0 %v567
    %641 = vmatprep.subr.mxu0 %v572
    %642 = vmatpush1.msra.mxu0 %v571
    %643 = vmatprep.subr.mxu0 %v576
    %644 = vmatpush1.msra.mxu0 %v575
    %645 = vmatprep.subr.mxu0 %v580
    %646 = vmatpush1.msra.mxu0 %v579
    %647 = vmatprep.subr.mxu0 %v584
    %648 = vmatpush1.msra.mxu0 %v583
    %649 = vmatprep.subr.mxu0 %v588
    %650 = vmatpush1.msra.mxu0 %v587
    %651 = vmatprep.subr.mxu0 %v592
    %652 = vmatpush1.msra.mxu0 %v591
    %653 = vmatprep.subr.mxu0 %v596
    %654 = vmatpush1.msra.mxu0 %v595
    %655 = vmatprep.subr.mxu0 %v600
    %656 = vmatpush1.msra.mxu0 %v599
    %657 = vmatprep.subr.mxu0 0.0
    %658 = vmatpush1.msra.mxu0 0.0
    %659 = vmatprep.subr.mxu0 0.0
    %660 = vmatpush1.msra.mxu0 0.0
    %661 = vmatprep.subr.mxu0 0.0
    %662 = vmatpush1.msra.mxu0 0.0
    %663 = vmatprep.subr.mxu0 0.0
    %664 = vmatpush1.msra.mxu0 0.0
    %665 = vmatprep.subr.mxu0 0.0
    %666 = vmatpush1.msra.mxu0 0.0
    %667 = vmatprep.subr.mxu0 0.0
    %668 = vmatpush1.msra.mxu0 0.0
    %669 = vmatprep.subr.mxu0 0.0
    %670 = vmatpush1.msra.mxu0 0.0
    %671 = vmatprep.subr.mxu0 0.0
    %672 = vmatpush1.msra.mxu0 0.0
    %673 = vmatprep.subr.mxu0 0.0
    %674 = vmatpush1.msra.mxu0 0.0
    %675 = vmatprep.subr.mxu0 0.0
    %676 = vmatpush1.msra.mxu0 0.0
    %677 = vmatprep.subr.mxu0 0.0
    %678 = vmatpush1.msra.mxu0 0.0
    %679 = vmatprep.subr.mxu0 0.0
    %680 = vmatpush1.msra.mxu0 0.0
    %681 = vmatprep.subr.mxu0 0.0
    %682 = vmatpush1.msra.mxu0 0.0
    %683 = vmatprep.subr.mxu0 0.0
    %684 = vmatpush1.msra.mxu0 0.0
    %685 = vmatprep.subr.mxu0 0.0
    %686 = vmatpush1.msra.mxu0 0.0
    %687 = vmatprep.subr.mxu0 0.0
    %688 = vmatpush1.msra.mxu0 0.0
    %689 = vmatprep.mubr.f32.mxu0 0.0
    %690 = vmatmul.mubr.f32.gmra.mrb[0].mxu0 %v538
    %v691 = vpop.f32.mrb[0].mxu0
    %v692 = vadd.f32 %v608, %v691
    %v693 = vpop.f32.mrb[0].mxu0
    %v694 = vadd.f32 %v612, %v693
    %695 = vdwg.mxu0
    %696 = vmatprep.subr.mxu0 %v542
    %697 = vmatpush1.msra.mxu0 %v541
    %698 = vmatprep.subr.mxu0 %v546
    %699 = vmatpush1.msra.mxu0 %v545
    %700 = vmatprep.subr.mxu0 %v550
    %701 = vmatpush1.msra.mxu0 %v549
    %702 = vmatprep.subr.mxu0 %v554
    %703 = vmatpush1.msra.mxu0 %v553
    %704 = vmatprep.subr.mxu0 %v558
    %705 = vmatpush1.msra.mxu0 %v557
    %706 = vmatprep.subr.mxu0 %v562
    %707 = vmatpush1.msra.mxu0 %v561
    %708 = vmatprep.subr.mxu0 %v566
    %709 = vmatpush1.msra.mxu0 %v565
    %710 = vmatprep.subr.mxu0 %v570
    %711 = vmatpush1.msra.mxu0 %v569
    %712 = vmatprep.subr.mxu0 %v574
    %713 = vmatpush1.msra.mxu0 %v573
    %714 = vmatprep.subr.mxu0 %v578
    %715 = vmatpush1.msra.mxu0 %v577
    %716 = vmatprep.subr.mxu0 %v582
    %717 = vmatpush1.msra.mxu0 %v581
    %718 = vmatprep.subr.mxu0 %v586
    %719 = vmatpush1.msra.mxu0 %v585
    %720 = vmatprep.subr.mxu0 %v590
    %721 = vmatpush1.msra.mxu0 %v589
    %722 = vmatprep.subr.mxu0 %v594
    %723 = vmatpush1.msra.mxu0 %v593
    %724 = vmatprep.subr.mxu0 %v598
    %725 = vmatpush1.msra.mxu0 %v597
    %726 = vmatprep.subr.mxu0 %v602
    %727 = vmatpush1.msra.mxu0 %v601
    %728 = vmatprep.subr.mxu0 0.0
    %729 = vmatpush1.msra.mxu0 0.0
    %730 = vmatprep.subr.mxu0 0.0
    %731 = vmatpush1.msra.mxu0 0.0
    %732 = vmatprep.subr.mxu0 0.0
    %733 = vmatpush1.msra.mxu0 0.0
    %734 = vmatprep.subr.mxu0 0.0
    %735 = vmatpush1.msra.mxu0 0.0
    %736 = vmatprep.subr.mxu0 0.0
    %737 = vmatpush1.msra.mxu0 0.0
    %738 = vmatprep.subr.mxu0 0.0
    %739 = vmatpush1.msra.mxu0 0.0
    %740 = vmatprep.subr.mxu0 0.0
    %741 = vmatpush1.msra.mxu0 0.0
    %742 = vmatprep.subr.mxu0 0.0
    %743 = vmatpush1.msra.mxu0 0.0
    %744 = vmatprep.subr.mxu0 0.0
    %745 = vmatpush1.msra.mxu0 0.0
    %746 = vmatprep.subr.mxu0 0.0
    %747 = vmatpush1.msra.mxu0 0.0
    %748 = vmatprep.subr.mxu0 0.0
    %749 = vmatpush1.msra.mxu0 0.0
    %750 = vmatprep.subr.mxu0 0.0
    %751 = vmatpush1.msra.mxu0 0.0
    %752 = vmatprep.subr.mxu0 0.0
    %753 = vmatpush1.msra.mxu0 0.0
    %754 = vmatprep.subr.mxu0 0.0
    %755 = vmatpush1.msra.mxu0 0.0
    %756 = vmatprep.subr.mxu0 0.0
    %757 = vmatpush1.msra.mxu0 0.0
    %758 = vmatprep.subr.mxu0 0.0
    %759 = vmatpush1.msra.mxu0 0.0
    %760 = vmatprep.mubr.f32.mxu0 0.0
    %761 = vmatmul.mubr.f32.gmra.mrb[0].mxu0 %v538
    %v762 = vpop.f32.mrb[0].mxu0
    %v763 = vadd.f32 %v616, %v762
    %v764 = vpop.f32.mrb[0].mxu0
    %v765 = vadd.f32 %v620, %v764
    %766 = vdwg.mxu0
    %767 = vst [vmem:[%s13] sm:$0xff] %v692
    %768 = vst [vmem:[%s13 + $0x8] sm:$0xff] %v694
    %769 = vst [vmem:[%s13 + $0x10] sm:$0xff] %v763
    %770 = vst [vmem:[%s13 + $0x18] sm:$0xff] %v765
    // Predicated region
    $region70: #{speaker_forward.4} parent=1 // pred_check
      _
    $region71: #{speaker_forward.4} parent=1 // pred_check_branch
      %772 = sbr.rel (0) target = $region73
    $region72: #{speaker_forward.4} parent=1 // pred_region
      _
    $region73: #{speaker_forward.4} parent=1 // pred_fallthru
      _
    // Predicated region
    $region74: #{speaker_forward.4} parent=1 // pred_check
      _
    $region75: #{speaker_forward.4} parent=1 // pred_check_branch
      %774 = sbr.rel (0) target = $region77
    $region76: #{speaker_forward.4} parent=1 // pred_region
      _
    $region77: #{speaker_forward.4} parent=1 // pred_fallthru
      _
    %775 = vsyncpa [#allocation3], 1
    %776 = vsyncpa [#allocation5], 1
    %777 = vsyncpa [#allocation8], 1

// kernel: speaker_forward.6
$region0: #{speaker_forward.6}
  #allocation0 [shape = 'u32[]', space=smem, size = 0x4, offset = 0x4, fixed_abs, tag = 'smem constant byte address 0x4 - core index']
  #allocation1 [shape = 'u32[144,128]{1,0:T(1,128)}', space=vmem, size = 0x12000, scoped, tag = 'internal scratch']
  %s0 = inlined_call_operand.vmem [shape: f32[8,8,512], index: 0, kind: input, shape index: {}]
  %s1 = inlined_call_operand.vmem [shape: f32[8,512], index: 1, kind: input, shape index: {}]
  %s2 = inlined_call_operand.vmem [shape: f32[128,512], index: 2, kind: input, shape index: {}]
  %s3 = inlined_call_operand.vmem [shape: f32[8,8,128], index: 3, kind: output, shape index: {0}]
  %s4 = inlined_call_operand.vmem [shape: f32[8,128], index: 4, kind: output, shape index: {1}]
  %s5 = inlined_call_operand.vmem [shape: f32[8,128], index: 5, kind: output, shape index: {2}]
  %6 = xla_tuple %s3, %s4, %s5
  %s7 = sld [smem:[#allocation0]]
  $region38: #{speaker_forward.6} parent=0
    _
  %s9 = ssub.s32 1, %s7
  %s10 = scalar_select 0, %s9, %s7
  // Predicated region
  $region2: #{speaker_forward.6} parent=0 // pred_check
    _
  $region3: #{speaker_forward.6} parent=0 // pred_check_branch
    %12 = sbr.rel (0) target = $region5
  $region4: #{speaker_forward.6} parent=0 // pred_region
    _
  $region5: #{speaker_forward.6} parent=0 // pred_fallthru
    _
  // Predicated region
  $region6: #{speaker_forward.6} parent=0 // pred_check
    _
  $region7: #{speaker_forward.6} parent=0 // pred_check_branch
    %14 = sbr.rel (0) target = $region9
  $region8: #{speaker_forward.6} parent=0 // pred_region
    _
  $region9: #{speaker_forward.6} parent=0 // pred_fallthru
    _
  // Predicated region
  $region10: #{speaker_forward.6} parent=0 // pred_check
    _
  $region11: #{speaker_forward.6} parent=0 // pred_check_branch
    %16 = sbr.rel (0) target = $region13
  $region12: #{speaker_forward.6} parent=0 // pred_region
    _
  $region13: #{speaker_forward.6} parent=0 // pred_fallthru
    _
  %v17 = vld [vmem:[%s1] sm:$0xff]
  %v18 = vld [vmem:[%s1 + $0x8] sm:$0xff]
  %v19 = vld [vmem:[%s1 + $0x10] sm:$0xff]
  %v20 = vld [vmem:[%s1 + $0x18] sm:$0xff]
  %v21 = vld [vmem:[%s2] sm:$0xff]
  %v22 = vld [vmem:[%s2 + $0x8] sm:$0xff]
  %v23 = vld [vmem:[%s2 + $0x10] sm:$0xff]
  %v24 = vld [vmem:[%s2 + $0x18] sm:$0xff]
  %v25 = vld [vmem:[%s2 + $0x20] sm:$0xff]
  %v26 = vld [vmem:[%s2 + $0x28] sm:$0xff]
  %v27 = vld [vmem:[%s2 + $0x30] sm:$0xff]
  %v28 = vld [vmem:[%s2 + $0x38] sm:$0xff]
  %v29 = vld [vmem:[%s2 + $0x40] sm:$0xff]
  %v30 = vld [vmem:[%s2 + $0x48] sm:$0xff]
  %v31 = vld [vmem:[%s2 + $0x50] sm:$0xff]
  %v32 = vld [vmem:[%s2 + $0x58] sm:$0xff]
  %v33 = vld [vmem:[%s2 + $0x60] sm:$0xff]
  %v34 = vld [vmem:[%s2 + $0x68] sm:$0xff]
  %v35 = vld [vmem:[%s2 + $0x70] sm:$0xff]
  %v36 = vld [vmem:[%s2 + $0x78] sm:$0xff]
  %v37 = vld [vmem:[%s2 + $0x80] sm:$0xff]
  %v38 = vld [vmem:[%s2 + $0x88] sm:$0xff]
  %v39 = vld [vmem:[%s2 + $0x90] sm:$0xff]
  %v40 = vld [vmem:[%s2 + $0x98] sm:$0xff]
  %v41 = vld [vmem:[%s2 + $0xa0] sm:$0xff]
  %v42 = vld [vmem:[%s2 + $0xa8] sm:$0xff]
  %v43 = vld [vmem:[%s2 + $0xb0] sm:$0xff]
  %v44 = vld [vmem:[%s2 + $0xb8] sm:$0xff]
  %v45 = vld [vmem:[%s2 + $0xc0] sm:$0xff]
  %v46 = vld [vmem:[%s2 + $0xc8] sm:$0xff]
  %v47 = vld [vmem:[%s2 + $0xd0] sm:$0xff]
  %v48 = vld [vmem:[%s2 + $0xd8] sm:$0xff]
  %v49 = vld [vmem:[%s2 + $0xe0] sm:$0xff]
  %v50 = vld [vmem:[%s2 + $0xe8] sm:$0xff]
  %v51 = vld [vmem:[%s2 + $0xf0] sm:$0xff]
  %v52 = vld [vmem:[%s2 + $0xf8] sm:$0xff]
  %v53 = vld [vmem:[%s2 + $0x100] sm:$0xff]
  %v54 = vld [vmem:[%s2 + $0x108] sm:$0xff]
  %v55 = vld [vmem:[%s2 + $0x110] sm:$0xff]
  %v56 = vld [vmem:[%s2 + $0x118] sm:$0xff]
  %v57 = vld [vmem:[%s2 + $0x120] sm:$0xff]
  %v58 = vld [vmem:[%s2 + $0x128] sm:$0xff]
  %v59 = vld [vmem:[%s2 + $0x130] sm:$0xff]
  %v60 = vld [vmem:[%s2 + $0x138] sm:$0xff]
  %v61 = vld [vmem:[%s2 + $0x140] sm:$0xff]
  %v62 = vld [vmem:[%s2 + $0x148] sm:$0xff]
  %v63 = vld [vmem:[%s2 + $0x150] sm:$0xff]
  %v64 = vld [vmem:[%s2 + $0x158] sm:$0xff]
  %v65 = vld [vmem:[%s2 + $0x160] sm:$0xff]
  %v66 = vld [vmem:[%s2 + $0x168] sm:$0xff]
  %v67 = vld [vmem:[%s2 + $0x170] sm:$0xff]
  %v68 = vld [vmem:[%s2 + $0x178] sm:$0xff]
  %v69 = vld [vmem:[%s2 + $0x180] sm:$0xff]
  %v70 = vld [vmem:[%s2 + $0x188] sm:$0xff]
  %v71 = vld [vmem:[%s2 + $0x190] sm:$0xff]
  %v72 = vld [vmem:[%s2 + $0x198] sm:$0xff]
  %v73 = vld [vmem:[%s2 + $0x1a0] sm:$0xff]
  %v74 = vld [vmem:[%s2 + $0x1a8] sm:$0xff]
  %v75 = vld [vmem:[%s2 + $0x1b0] sm:$0xff]
  %v76 = vld [vmem:[%s2 + $0x1b8] sm:$0xff]
  %v77 = vld [vmem:[%s2 + $0x1c0] sm:$0xff]
  %v78 = vld [vmem:[%s2 + $0x1c8] sm:$0xff]
  %v79 = vld [vmem:[%s2 + $0x1d0] sm:$0xff]
  %v80 = vld [vmem:[%s2 + $0x1d8] sm:$0xff]
  %v81 = vld [vmem:[%s2 + $0x1e0] sm:$0xff]
  %v82 = vld [vmem:[%s2 + $0x1e8] sm:$0xff]
  %v83 = vld [vmem:[%s2 + $0x1f0] sm:$0xff]
  %v84 = vld [vmem:[%s2 + $0x1f8] sm:$0xff]
  %v85 = vld [vmem:[%s0] sm:$0xff]
  %v86 = vld [vmem:[%s0 + $0x8] sm:$0xff]
  %v87 = vld [vmem:[%s0 + $0x10] sm:$0xff]
  %v88 = vld [vmem:[%s0 + $0x18] sm:$0xff]
  %v89 = vadd.f32 %v85, %v17
  %v90 = vadd.f32 %v86, %v18
  %v91 = vadd.f32 %v87, %v19
  %v92 = vadd.f32 %v88, %v20
  %93 = vmatprep.subr.mxu0 %v22
  %94 = vmatpush1.msra.mxu0 %v21
  %95 = vmatprep.subr.mxu0 %v26
  %96 = vmatpush1.msra.mxu0 %v25
  %97 = vmatprep.subr.mxu0 %v30
  %98 = vmatpush1.msra.mxu0 %v29
  %99 = vmatprep.subr.mxu0 %v34
  %100 = vmatpush1.msra.mxu0 %v33
  %101 = vmatprep.subr.mxu0 %v38
  %102 = vmatpush1.msra.mxu0 %v37
  %103 = vmatprep.subr.mxu0 %v42
  %104 = vmatpush1.msra.mxu0 %v41
  %105 = vmatprep.subr.mxu0 %v46
  %106 = vmatpush1.msra.mxu0 %v45
  %107 = vmatprep.subr.mxu0 %v50
  %108 = vmatpush1.msra.mxu0 %v49
  %109 = vmatprep.subr.mxu0 %v54
  %110 = vmatpush1.msra.mxu0 %v53
  %111 = vmatprep.subr.mxu0 %v58
  %112 = vmatpush1.msra.mxu0 %v57
  %113 = vmatprep.subr.mxu0 %v62
  %114 = vmatpush1.msra.mxu0 %v61
  %115 = vmatprep.subr.mxu0 %v66
  %116 = vmatpush1.msra.mxu0 %v65
  %117 = vmatprep.subr.mxu0 %v70
  %118 = vmatpush1.msra.mxu0 %v69
  %119 = vmatprep.subr.mxu0 %v74
  %120 = vmatpush1.msra.mxu0 %v73
  %121 = vmatprep.subr.mxu0 %v78
  %122 = vmatpush1.msra.mxu0 %v77
  %123 = vmatprep.subr.mxu0 %v82
  %124 = vmatpush1.msra.mxu0 %v81
  %125 = vmatprep.subr.mxu0 0.0
  %126 = vmatpush1.msra.mxu0 0.0
  %127 = vmatprep.subr.mxu0 0.0
  %128 = vmatpush1.msra.mxu0 0.0
  %129 = vmatprep.subr.mxu0 0.0
  %130 = vmatpush1.msra.mxu0 0.0
  %131 = vmatprep.subr.mxu0 0.0
  %132 = vmatpush1.msra.mxu0 0.0
  %133 = vmatprep.subr.mxu0 0.0
  %134 = vmatpush1.msra.mxu0 0.0
  %135 = vmatprep.subr.mxu0 0.0
  %136 = vmatpush1.msra.mxu0 0.0
  %137 = vmatprep.subr.mxu0 0.0
  %138 = vmatpush1.msra.mxu0 0.0
  %139 = vmatprep.subr.mxu0 0.0
  %140 = vmatpush1.msra.mxu0 0.0
  %141 = vmatprep.subr.mxu0 0.0
  %142 = vmatpush1.msra.mxu0 0.0
  %143 = vmatprep.subr.mxu0 0.0
  %144 = vmatpush1.msra.mxu0 0.0
  %145 = vmatprep.subr.mxu0 0.0
  %146 = vmatpush1.msra.mxu0 0.0
  %147 = vmatprep.subr.mxu0 0.0
  %148 = vmatpush1.msra.mxu0 0.0
  %149 = vmatprep.subr.mxu0 0.0
  %150 = vmatpush1.msra.mxu0 0.0
  %151 = vmatprep.subr.mxu0 0.0
  %152 = vmatpush1.msra.mxu0 0.0
  %153 = vmatprep.subr.mxu0 0.0
  %154 = vmatpush1.msra.mxu0 0.0
  %155 = vmatprep.subr.mxu0 0.0
  %156 = vmatpush1.msra.mxu0 0.0
  %157 = vmatprep.mubr.f32.mxu0 0.0
  %158 = vmatmul.mubr.f32.gmra.mrb[0].mxu0 0.0
  %v159 = vpop.f32.mrb[0].mxu0
  %v160 = vadd.f32 0.0, %v159
  %v161 = vpop.f32.mrb[0].mxu0
  %v162 = vadd.f32 0.0, %v161
  %163 = vdwg.mxu0
  %164 = vmatprep.subr.mxu0 %v24
  %165 = vmatpush1.msra.mxu0 %v23
  %166 = vmatprep.subr.mxu0 %v28
  %167 = vmatpush1.msra.mxu0 %v27
  %168 = vmatprep.subr.mxu0 %v32
  %169 = vmatpush1.msra.mxu0 %v31
  %170 = vmatprep.subr.mxu0 %v36
  %171 = vmatpush1.msra.mxu0 %v35
  %172 = vmatprep.subr.mxu0 %v40
  %173 = vmatpush1.msra.mxu0 %v39
  %174 = vmatprep.subr.mxu0 %v44
  %175 = vmatpush1.msra.mxu0 %v43
  %176 = vmatprep.subr.mxu0 %v48
  %177 = vmatpush1.msra.mxu0 %v47
  %178 = vmatprep.subr.mxu0 %v52
  %179 = vmatpush1.msra.mxu0 %v51
  %180 = vmatprep.subr.mxu0 %v56
  %181 = vmatpush1.msra.mxu0 %v55
  %182 = vmatprep.subr.mxu0 %v60
  %183 = vmatpush1.msra.mxu0 %v59
  %184 = vmatprep.subr.mxu0 %v64
  %185 = vmatpush1.msra.mxu0 %v63
  %186 = vmatprep.subr.mxu0 %v68
  %187 = vmatpush1.msra.mxu0 %v67
  %188 = vmatprep.subr.mxu0 %v72
  %189 = vmatpush1.msra.mxu0 %v71
  %190 = vmatprep.subr.mxu0 %v76
  %191 = vmatpush1.msra.mxu0 %v75
  %192 = vmatprep.subr.mxu0 %v80
  %193 = vmatpush1.msra.mxu0 %v79
  %194 = vmatprep.subr.mxu0 %v84
  %195 = vmatpush1.msra.mxu0 %v83
  %196 = vmatprep.subr.mxu0 0.0
  %197 = vmatpush1.msra.mxu0 0.0
  %198 = vmatprep.subr.mxu0 0.0
  %199 = vmatpush1.msra.mxu0 0.0
  %200 = vmatprep.subr.mxu0 0.0
  %201 = vmatpush1.msra.mxu0 0.0
  %202 = vmatprep.subr.mxu0 0.0
  %203 = vmatpush1.msra.mxu0 0.0
  %204 = vmatprep.subr.mxu0 0.0
  %205 = vmatpush1.msra.mxu0 0.0
  %206 = vmatprep.subr.mxu0 0.0
  %207 = vmatpush1.msra.mxu0 0.0
  %208 = vmatprep.subr.mxu0 0.0
  %209 = vmatpush1.msra.mxu0 0.0
  %210 = vmatprep.subr.mxu0 0.0
  %211 = vmatpush1.msra.mxu0 0.0
  %212 = vmatprep.subr.mxu0 0.0
  %213 = vmatpush1.msra.mxu0 0.0
  %214 = vmatprep.subr.mxu0 0.0
  %215 = vmatpush1.msra.mxu0 0.0
  %216 = vmatprep.subr.mxu0 0.0
  %217 = vmatpush1.msra.mxu0 0.0
  %218 = vmatprep.subr.mxu0 0.0
  %219 = vmatpush1.msra.mxu0 0.0
  %220 = vmatprep.subr.mxu0 0.0
  %221 = vmatpush1.msra.mxu0 0.0
  %222 = vmatprep.subr.mxu0 0.0
  %223 = vmatpush1.msra.mxu0 0.0
  %224 = vmatprep.subr.mxu0 0.0
  %225 = vmatpush1.msra.mxu0 0.0
  %226 = vmatprep.subr.mxu0 0.0
  %227 = vmatpush1.msra.mxu0 0.0
  %228 = vmatprep.mubr.f32.mxu0 0.0
  %229 = vmatmul.mubr.f32.gmra.mrb[0].mxu0 0.0
  %v230 = vpop.f32.mrb[0].mxu0
  %v231 = vadd.f32 0.0, %v230
  %v232 = vpop.f32.mrb[0].mxu0
  %v233 = vadd.f32 0.0, %v232
  %234 = vdwg.mxu0
  %v235 = vadd.f32 %v89, %v160
  %v236 = vadd.f32 %v90, %v162
  %v237 = vadd.f32 %v91, %v231
  %v238 = vadd.f32 %v92, %v233
  %v239 = vxor.u32 %v235, 2147483648
  %v240 = vmul.f32 %v239, 1.442695
  %v241 = vpow.pop %v240
  %v242 = vadd.f32 %v241, 1.0
  %v243 = vrcp.pop %v242
  %v244 = vmul.f32 1.0, %v243
  %v245 = vxor.u32 %v236, 2147483648
  %v246 = vmul.f32 %v245, 1.442695
  %v247 = vpow.pop %v246
  %v248 = vadd.f32 %v247, 1.0
  %v249 = vrcp.pop %v248
  %v250 = vmul.f32 1.0, %v249
  %v251 = vtanh.pop %v237
  %v252 = vxor.u32 %v238, 2147483648
  %v253 = vmul.f32 %v252, 1.442695
  %v254 = vpow.pop %v253
  %v255 = vadd.f32 %v254, 1.0
  %v256 = vrcp.pop %v255
  %v257 = vmul.f32 1.0, %v256
  %v258 = vmul.f32 %v250, 0.0
  %v259 = vmul.f32 %v244, %v251
  %v260 = vadd.f32 %v258, %v259
  %v261 = vtanh.pop %v260
  %v262 = vmul.f32 %v257, %v261
  %263 = vst [vmem:[%s3] sm:$0xff] %v262
  %s264 = scalar_lea.vmem %s0, 32
  %v265 = vld [vmem:[%s264] sm:$0xff]
  %v266 = vld [vmem:[%s264 + $0x8] sm:$0xff]
  %v267 = vld [vmem:[%s264 + $0x10] sm:$0xff]
  %v268 = vld [vmem:[%s264 + $0x18] sm:$0xff]
  %v269 = vadd.f32 %v265, %v17
  %v270 = vadd.f32 %v266, %v18
  %v271 = vadd.f32 %v267, %v19
  %v272 = vadd.f32 %v268, %v20
  %273 = vmatprep.subr.mxu0 %v22
  %274 = vmatpush1.msra.mxu0 %v21
  %275 = vmatprep.subr.mxu0 %v26
  %276 = vmatpush1.msra.mxu0 %v25
  %277 = vmatprep.subr.mxu0 %v30
  %278 = vmatpush1.msra.mxu0 %v29
  %279 = vmatprep.subr.mxu0 %v34
  %280 = vmatpush1.msra.mxu0 %v33
  %281 = vmatprep.subr.mxu0 %v38
  %282 = vmatpush1.msra.mxu0 %v37
  %283 = vmatprep.subr.mxu0 %v42
  %284 = vmatpush1.msra.mxu0 %v41
  %285 = vmatprep.subr.mxu0 %v46
  %286 = vmatpush1.msra.mxu0 %v45
  %287 = vmatprep.subr.mxu0 %v50
  %288 = vmatpush1.msra.mxu0 %v49
  %289 = vmatprep.subr.mxu0 %v54
  %290 = vmatpush1.msra.mxu0 %v53
  %291 = vmatprep.subr.mxu0 %v58
  %292 = vmatpush1.msra.mxu0 %v57
  %293 = vmatprep.subr.mxu0 %v62
  %294 = vmatpush1.msra.mxu0 %v61
  %295 = vmatprep.subr.mxu0 %v66
  %296 = vmatpush1.msra.mxu0 %v65
  %297 = vmatprep.subr.mxu0 %v70
  %298 = vmatpush1.msra.mxu0 %v69
  %299 = vmatprep.subr.mxu0 %v74
  %300 = vmatpush1.msra.mxu0 %v73
  %301 = vmatprep.subr.mxu0 %v78
  %302 = vmatpush1.msra.mxu0 %v77
  %303 = vmatprep.subr.mxu0 %v82
  %304 = vmatpush1.msra.mxu0 %v81
  %305 = vmatprep.subr.mxu0 0.0
  %306 = vmatpush1.msra.mxu0 0.0
  %307 = vmatprep.subr.mxu0 0.0
  %308 = vmatpush1.msra.mxu0 0.0
  %309 = vmatprep.subr.mxu0 0.0
  %310 = vmatpush1.msra.mxu0 0.0
  %311 = vmatprep.subr.mxu0 0.0
  %312 = vmatpush1.msra.mxu0 0.0
  %313 = vmatprep.subr.mxu0 0.0
  %314 = vmatpush1.msra.mxu0 0.0
  %315 = vmatprep.subr.mxu0 0.0
  %316 = vmatpush1.msra.mxu0 0.0
  %317 = vmatprep.subr.mxu0 0.0
  %318 = vmatpush1.msra.mxu0 0.0
  %319 = vmatprep.subr.mxu0 0.0
  %320 = vmatpush1.msra.mxu0 0.0
  %321 = vmatprep.subr.mxu0 0.0
  %322 = vmatpush1.msra.mxu0 0.0
  %323 = vmatprep.subr.mxu0 0.0
  %324 = vmatpush1.msra.mxu0 0.0
  %325 = vmatprep.subr.mxu0 0.0
  %326 = vmatpush1.msra.mxu0 0.0
  %327 = vmatprep.subr.mxu0 0.0
  %328 = vmatpush1.msra.mxu0 0.0
  %329 = vmatprep.subr.mxu0 0.0
  %330 = vmatpush1.msra.mxu0 0.0
  %331 = vmatprep.subr.mxu0 0.0
  %332 = vmatpush1.msra.mxu0 0.0
  %333 = vmatprep.subr.mxu0 0.0
  %334 = vmatpush1.msra.mxu0 0.0
  %335 = vmatprep.subr.mxu0 0.0
  %336 = vmatpush1.msra.mxu0 0.0
  %337 = vmatprep.mubr.f32.mxu0 0.0
  %338 = vmatmul.mubr.f32.gmra.mrb[0].mxu0 %v262
  %v339 = vpop.f32.mrb[0].mxu0
  %v340 = vadd.f32 0.0, %v339
  %v341 = vpop.f32.mrb[0].mxu0
  %v342 = vadd.f32 0.0, %v341
  %343 = vdwg.mxu0
  %344 = vmatprep.subr.mxu0 %v24
  %345 = vmatpush1.msra.mxu0 %v23
  %346 = vmatprep.subr.mxu0 %v28
  %347 = vmatpush1.msra.mxu0 %v27
  %348 = vmatprep.subr.mxu0 %v32
  %349 = vmatpush1.msra.mxu0 %v31
  %350 = vmatprep.subr.mxu0 %v36
  %351 = vmatpush1.msra.mxu0 %v35
  %352 = vmatprep.subr.mxu0 %v40
  %353 = vmatpush1.msra.mxu0 %v39
  %354 = vmatprep.subr.mxu0 %v44
  %355 = vmatpush1.msra.mxu0 %v43
  %356 = vmatprep.subr.mxu0 %v48
  %357 = vmatpush1.msra.mxu0 %v47
  %358 = vmatprep.subr.mxu0 %v52
  %359 = vmatpush1.msra.mxu0 %v51
  %360 = vmatprep.subr.mxu0 %v56
  %361 = vmatpush1.msra.mxu0 %v55
  %362 = vmatprep.subr.mxu0 %v60
  %363 = vmatpush1.msra.mxu0 %v59
  %364 = vmatprep.subr.mxu0 %v64
  %365 = vmatpush1.msra.mxu0 %v63
  %366 = vmatprep.subr.mxu0 %v68
  %367 = vmatpush1.msra.mxu0 %v67
  %368 = vmatprep.subr.mxu0 %v72
  %369 = vmatpush1.msra.mxu0 %v71
  %370 = vmatprep.subr.mxu0 %v76
  %371 = vmatpush1.msra.mxu0 %v75
  %372 = vmatprep.subr.mxu0 %v80
  %373 = vmatpush1.msra.mxu0 %v79
  %374 = vmatprep.subr.mxu0 %v84
  %375 = vmatpush1.msra.mxu0 %v83
  %376 = vmatprep.subr.mxu0 0.0
  %377 = vmatpush1.msra.mxu0 0.0
  %378 = vmatprep.subr.mxu0 0.0
  %379 = vmatpush1.msra.mxu0 0.0
  %380 = vmatprep.subr.mxu0 0.0
  %381 = vmatpush1.msra.mxu0 0.0
  %382 = vmatprep.subr.mxu0 0.0
  %383 = vmatpush1.msra.mxu0 0.0
  %384 = vmatprep.subr.mxu0 0.0
  %385 = vmatpush1.msra.mxu0 0.0
  %386 = vmatprep.subr.mxu0 0.0
  %387 = vmatpush1.msra.mxu0 0.0
  %388 = vmatprep.subr.mxu0 0.0
  %389 = vmatpush1.msra.mxu0 0.0
  %390 = vmatprep.subr.mxu0 0.0
  %391 = vmatpush1.msra.mxu0 0.0
  %392 = vmatprep.subr.mxu0 0.0
  %393 = vmatpush1.msra.mxu0 0.0
  %394 = vmatprep.subr.mxu0 0.0
  %395 = vmatpush1.msra.mxu0 0.0
  %396 = vmatprep.subr.mxu0 0.0
  %397 = vmatpush1.msra.mxu0 0.0
  %398 = vmatprep.subr.mxu0 0.0
  %399 = vmatpush1.msra.mxu0 0.0
  %400 = vmatprep.subr.mxu0 0.0
  %401 = vmatpush1.msra.mxu0 0.0
  %402 = vmatprep.subr.mxu0 0.0
  %403 = vmatpush1.msra.mxu0 0.0
  %404 = vmatprep.subr.mxu0 0.0
  %405 = vmatpush1.msra.mxu0 0.0
  %406 = vmatprep.subr.mxu0 0.0
  %407 = vmatpush1.msra.mxu0 0.0
  %408 = vmatprep.mubr.f32.mxu0 0.0
  %409 = vmatmul.mubr.f32.gmra.mrb[0].mxu0 %v262
  %v410 = vpop.f32.mrb[0].mxu0
  %v411 = vadd.f32 0.0, %v410
  %v412 = vpop.f32.mrb[0].mxu0
  %v413 = vadd.f32 0.0, %v412
  %414 = vdwg.mxu0
  %v415 = vadd.f32 %v269, %v340
  %v416 = vadd.f32 %v270, %v342
  %v417 = vadd.f32 %v271, %v411
  %v418 = vadd.f32 %v272, %v413
  %v419 = vxor.u32 %v415, 2147483648
  %v420 = vmul.f32 %v419, 1.442695
  %v421 = vpow.pop %v420
  %v422 = vadd.f32 %v421, 1.0
  %v423 = vrcp.pop %v422
  %v424 = vmul.f32 1.0, %v423
  %v425 = vxor.u32 %v416, 2147483648
  %v426 = vmul.f32 %v425, 1.442695
  %v427 = vpow.pop %v426
  %v428 = vadd.f32 %v427, 1.0
  %v429 = vrcp.pop %v428
  %v430 = vmul.f32 1.0, %v429
  %v431 = vtanh.pop %v417
  %v432 = vxor.u32 %v418, 2147483648
  %v433 = vmul.f32 %v432, 1.442695
  %v434 = vpow.pop %v433
  %v435 = vadd.f32 %v434, 1.0
  %v436 = vrcp.pop %v435
  %v437 = vmul.f32 1.0, %v436
  %v438 = vmul.f32 %v430, %v260
  %v439 = vmul.f32 %v424, %v431
  %v440 = vadd.f32 %v438, %v439
  %v441 = vtanh.pop %v440
  %v442 = vmul.f32 %v437, %v441
  %s443 = scalar_lea.vmem %s3, 8
  %444 = vst [vmem:[%s443] sm:$0xff] %v442
  %s445 = scalar_lea.vmem %s0, 64
  %v446 = vld [vmem:[%s445] sm:$0xff]
  %v447 = vld [vmem:[%s445 + $0x8] sm:$0xff]
  %v448 = vld [vmem:[%s445 + $0x10] sm:$0xff]
  %v449 = vld [vmem:[%s445 + $0x18] sm:$0xff]
  %v450 = vadd.f32 %v446, %v17
  %v451 = vadd.f32 %v447, %v18
  %v452 = vadd.f32 %v448, %v19
  %v453 = vadd.f32 %v449, %v20
  %454 = vmatprep.subr.mxu0 %v22
  %455 = vmatpush1.msra.mxu0 %v21
  %456 = vmatprep.subr.mxu0 %v26
  %457 = vmatpush1.msra.mxu0 %v25
  %458 = vmatprep.subr.mxu0 %v30
  %459 = vmatpush1.msra.mxu0 %v29
  %460 = vmatprep.subr.mxu0 %v34
  %461 = vmatpush1.msra.mxu0 %v33
  %462 = vmatprep.subr.mxu0 %v38
  %463 = vmatpush1.msra.mxu0 %v37
  %464 = vmatprep.subr.mxu0 %v42
  %465 = vmatpush1.msra.mxu0 %v41
  %466 = vmatprep.subr.mxu0 %v46
  %467 = vmatpush1.msra.mxu0 %v45
  %468 = vmatprep.subr.mxu0 %v50
  %469 = vmatpush1.msra.mxu0 %v49
  %470 = vmatprep.subr.mxu0 %v54
  %471 = vmatpush1.msra.mxu0 %v53
  %472 = vmatprep.subr.mxu0 %v58
  %473 = vmatpush1.msra.mxu0 %v57
  %474 = vmatprep.subr.mxu0 %v62
  %475 = vmatpush1.msra.mxu0 %v61
  %476 = vmatprep.subr.mxu0 %v66
  %477 = vmatpush1.msra.mxu0 %v65
  %478 = vmatprep.subr.mxu0 %v70
  %479 = vmatpush1.msra.mxu0 %v69
  %480 = vmatprep.subr.mxu0 %v74
  %481 = vmatpush1.msra.mxu0 %v73
  %482 = vmatprep.subr.mxu0 %v78
  %483 = vmatpush1.msra.mxu0 %v77
  %484 = vmatprep.subr.mxu0 %v82
  %485 = vmatpush1.msra.mxu0 %v81
  %486 = vmatprep.subr.mxu0 0.0
  %487 = vmatpush1.msra.mxu0 0.0
  %488 = vmatprep.subr.mxu0 0.0
  %489 = vmatpush1.msra.mxu0 0.0
  %490 = vmatprep.subr.mxu0 0.0
  %491 = vmatpush1.msra.mxu0 0.0
  %492 = vmatprep.subr.mxu0 0.0
  %493 = vmatpush1.msra.mxu0 0.0
  %494 = vmatprep.subr.mxu0 0.0
  %495 = vmatpush1.msra.mxu0 0.0
  %496 = vmatprep.subr.mxu0 0.0
  %497 = vmatpush1.msra.mxu0 0.0
  %498 = vmatprep.subr.mxu0 0.0
  %499 = vmatpush1.msra.mxu0 0.0
  %500 = vmatprep.subr.mxu0 0.0
  %501 = vmatpush1.msra.mxu0 0.0
  %502 = vmatprep.subr.mxu0 0.0
  %503 = vmatpush1.msra.mxu0 0.0
  %504 = vmatprep.subr.mxu0 0.0
  %505 = vmatpush1.msra.mxu0 0.0
  %506 = vmatprep.subr.mxu0 0.0
  %507 = vmatpush1.msra.mxu0 0.0
  %508 = vmatprep.subr.mxu0 0.0
  %509 = vmatpush1.msra.mxu0 0.0
  %510 = vmatprep.subr.mxu0 0.0
  %511 = vmatpush1.msra.mxu0 0.0
  %512 = vmatprep.subr.mxu0 0.0
  %513 = vmatpush1.msra.mxu0 0.0
  %514 = vmatprep.subr.mxu0 0.0
  %515 = vmatpush1.msra.mxu0 0.0
  %516 = vmatprep.subr.mxu0 0.0
  %517 = vmatpush1.msra.mxu0 0.0
  %518 = vmatprep.mubr.f32.mxu0 0.0
  %519 = vmatmul.mubr.f32.gmra.mrb[0].mxu0 %v442
  %v520 = vpop.f32.mrb[0].mxu0
  %v521 = vadd.f32 0.0, %v520
  %v522 = vpop.f32.mrb[0].mxu0
  %v523 = vadd.f32 0.0, %v522
  %524 = vdwg.mxu0
  %525 = vmatprep.subr.mxu0 %v24
  %526 = vmatpush1.msra.mxu0 %v23
  %527 = vmatprep.subr.mxu0 %v28
  %528 = vmatpush1.msra.mxu0 %v27
  %529 = vmatprep.subr.mxu0 %v32
  %530 = vmatpush1.msra.mxu0 %v31
  %531 = vmatprep.subr.mxu0 %v36
  %532 = vmatpush1.msra.mxu0 %v35
  %533 = vmatprep.subr.mxu0 %v40
  %534 = vmatpush1.msra.mxu0 %v39
  %535 = vmatprep.subr.mxu0 %v44
  %536 = vmatpush1.msra.mxu0 %v43
  %537 = vmatprep.subr.mxu0 %v48
  %538 = vmatpush1.msra.mxu0 %v47
  %539 = vmatprep.subr.mxu0 %v52
  %540 = vmatpush1.msra.mxu0 %v51
  %541 = vmatprep.subr.mxu0 %v56
  %542 = vmatpush1.msra.mxu0 %v55
  %543 = vmatprep.subr.mxu0 %v60
  %544 = vmatpush1.msra.mxu0 %v59
  %545 = vmatprep.subr.mxu0 %v64
  %546 = vmatpush1.msra.mxu0 %v63
  %547 = vmatprep.subr.mxu0 %v68
  %548 = vmatpush1.msra.mxu0 %v67
  %549 = vmatprep.subr.mxu0 %v72
  %550 = vmatpush1.msra.mxu0 %v71
  %551 = vmatprep.subr.mxu0 %v76
  %552 = vmatpush1.msra.mxu0 %v75
  %553 = vmatprep.subr.mxu0 %v80
  %554 = vmatpush1.msra.mxu0 %v79
  %555 = vmatprep.subr.mxu0 %v84
  %556 = vmatpush1.msra.mxu0 %v83
  %557 = vmatprep.subr.mxu0 0.0
  %558 = vmatpush1.msra.mxu0 0.0
  %559 = vmatprep.subr.mxu0 0.0
  %560 = vmatpush1.msra.mxu0 0.0
  %561 = vmatprep.subr.mxu0 0.0
  %562 = vmatpush1.msra.mxu0 0.0
  %563 = vmatprep.subr.mxu0 0.0
  %564 = vmatpush1.msra.mxu0 0.0
  %565 = vmatprep.subr.mxu0 0.0
  %566 = vmatpush1.msra.mxu0 0.0
  %567 = vmatprep.subr.mxu0 0.0
  %568 = vmatpush1.msra.mxu0 0.0
  %569 = vmatprep.subr.mxu0 0.0
  %570 = vmatpush1.msra.mxu0 0.0
  %571 = vmatprep.subr.mxu0 0.0
  %572 = vmatpush1.msra.mxu0 0.0
  %573 = vmatprep.subr.mxu0 0.0
  %574 = vmatpush1.msra.mxu0 0.0
  %575 = vmatprep.subr.mxu0 0.0
  %576 = vmatpush1.msra.mxu0 0.0
  %577 = vmatprep.subr.mxu0 0.0
  %578 = vmatpush1.msra.mxu0 0.0
  %579 = vmatprep.subr.mxu0 0.0
  %580 = vmatpush1.msra.mxu0 0.0
  %581 = vmatprep.subr.mxu0 0.0
  %582 = vmatpush1.msra.mxu0 0.0
  %583 = vmatprep.subr.mxu0 0.0
  %584 = vmatpush1.msra.mxu0 0.0
  %585 = vmatprep.subr.mxu0 0.0
  %586 = vmatpush1.msra.mxu0 0.0
  %587 = vmatprep.subr.mxu0 0.0
  %588 = vmatpush1.msra.mxu0 0.0
  %589 = vmatprep.mubr.f32.mxu0 0.0
  %590 = vmatmul.mubr.f32.gmra.mrb[0].mxu0 %v442
  %v591 = vpop.f32.mrb[0].mxu0
  %v592 = vadd.f32 0.0, %v591
  %v593 = vpop.f32.mrb[0].mxu0
  %v594 = vadd.f32 0.0, %v593
  %595 = vdwg.mxu0
  %v596 = vadd.f32 %v450, %v521
  %v597 = vadd.f32 %v451, %v523
  %v598 = vadd.f32 %v452, %v592
  %v599 = vadd.f32 %v453, %v594
  %v600 = vxor.u32 %v596, 2147483648
  %v601 = vmul.f32 %v600, 1.442695
  %v602 = vpow.pop %v601
  %v603 = vadd.f32 %v602, 1.0
  %v604 = vrcp.pop %v603
  %v605 = vmul.f32 1.0, %v604
  %v606 = vxor.u32 %v597, 2147483648
  %v607 = vmul.f32 %v606, 1.442695
  %v608 = vpow.pop %v607
  %v609 = vadd.f32 %v608, 1.0
  %v610 = vrcp.pop %v609
  %v611 = vmul.f32 1.0, %v610
  %v612 = vtanh.pop %v598
  %v613 = vxor.u32 %v599, 2147483648
  %v614 = vmul.f32 %v613, 1.442695
  %v615 = vpow.pop %v614
  %v616 = vadd.f32 %v615, 1.0
  %v617 = vrcp.pop %v616
  %v618 = vmul.f32 1.0, %v617
  %v619 = vmul.f32 %v611, %v440
  %v620 = vmul.f32 %v605, %v612
  %v621 = vadd.f32 %v619, %v620
  %v622 = vtanh.pop %v621
  %v623 = vmul.f32 %v618, %v622
  %s624 = scalar_lea.vmem %s3, 16
  %625 = vst [vmem:[%s624] sm:$0xff] %v623
  %s626 = scalar_lea.vmem %s0, 96
  %v627 = vld [vmem:[%s626] sm:$0xff]
  %v628 = vld [vmem:[%s626 + $0x8] sm:$0xff]
  %v629 = vld [vmem:[%s626 + $0x10] sm:$0xff]
  %v630 = vld [vmem:[%s626 + $0x18] sm:$0xff]
  %v631 = vadd.f32 %v627, %v17
  %v632 = vadd.f32 %v628, %v18
  %v633 = vadd.f32 %v629, %v19
  %v634 = vadd.f32 %v630, %v20
  %635 = vmatprep.subr.mxu0 %v22
  %636 = vmatpush1.msra.mxu0 %v21
  %637 = vmatprep.subr.mxu0 %v26
  %638 = vmatpush1.msra.mxu0 %v25
  %639 = vmatprep.subr.mxu0 %v30
  %640 = vmatpush1.msra.mxu0 %v29
  %641 = vmatprep.subr.mxu0 %v34
  %642 = vmatpush1.msra.mxu0 %v33
  %643 = vmatprep.subr.mxu0 %v38
  %644 = vmatpush1.msra.mxu0 %v37
  %645 = vmatprep.subr.mxu0 %v42
  %646 = vmatpush1.msra.mxu0 %v41
  %647 = vmatprep.subr.mxu0 %v46
  %648 = vmatpush1.msra.mxu0 %v45
  %649 = vmatprep.subr.mxu0 %v50
  %650 = vmatpush1.msra.mxu0 %v49
  %651 = vmatprep.subr.mxu0 %v54
  %652 = vmatpush1.msra.mxu0 %v53
  %653 = vmatprep.subr.mxu0 %v58
  %654 = vmatpush1.msra.mxu0 %v57
  %655 = vmatprep.subr.mxu0 %v62
  %656 = vmatpush1.msra.mxu0 %v61
  %657 = vmatprep.subr.mxu0 %v66
  %658 = vmatpush1.msra.mxu0 %v65
  %659 = vmatprep.subr.mxu0 %v70
  %660 = vmatpush1.msra.mxu0 %v69
  %661 = vmatprep.subr.mxu0 %v74
  %662 = vmatpush1.msra.mxu0 %v73
  %663 = vmatprep.subr.mxu0 %v78
  %664 = vmatpush1.msra.mxu0 %v77
  %665 = vmatprep.subr.mxu0 %v82
  %666 = vmatpush1.msra.mxu0 %v81
  %667 = vmatprep.subr.mxu0 0.0
  %668 = vmatpush1.msra.mxu0 0.0
  %669 = vmatprep.subr.mxu0 0.0
  %670 = vmatpush1.msra.mxu0 0.0
  %671 = vmatprep.subr.mxu0 0.0
  %672 = vmatpush1.msra.mxu0 0.0
  %673 = vmatprep.subr.mxu0 0.0
  %674 = vmatpush1.msra.mxu0 0.0
  %675 = vmatprep.subr.mxu0 0.0
  %676 = vmatpush1.msra.mxu0 0.0
  %677 = vmatprep.subr.mxu0 0.0
  %678 = vmatpush1.msra.mxu0 0.0
  %679 = vmatprep.subr.mxu0 0.0
  %680 = vmatpush1.msra.mxu0 0.0
  %681 = vmatprep.subr.mxu0 0.0
  %682 = vmatpush1.msra.mxu0 0.0
  %683 = vmatprep.subr.mxu0 0.0
  %684 = vmatpush1.msra.mxu0 0.0
  %685 = vmatprep.subr.mxu0 0.0
  %686 = vmatpush1.msra.mxu0 0.0
  %687 = vmatprep.subr.mxu0 0.0
  %688 = vmatpush1.msra.mxu0 0.0
  %689 = vmatprep.subr.mxu0 0.0
  %690 = vmatpush1.msra.mxu0 0.0
  %691 = vmatprep.subr.mxu0 0.0
  %692 = vmatpush1.msra.mxu0 0.0
  %693 = vmatprep.subr.mxu0 0.0
  %694 = vmatpush1.msra.mxu0 0.0
  %695 = vmatprep.subr.mxu0 0.0
  %696 = vmatpush1.msra.mxu0 0.0
  %697 = vmatprep.subr.mxu0 0.0
  %698 = vmatpush1.msra.mxu0 0.0
  %699 = vmatprep.mubr.f32.mxu0 0.0
  %700 = vmatmul.mubr.f32.gmra.mrb[0].mxu0 %v623
  %v701 = vpop.f32.mrb[0].mxu0
  %v702 = vadd.f32 0.0, %v701
  %v703 = vpop.f32.mrb[0].mxu0
  %v704 = vadd.f32 0.0, %v703
  %705 = vdwg.mxu0
  %706 = vmatprep.subr.mxu0 %v24
  %707 = vmatpush1.msra.mxu0 %v23
  %708 = vmatprep.subr.mxu0 %v28
  %709 = vmatpush1.msra.mxu0 %v27
  %710 = vmatprep.subr.mxu0 %v32
  %711 = vmatpush1.msra.mxu0 %v31
  %712 = vmatprep.subr.mxu0 %v36
  %713 = vmatpush1.msra.mxu0 %v35
  %714 = vmatprep.subr.mxu0 %v40
  %715 = vmatpush1.msra.mxu0 %v39
  %716 = vmatprep.subr.mxu0 %v44
  %717 = vmatpush1.msra.mxu0 %v43
  %718 = vmatprep.subr.mxu0 %v48
  %719 = vmatpush1.msra.mxu0 %v47
  %720 = vmatprep.subr.mxu0 %v52
  %721 = vmatpush1.msra.mxu0 %v51
  %722 = vmatprep.subr.mxu0 %v56
  %723 = vmatpush1.msra.mxu0 %v55
  %724 = vmatprep.subr.mxu0 %v60
  %725 = vmatpush1.msra.mxu0 %v59
  %726 = vmatprep.subr.mxu0 %v64
  %727 = vmatpush1.msra.mxu0 %v63
  %728 = vmatprep.subr.mxu0 %v68
  %729 = vmatpush1.msra.mxu0 %v67
  %730 = vmatprep.subr.mxu0 %v72
  %731 = vmatpush1.msra.mxu0 %v71
  %732 = vmatprep.subr.mxu0 %v76
  %733 = vmatpush1.msra.mxu0 %v75
  %734 = vmatprep.subr.mxu0 %v80
  %735 = vmatpush1.msra.mxu0 %v79
  %736 = vmatprep.subr.mxu0 %v84
  %737 = vmatpush1.msra.mxu0 %v83
  %738 = vmatprep.subr.mxu0 0.0
  %739 = vmatpush1.msra.mxu0 0.0
  %740 = vmatprep.subr.mxu0 0.0
  %741 = vmatpush1.msra.mxu0 0.0
  %742 = vmatprep.subr.mxu0 0.0
  %743 = vmatpush1.msra.mxu0 0.0
  %744 = vmatprep.subr.mxu0 0.0
  %745 = vmatpush1.msra.mxu0 0.0
  %746 = vmatprep.subr.mxu0 0.0
  %747 = vmatpush1.msra.mxu0 0.0
  %748 = vmatprep.subr.mxu0 0.0
  %749 = vmatpush1.msra.mxu0 0.0
  %750 = vmatprep.subr.mxu0 0.0
  %751 = vmatpush1.msra.mxu0 0.0
  %752 = vmatprep.subr.mxu0 0.0
  %753 = vmatpush1.msra.mxu0 0.0
  %754 = vmatprep.subr.mxu0 0.0
  %755 = vmatpush1.msra.mxu0 0.0
  %756 = vmatprep.subr.mxu0 0.0
  %757 = vmatpush1.msra.mxu0 0.0
  %758 = vmatprep.subr.mxu0 0.0
  %759 = vmatpush1.msra.mxu0 0.0
  %760 = vmatprep.subr.mxu0 0.0
  %761 = vmatpush1.msra.mxu0 0.0
  %762 = vmatprep.subr.mxu0 0.0
  %763 = vmatpush1.msra.mxu0 0.0
  %764 = vmatprep.subr.mxu0 0.0
  %765 = vmatpush1.msra.mxu0 0.0
  %766 = vmatprep.subr.mxu0 0.0
  %767 = vmatpush1.msra.mxu0 0.0
  %768 = vmatprep.subr.mxu0 0.0
  %769 = vmatpush1.msra.mxu0 0.0
  %770 = vmatprep.mubr.f32.mxu0 0.0
  %771 = vmatmul.mubr.f32.gmra.mrb[0].mxu0 %v623
  %v772 = vpop.f32.mrb[0].mxu0
  %v773 = vadd.f32 0.0, %v772
  %v774 = vpop.f32.mrb[0].mxu0
  %v775 = vadd.f32 0.0, %v774
  %776 = vdwg.mxu0
  %v777 = vadd.f32 %v631, %v702
  %v778 = vadd.f32 %v632, %v704
  %v779 = vadd.f32 %v633, %v773
  %v780 = vadd.f32 %v634, %v775
  %v781 = vxor.u32 %v777, 2147483648
  %v782 = vmul.f32 %v781, 1.442695
  %v783 = vpow.pop %v782
  %v784 = vadd.f32 %v783, 1.0
  %v785 = vrcp.pop %v784
  %v786 = vmul.f32 1.0, %v785
  %v787 = vxor.u32 %v778, 2147483648
  %v788 = vmul.f32 %v787, 1.442695
  %v789 = vpow.pop %v788
  %v790 = vadd.f32 %v789, 1.0
  %v791 = vrcp.pop %v790
  %v792 = vmul.f32 1.0, %v791
  %v793 = vtanh.pop %v779
  %v794 = vxor.u32 %v780, 2147483648
  %v795 = vmul.f32 %v794, 1.442695
  %v796 = vpow.pop %v795
  %v797 = vadd.f32 %v796, 1.0
  %v798 = vrcp.pop %v797
  %v799 = vmul.f32 1.0, %v798
  %v800 = vmul.f32 %v792, %v621
  %v801 = vmul.f32 %v786, %v793
  %v802 = vadd.f32 %v800, %v801
  %v803 = vtanh.pop %v802
  %v804 = vmul.f32 %v799, %v803
  %s805 = scalar_lea.vmem %s3, 24
  %806 = vst [vmem:[%s805] sm:$0xff] %v804
  %s807 = scalar_lea.vmem %s0, 128
  %v808 = vld [vmem:[%s807] sm:$0xff]
  %v809 = vld [vmem:[%s807 + $0x8] sm:$0xff]
  %v810 = vld [vmem:[%s807 + $0x10] sm:$0xff]
  %v811 = vld [vmem:[%s807 + $0x18] sm:$0xff]
  %v812 = vadd.f32 %v808, %v17
  %v813 = vadd.f32 %v809, %v18
  %v814 = vadd.f32 %v810, %v19
  %v815 = vadd.f32 %v811, %v20
  %816 = vmatprep.subr.mxu0 %v22
  %817 = vmatpush1.msra.mxu0 %v21
  %818 = vmatprep.subr.mxu0 %v26
  %819 = vmatpush1.msra.mxu0 %v25
  %820 = vmatprep.subr.mxu0 %v30
  %821 = vmatpush1.msra.mxu0 %v29
  %822 = vmatprep.subr.mxu0 %v34
  %823 = vmatpush1.msra.mxu0 %v33
  %824 = vmatprep.subr.mxu0 %v38
  %825 = vmatpush1.msra.mxu0 %v37
  %826 = vmatprep.subr.mxu0 %v42
  %827 = vmatpush1.msra.mxu0 %v41
  %828 = vmatprep.subr.mxu0 %v46
  %829 = vmatpush1.msra.mxu0 %v45
  %830 = vmatprep.subr.mxu0 %v50
  %831 = vmatpush1.msra.mxu0 %v49
  %832 = vmatprep.subr.mxu0 %v54
  %833 = vmatpush1.msra.mxu0 %v53
  %834 = vmatprep.subr.mxu0 %v58
  %835 = vmatpush1.msra.mxu0 %v57
  %836 = vmatprep.subr.mxu0 %v62
  %837 = vmatpush1.msra.mxu0 %v61
  %838 = vmatprep.subr.mxu0 %v66
  %839 = vmatpush1.msra.mxu0 %v65
  %840 = vmatprep.subr.mxu0 %v70
  %841 = vmatpush1.msra.mxu0 %v69
  %842 = vmatprep.subr.mxu0 %v74
  %843 = vmatpush1.msra.mxu0 %v73
  %844 = vmatprep.subr.mxu0 %v78
  %845 = vmatpush1.msra.mxu0 %v77
  %846 = vmatprep.subr.mxu0 %v82
  %847 = vmatpush1.msra.mxu0 %v81
  %848 = vmatprep.subr.mxu0 0.0
  %849 = vmatpush1.msra.mxu0 0.0
  %850 = vmatprep.subr.mxu0 0.0
  %851 = vmatpush1.msra.mxu0 0.0
  %852 = vmatprep.subr.mxu0 0.0
  %853 = vmatpush1.msra.mxu0 0.0
  %854 = vmatprep.subr.mxu0 0.0
  %855 = vmatpush1.msra.mxu0 0.0
  %856 = vmatprep.subr.mxu0 0.0
  %857 = vmatpush1.msra.mxu0 0.0
  %858 = vmatprep.subr.mxu0 0.0
  %859 = vmatpush1.msra.mxu0 0.0
  %860 = vmatprep.subr.mxu0 0.0
  %861 = vmatpush1.msra.mxu0 0.0
  %862 = vmatprep.subr.mxu0 0.0
  %863 = vmatpush1.msra.mxu0 0.0
  %864 = vmatprep.subr.mxu0 0.0
  %865 = vmatpush1.msra.mxu0 0.0
  %866 = vmatprep.subr.mxu0 0.0
  %867 = vmatpush1.msra.mxu0 0.0
  %868 = vmatprep.subr.mxu0 0.0
  %869 = vmatpush1.msra.mxu0 0.0
  %870 = vmatprep.subr.mxu0 0.0
  %871 = vmatpush1.msra.mxu0 0.0
  %872 = vmatprep.subr.mxu0 0.0
  %873 = vmatpush1.msra.mxu0 0.0
  %874 = vmatprep.subr.mxu0 0.0
  %875 = vmatpush1.msra.mxu0 0.0
  %876 = vmatprep.subr.mxu0 0.0
  %877 = vmatpush1.msra.mxu0 0.0
  %878 = vmatprep.subr.mxu0 0.0
  %879 = vmatpush1.msra.mxu0 0.0
  %880 = vmatprep.mubr.f32.mxu0 0.0
  %881 = vmatmul.mubr.f32.gmra.mrb[0].mxu0 %v804
  %v882 = vpop.f32.mrb[0].mxu0
  %v883 = vadd.f32 0.0, %v882
  %v884 = vpop.f32.mrb[0].mxu0
  %v885 = vadd.f32 0.0, %v884
  %886 = vdwg.mxu0
  %887 = vmatprep.subr.mxu0 %v24
  %888 = vmatpush1.msra.mxu0 %v23
  %889 = vmatprep.subr.mxu0 %v28
  %890 = vmatpush1.msra.mxu0 %v27
  %891 = vmatprep.subr.mxu0 %v32
  %892 = vmatpush1.msra.mxu0 %v31
  %893 = vmatprep.subr.mxu0 %v36
  %894 = vmatpush1.msra.mxu0 %v35
  %895 = vmatprep.subr.mxu0 %v40
  %896 = vmatpush1.msra.mxu0 %v39
  %897 = vmatprep.subr.mxu0 %v44
  %898 = vmatpush1.msra.mxu0 %v43
  %899 = vmatprep.subr.mxu0 %v48
  %900 = vmatpush1.msra.mxu0 %v47
  %901 = vmatprep.subr.mxu0 %v52
  %902 = vmatpush1.msra.mxu0 %v51
  %903 = vmatprep.subr.mxu0 %v56
  %904 = vmatpush1.msra.mxu0 %v55
  %905 = vmatprep.subr.mxu0 %v60
  %906 = vmatpush1.msra.mxu0 %v59
  %907 = vmatprep.subr.mxu0 %v64
  %908 = vmatpush1.msra.mxu0 %v63
  %909 = vmatprep.subr.mxu0 %v68
  %910 = vmatpush1.msra.mxu0 %v67
  %911 = vmatprep.subr.mxu0 %v72
  %912 = vmatpush1.msra.mxu0 %v71
  %913 = vmatprep.subr.mxu0 %v76
  %914 = vmatpush1.msra.mxu0 %v75
  %915 = vmatprep.subr.mxu0 %v80
  %916 = vmatpush1.msra.mxu0 %v79
  %917 = vmatprep.subr.mxu0 %v84
  %918 = vmatpush1.msra.mxu0 %v83
  %919 = vmatprep.subr.mxu0 0.0
  %920 = vmatpush1.msra.mxu0 0.0
  %921 = vmatprep.subr.mxu0 0.0
  %922 = vmatpush1.msra.mxu0 0.0
  %923 = vmatprep.subr.mxu0 0.0
  %924 = vmatpush1.msra.mxu0 0.0
  %925 = vmatprep.subr.mxu0 0.0
  %926 = vmatpush1.msra.mxu0 0.0
  %927 = vmatprep.subr.mxu0 0.0
  %928 = vmatpush1.msra.mxu0 0.0
  %929 = vmatprep.subr.mxu0 0.0
  %930 = vmatpush1.msra.mxu0 0.0
  %931 = vmatprep.subr.mxu0 0.0
  %932 = vmatpush1.msra.mxu0 0.0
  %933 = vmatprep.subr.mxu0 0.0
  %934 = vmatpush1.msra.mxu0 0.0
  %935 = vmatprep.subr.mxu0 0.0
  %936 = vmatpush1.msra.mxu0 0.0
  %937 = vmatprep.subr.mxu0 0.0
  %938 = vmatpush1.msra.mxu0 0.0
  %939 = vmatprep.subr.mxu0 0.0
  %940 = vmatpush1.msra.mxu0 0.0
  %941 = vmatprep.subr.mxu0 0.0
  %942 = vmatpush1.msra.mxu0 0.0
  %943 = vmatprep.subr.mxu0 0.0
  %944 = vmatpush1.msra.mxu0 0.0
  %945 = vmatprep.subr.mxu0 0.0
  %946 = vmatpush1.msra.mxu0 0.0
  %947 = vmatprep.subr.mxu0 0.0
  %948 = vmatpush1.msra.mxu0 0.0
  %949 = vmatprep.subr.mxu0 0.0
  %950 = vmatpush1.msra.mxu0 0.0
  %951 = vmatprep.mubr.f32.mxu0 0.0
  %952 = vmatmul.mubr.f32.gmra.mrb[0].mxu0 %v804
  %v953 = vpop.f32.mrb[0].mxu0
  %v954 = vadd.f32 0.0, %v953
  %v955 = vpop.f32.mrb[0].mxu0
  %v956 = vadd.f32 0.0, %v955
  %957 = vdwg.mxu0
  %v958 = vadd.f32 %v812, %v883
  %v959 = vadd.f32 %v813, %v885
  %v960 = vadd.f32 %v814, %v954
  %v961 = vadd.f32 %v815, %v956
  %v962 = vxor.u32 %v958, 2147483648
  %v963 = vmul.f32 %v962, 1.442695
  %v964 = vpow.pop %v963
  %v965 = vadd.f32 %v964, 1.0
  %v966 = vrcp.pop %v965
  %v967 = vmul.f32 1.0, %v966
  %v968 = vxor.u32 %v959, 2147483648
  %v969 = vmul.f32 %v968, 1.442695
  %v970 = vpow.pop %v969
  %v971 = vadd.f32 %v970, 1.0
  %v972 = vrcp.pop %v971
  %v973 = vmul.f32 1.0, %v972
  %v974 = vtanh.pop %v960
  %v975 = vxor.u32 %v961, 2147483648
  %v976 = vmul.f32 %v975, 1.442695
  %v977 = vpow.pop %v976
  %v978 = vadd.f32 %v977, 1.0
  %v979 = vrcp.pop %v978
  %v980 = vmul.f32 1.0, %v979
  %v981 = vmul.f32 %v973, %v802
  %v982 = vmul.f32 %v967, %v974
  %v983 = vadd.f32 %v981, %v982
  %v984 = vtanh.pop %v983
  %v985 = vmul.f32 %v980, %v984
  %s986 = scalar_lea.vmem %s3, 32
  %987 = vst [vmem:[%s986] sm:$0xff] %v985
  %s988 = scalar_lea.vmem %s0, 160
  %v989 = vld [vmem:[%s988] sm:$0xff]
  %v990 = vld [vmem:[%s988 + $0x8] sm:$0xff]
  %v991 = vld [vmem:[%s988 + $0x10] sm:$0xff]
  %v992 = vld [vmem:[%s988 + $0x18] sm:$0xff]
  %v993 = vadd.f32 %v989, %v17
  %v994 = vadd.f32 %v990, %v18
  %v995 = vadd.f32 %v991, %v19
  %v996 = vadd.f32 %v992, %v20
  %997 = vmatprep.subr.mxu0 %v22
  %998 = vmatpush1.msra.mxu0 %v21
  %999 = vmatprep.subr.mxu0 %v26
  %1000 = vmatpush1.msra.mxu0 %v25
  %1001 = vmatprep.subr.mxu0 %v30
  %1002 = vmatpush1.msra.mxu0 %v29
  %1003 = vmatprep.subr.mxu0 %v34
  %1004 = vmatpush1.msra.mxu0 %v33
  %1005 = vmatprep.subr.mxu0 %v38
  %1006 = vmatpush1.msra.mxu0 %v37
  %1007 = vmatprep.subr.mxu0 %v42
  %1008 = vmatpush1.msra.mxu0 %v41
  %1009 = vmatprep.subr.mxu0 %v46
  %1010 = vmatpush1.msra.mxu0 %v45
  %1011 = vmatprep.subr.mxu0 %v50
  %1012 = vmatpush1.msra.mxu0 %v49
  %1013 = vmatprep.subr.mxu0 %v54
  %1014 = vmatpush1.msra.mxu0 %v53
  %1015 = vmatprep.subr.mxu0 %v58
  %1016 = vmatpush1.msra.mxu0 %v57
  %1017 = vmatprep.subr.mxu0 %v62
  %1018 = vmatpush1.msra.mxu0 %v61
  %1019 = vmatprep.subr.mxu0 %v66
  %1020 = vmatpush1.msra.mxu0 %v65
  %1021 = vmatprep.subr.mxu0 %v70
  %1022 = vmatpush1.msra.mxu0 %v69
  %1023 = vmatprep.subr.mxu0 %v74
  %1024 = vmatpush1.msra.mxu0 %v73
  %1025 = vmatprep.subr.mxu0 %v78
  %1026 = vmatpush1.msra.mxu0 %v77
  %1027 = vmatprep.subr.mxu0 %v82
  %1028 = vmatpush1.msra.mxu0 %v81
  %1029 = vmatprep.subr.mxu0 0.0
  %1030 = vmatpush1.msra.mxu0 0.0
  %1031 = vmatprep.subr.mxu0 0.0
  %1032 = vmatpush1.msra.mxu0 0.0
  %1033 = vmatprep.subr.mxu0 0.0
  %1034 = vmatpush1.msra.mxu0 0.0
  %1035 = vmatprep.subr.mxu0 0.0
  %1036 = vmatpush1.msra.mxu0 0.0
  %1037 = vmatprep.subr.mxu0 0.0
  %1038 = vmatpush1.msra.mxu0 0.0
  %1039 = vmatprep.subr.mxu0 0.0
  %1040 = vmatpush1.msra.mxu0 0.0
  %1041 = vmatprep.subr.mxu0 0.0
  %1042 = vmatpush1.msra.mxu0 0.0
  %1043 = vmatprep.subr.mxu0 0.0
  %1044 = vmatpush1.msra.mxu0 0.0
  %1045 = vmatprep.subr.mxu0 0.0
  %1046 = vmatpush1.msra.mxu0 0.0
  %1047 = vmatprep.subr.mxu0 0.0
  %1048 = vmatpush1.msra.mxu0 0.0
  %1049 = vmatprep.subr.mxu0 0.0
  %1050 = vmatpush1.msra.mxu0 0.0
  %1051 = vmatprep.subr.mxu0 0.0
  %1052 = vmatpush1.msra.mxu0 0.0
  %1053 = vmatprep.subr.mxu0 0.0
  %1054 = vmatpush1.msra.mxu0 0.0
  %1055 = vmatprep.subr.mxu0 0.0
  %1056 = vmatpush1.msra.mxu0 0.0
  %1057 = vmatprep.subr.mxu0 0.0
  %1058 = vmatpush1.msra.mxu0 0.0
  %1059 = vmatprep.subr.mxu0 0.0
  %1060 = vmatpush1.msra.mxu0 0.0
  %1061 = vmatprep.mubr.f32.mxu0 0.0
  %1062 = vmatmul.mubr.f32.gmra.mrb[0].mxu0 %v985
  %v1063 = vpop.f32.mrb[0].mxu0
  %v1064 = vadd.f32 0.0, %v1063
  %v1065 = vpop.f32.mrb[0].mxu0
  %v1066 = vadd.f32 0.0, %v1065
  %1067 = vdwg.mxu0
  %1068 = vmatprep.subr.mxu0 %v24
  %1069 = vmatpush1.msra.mxu0 %v23
  %1070 = vmatprep.subr.mxu0 %v28
  %1071 = vmatpush1.msra.mxu0 %v27
  %1072 = vmatprep.subr.mxu0 %v32
  %1073 = vmatpush1.msra.mxu0 %v31
  %1074 = vmatprep.subr.mxu0 %v36
  %1075 = vmatpush1.msra.mxu0 %v35
  %1076 = vmatprep.subr.mxu0 %v40
  %1077 = vmatpush1.msra.mxu0 %v39
  %1078 = vmatprep.subr.mxu0 %v44
  %1079 = vmatpush1.msra.mxu0 %v43
  %1080 = vmatprep.subr.mxu0 %v48
  %1081 = vmatpush1.msra.mxu0 %v47
  %1082 = vmatprep.subr.mxu0 %v52
  %1083 = vmatpush1.msra.mxu0 %v51
  %1084 = vmatprep.subr.mxu0 %v56
  %1085 = vmatpush1.msra.mxu0 %v55
  %1086 = vmatprep.subr.mxu0 %v60
  %1087 = vmatpush1.msra.mxu0 %v59
  %1088 = vmatprep.subr.mxu0 %v64
  %1089 = vmatpush1.msra.mxu0 %v63
  %1090 = vmatprep.subr.mxu0 %v68
  %1091 = vmatpush1.msra.mxu0 %v67
  %1092 = vmatprep.subr.mxu0 %v72
  %1093 = vmatpush1.msra.mxu0 %v71
  %1094 = vmatprep.subr.mxu0 %v76
  %1095 = vmatpush1.msra.mxu0 %v75
  %1096 = vmatprep.subr.mxu0 %v80
  %1097 = vmatpush1.msra.mxu0 %v79
  %1098 = vmatprep.subr.mxu0 %v84
  %1099 = vmatpush1.msra.mxu0 %v83
  %1100 = vmatprep.subr.mxu0 0.0
  %1101 = vmatpush1.msra.mxu0 0.0
  %1102 = vmatprep.subr.mxu0 0.0
  %1103 = vmatpush1.msra.mxu0 0.0
  %1104 = vmatprep.subr.mxu0 0.0
  %1105 = vmatpush1.msra.mxu0 0.0
  %1106 = vmatprep.subr.mxu0 0.0
  %1107 = vmatpush1.msra.mxu0 0.0
  %1108 = vmatprep.subr.mxu0 0.0
  %1109 = vmatpush1.msra.mxu0 0.0
  %1110 = vmatprep.subr.mxu0 0.0
  %1111 = vmatpush1.msra.mxu0 0.0
  %1112 = vmatprep.subr.mxu0 0.0
  %1113 = vmatpush1.msra.mxu0 0.0
  %1114 = vmatprep.subr.mxu0 0.0
  %1115 = vmatpush1.msra.mxu0 0.0
  %1116 = vmatprep.subr.mxu0 0.0
  %1117 = vmatpush1.msra.mxu0 0.0
  %1118 = vmatprep.subr.mxu0 0.0
  %1119 = vmatpush1.msra.mxu0 0.0
  %1120 = vmatprep.subr.mxu0 0.0
  %1121 = vmatpush1.msra.mxu0 0.0
  %1122 = vmatprep.subr.mxu0 0.0
  %1123 = vmatpush1.msra.mxu0 0.0
  %1124 = vmatprep.subr.mxu0 0.0
  %1125 = vmatpush1.msra.mxu0 0.0
  %1126 = vmatprep.subr.mxu0 0.0
  %1127 = vmatpush1.msra.mxu0 0.0
  %1128 = vmatprep.subr.mxu0 0.0
  %1129 = vmatpush1.msra.mxu0 0.0
  %1130 = vmatprep.subr.mxu0 0.0
  %1131 = vmatpush1.msra.mxu0 0.0
  %1132 = vmatprep.mubr.f32.mxu0 0.0
  %1133 = vmatmul.mubr.f32.gmra.mrb[0].mxu0 %v985
  %v1134 = vpop.f32.mrb[0].mxu0
  %v1135 = vadd.f32 0.0, %v1134
  %v1136 = vpop.f32.mrb[0].mxu0
  %v1137 = vadd.f32 0.0, %v1136
  %1138 = vdwg.mxu0
  %v1139 = vadd.f32 %v993, %v1064
  %v1140 = vadd.f32 %v994, %v1066
  %v1141 = vadd.f32 %v995, %v1135
  %v1142 = vadd.f32 %v996, %v1137
  %v1143 = vxor.u32 %v1139, 2147483648
  %v1144 = vmul.f32 %v1143, 1.442695
  %v1145 = vpow.pop %v1144
  %v1146 = vadd.f32 %v1145, 1.0
  %v1147 = vrcp.pop %v1146
  %v1148 = vmul.f32 1.0, %v1147
  %v1149 = vxor.u32 %v1140, 2147483648
  %v1150 = vmul.f32 %v1149, 1.442695
  %v1151 = vpow.pop %v1150
  %v1152 = vadd.f32 %v1151, 1.0
  %v1153 = vrcp.pop %v1152
  %v1154 = vmul.f32 1.0, %v1153
  %v1155 = vtanh.pop %v1141
  %v1156 = vxor.u32 %v1142, 2147483648
  %v1157 = vmul.f32 %v1156, 1.442695
  %v1158 = vpow.pop %v1157
  %v1159 = vadd.f32 %v1158, 1.0
  %v1160 = vrcp.pop %v1159
  %v1161 = vmul.f32 1.0, %v1160
  %v1162 = vmul.f32 %v1154, %v983
  %v1163 = vmul.f32 %v1148, %v1155
  %v1164 = vadd.f32 %v1162, %v1163
  %v1165 = vtanh.pop %v1164
  %v1166 = vmul.f32 %v1161, %v1165
  %s1167 = scalar_lea.vmem %s3, 40
  %1168 = vst [vmem:[%s1167] sm:$0xff] %v1166
  %s1169 = scalar_lea.vmem %s0, 192
  %v1170 = vld [vmem:[%s1169] sm:$0xff]
  %v1171 = vld [vmem:[%s1169 + $0x8] sm:$0xff]
  %v1172 = vld [vmem:[%s1169 + $0x10] sm:$0xff]
  %v1173 = vld [vmem:[%s1169 + $0x18] sm:$0xff]
  %v1174 = vadd.f32 %v1170, %v17
  %v1175 = vadd.f32 %v1171, %v18
  %v1176 = vadd.f32 %v1172, %v19
  %v1177 = vadd.f32 %v1173, %v20
  %1178 = vmatprep.subr.mxu0 %v22
  %1179 = vmatpush1.msra.mxu0 %v21
  %1180 = vmatprep.subr.mxu0 %v26
  %1181 = vmatpush1.msra.mxu0 %v25
  %1182 = vmatprep.subr.mxu0 %v30
  %1183 = vmatpush1.msra.mxu0 %v29
  %1184 = vmatprep.subr.mxu0 %v34
  %1185 = vmatpush1.msra.mxu0 %v33
  %1186 = vmatprep.subr.mxu0 %v38
  %1187 = vmatpush1.msra.mxu0 %v37
  %1188 = vmatprep.subr.mxu0 %v42
  %1189 = vmatpush1.msra.mxu0 %v41
  %1190 = vmatprep.subr.mxu0 %v46
  %1191 = vmatpush1.msra.mxu0 %v45
  %1192 = vmatprep.subr.mxu0 %v50
  %1193 = vmatpush1.msra.mxu0 %v49
  %1194 = vmatprep.subr.mxu0 %v54
  %1195 = vmatpush1.msra.mxu0 %v53
  %1196 = vmatprep.subr.mxu0 %v58
  %1197 = vmatpush1.msra.mxu0 %v57
  %1198 = vmatprep.subr.mxu0 %v62
  %1199 = vmatpush1.msra.mxu0 %v61
  %1200 = vmatprep.subr.mxu0 %v66
  %1201 = vmatpush1.msra.mxu0 %v65
  %1202 = vmatprep.subr.mxu0 %v70
  %1203 = vmatpush1.msra.mxu0 %v69
  %1204 = vmatprep.subr.mxu0 %v74
  %1205 = vmatpush1.msra.mxu0 %v73
  %1206 = vmatprep.subr.mxu0 %v78
  %1207 = vmatpush1.msra.mxu0 %v77
  %1208 = vmatprep.subr.mxu0 %v82
  %1209 = vmatpush1.msra.mxu0 %v81
  %1210 = vmatprep.subr.mxu0 0.0
  %1211 = vmatpush1.msra.mxu0 0.0
  %1212 = vmatprep.subr.mxu0 0.0
  %1213 = vmatpush1.msra.mxu0 0.0
  %1214 = vmatprep.subr.mxu0 0.0
  %1215 = vmatpush1.msra.mxu0 0.0
  %1216 = vmatprep.subr.mxu0 0.0
  %1217 = vmatpush1.msra.mxu0 0.0
  %1218 = vmatprep.subr.mxu0 0.0
  %1219 = vmatpush1.msra.mxu0 0.0
  %1220 = vmatprep.subr.mxu0 0.0
  %1221 = vmatpush1.msra.mxu0 0.0
  %1222 = vmatprep.subr.mxu0 0.0
  %1223 = vmatpush1.msra.mxu0 0.0
  %1224 = vmatprep.subr.mxu0 0.0
  %1225 = vmatpush1.msra.mxu0 0.0
  %1226 = vmatprep.subr.mxu0 0.0
  %1227 = vmatpush1.msra.mxu0 0.0
  %1228 = vmatprep.subr.mxu0 0.0
  %1229 = vmatpush1.msra.mxu0 0.0
  %1230 = vmatprep.subr.mxu0 0.0
  %1231 = vmatpush1.msra.mxu0 0.0
  %1232 = vmatprep.subr.mxu0 0.0
  %1233 = vmatpush1.msra.mxu0 0.0
  %1234 = vmatprep.subr.mxu0 0.0
  %1235 = vmatpush1.msra.mxu0 0.0
  %1236 = vmatprep.subr.mxu0 0.0
  %1237 = vmatpush1.msra.mxu0 0.0
  %1238 = vmatprep.subr.mxu0 0.0
  %1239 = vmatpush1.msra.mxu0 0.0
  %1240 = vmatprep.subr.mxu0 0.0
  %1241 = vmatpush1.msra.mxu0 0.0
  %1242 = vmatprep.mubr.f32.mxu0 0.0
  %1243 = vmatmul.mubr.f32.gmra.mrb[0].mxu0 %v1166
  %v1244 = vpop.f32.mrb[0].mxu0
  %v1245 = vadd.f32 0.0, %v1244
  %v1246 = vpop.f32.mrb[0].mxu0
  %v1247 = vadd.f32 0.0, %v1246
  %1248 = vdwg.mxu0
  %1249 = vmatprep.subr.mxu0 %v24
  %1250 = vmatpush1.msra.mxu0 %v23
  %1251 = vmatprep.subr.mxu0 %v28
  %1252 = vmatpush1.msra.mxu0 %v27
  %1253 = vmatprep.subr.mxu0 %v32
  %1254 = vmatpush1.msra.mxu0 %v31
  %1255 = vmatprep.subr.mxu0 %v36
  %1256 = vmatpush1.msra.mxu0 %v35
  %1257 = vmatprep.subr.mxu0 %v40
  %1258 = vmatpush1.msra.mxu0 %v39
  %1259 = vmatprep.subr.mxu0 %v44
  %1260 = vmatpush1.msra.mxu0 %v43
  %1261 = vmatprep.subr.mxu0 %v48
  %1262 = vmatpush1.msra.mxu0 %v47
  %1263 = vmatprep.subr.mxu0 %v52
  %1264 = vmatpush1.msra.mxu0 %v51
  %1265 = vmatprep.subr.mxu0 %v56
  %1266 = vmatpush1.msra.mxu0 %v55
  %1267 = vmatprep.subr.mxu0 %v60
  %1268 = vmatpush1.msra.mxu0 %v59
  %1269 = vmatprep.subr.mxu0 %v64
  %1270 = vmatpush1.msra.mxu0 %v63
  %1271 = vmatprep.subr.mxu0 %v68
  %1272 = vmatpush1.msra.mxu0 %v67
  %1273 = vmatprep.subr.mxu0 %v72
  %1274 = vmatpush1.msra.mxu0 %v71
  %1275 = vmatprep.subr.mxu0 %v76
  %1276 = vmatpush1.msra.mxu0 %v75
  %1277 = vmatprep.subr.mxu0 %v80
  %1278 = vmatpush1.msra.mxu0 %v79
  %1279 = vmatprep.subr.mxu0 %v84
  %1280 = vmatpush1.msra.mxu0 %v83
  %1281 = vmatprep.subr.mxu0 0.0
  %1282 = vmatpush1.msra.mxu0 0.0
  %1283 = vmatprep.subr.mxu0 0.0
  %1284 = vmatpush1.msra.mxu0 0.0
  %1285 = vmatprep.subr.mxu0 0.0
  %1286 = vmatpush1.msra.mxu0 0.0
  %1287 = vmatprep.subr.mxu0 0.0
  %1288 = vmatpush1.msra.mxu0 0.0
  %1289 = vmatprep.subr.mxu0 0.0
  %1290 = vmatpush1.msra.mxu0 0.0
  %1291 = vmatprep.subr.mxu0 0.0
  %1292 = vmatpush1.msra.mxu0 0.0
  %1293 = vmatprep.subr.mxu0 0.0
  %1294 = vmatpush1.msra.mxu0 0.0
  %1295 = vmatprep.subr.mxu0 0.0
  %1296 = vmatpush1.msra.mxu0 0.0
  %1297 = vmatprep.subr.mxu0 0.0
  %1298 = vmatpush1.msra.mxu0 0.0
  %1299 = vmatprep.subr.mxu0 0.0
  %1300 = vmatpush1.msra.mxu0 0.0
  %1301 = vmatprep.subr.mxu0 0.0
  %1302 = vmatpush1.msra.mxu0 0.0
  %1303 = vmatprep.subr.mxu0 0.0
  %1304 = vmatpush1.msra.mxu0 0.0
  %1305 = vmatprep.subr.mxu0 0.0
  %1306 = vmatpush1.msra.mxu0 0.0
  %1307 = vmatprep.subr.mxu0 0.0
  %1308 = vmatpush1.msra.mxu0 0.0
  %1309 = vmatprep.subr.mxu0 0.0
  %1310 = vmatpush1.msra.mxu0 0.0
  %1311 = vmatprep.subr.mxu0 0.0
  %1312 = vmatpush1.msra.mxu0 0.0
  %1313 = vmatprep.mubr.f32.mxu0 0.0
  %1314 = vmatmul.mubr.f32.gmra.mrb[0].mxu0 %v1166
  %v1315 = vpop.f32.mrb[0].mxu0
  %v1316 = vadd.f32 0.0, %v1315
  %v1317 = vpop.f32.mrb[0].mxu0
  %v1318 = vadd.f32 0.0, %v1317
  %1319 = vdwg.mxu0
  %v1320 = vadd.f32 %v1174, %v1245
  %v1321 = vadd.f32 %v1175, %v1247
  %v1322 = vadd.f32 %v1176, %v1316
  %v1323 = vadd.f32 %v1177, %v1318
  %v1324 = vxor.u32 %v1320, 2147483648
  %v1325 = vmul.f32 %v1324, 1.442695
  %v1326 = vpow.pop %v1325
  %v1327 = vadd.f32 %v1326, 1.0
  %v1328 = vrcp.pop %v1327
  %v1329 = vmul.f32 1.0, %v1328
  %v1330 = vxor.u32 %v1321, 2147483648
  %v1331 = vmul.f32 %v1330, 1.442695
  %v1332 = vpow.pop %v1331
  %v1333 = vadd.f32 %v1332, 1.0
  %v1334 = vrcp.pop %v1333
  %v1335 = vmul.f32 1.0, %v1334
  %v1336 = vtanh.pop %v1322
  %v1337 = vxor.u32 %v1323, 2147483648
  %v1338 = vmul.f32 %v1337, 1.442695
  %v1339 = vpow.pop %v1338
  %v1340 = vadd.f32 %v1339, 1.0
  %v1341 = vrcp.pop %v1340
  %v1342 = vmul.f32 1.0, %v1341
  %v1343 = vmul.f32 %v1335, %v1164
  %v1344 = vmul.f32 %v1329, %v1336
  %v1345 = vadd.f32 %v1343, %v1344
  %v1346 = vtanh.pop %v1345
  %v1347 = vmul.f32 %v1342, %v1346
  %s1348 = scalar_lea.vmem %s3, 48
  %1349 = vst [vmem:[%s1348] sm:$0xff] %v1347
  %s1350 = scalar_lea.vmem %s0, 224
  %v1351 = vld [vmem:[%s1350] sm:$0xff]
  %v1352 = vld [vmem:[%s1350 + $0x8] sm:$0xff]
  %v1353 = vld [vmem:[%s1350 + $0x10] sm:$0xff]
  %v1354 = vld [vmem:[%s1350 + $0x18] sm:$0xff]
  %v1355 = vadd.f32 %v1351, %v17
  %v1356 = vadd.f32 %v1352, %v18
  %v1357 = vadd.f32 %v1353, %v19
  %v1358 = vadd.f32 %v1354, %v20
  %1359 = vmatprep.subr.mxu0 %v22
  %1360 = vmatpush1.msra.mxu0 %v21
  %1361 = vmatprep.subr.mxu0 %v26
  %1362 = vmatpush1.msra.mxu0 %v25
  %1363 = vmatprep.subr.mxu0 %v30
  %1364 = vmatpush1.msra.mxu0 %v29
  %1365 = vmatprep.subr.mxu0 %v34
  %1366 = vmatpush1.msra.mxu0 %v33
  %1367 = vmatprep.subr.mxu0 %v38
  %1368 = vmatpush1.msra.mxu0 %v37
  %1369 = vmatprep.subr.mxu0 %v42
  %1370 = vmatpush1.msra.mxu0 %v41
  %1371 = vmatprep.subr.mxu0 %v46
  %1372 = vmatpush1.msra.mxu0 %v45
  %1373 = vmatprep.subr.mxu0 %v50
  %1374 = vmatpush1.msra.mxu0 %v49
  %1375 = vmatprep.subr.mxu0 %v54
  %1376 = vmatpush1.msra.mxu0 %v53
  %1377 = vmatprep.subr.mxu0 %v58
  %1378 = vmatpush1.msra.mxu0 %v57
  %1379 = vmatprep.subr.mxu0 %v62
  %1380 = vmatpush1.msra.mxu0 %v61
  %1381 = vmatprep.subr.mxu0 %v66
  %1382 = vmatpush1.msra.mxu0 %v65
  %1383 = vmatprep.subr.mxu0 %v70
  %1384 = vmatpush1.msra.mxu0 %v69
  %1385 = vmatprep.subr.mxu0 %v74
  %1386 = vmatpush1.msra.mxu0 %v73
  %1387 = vmatprep.subr.mxu0 %v78
  %1388 = vmatpush1.msra.mxu0 %v77
  %1389 = vmatprep.subr.mxu0 %v82
  %1390 = vmatpush1.msra.mxu0 %v81
  %1391 = vmatprep.subr.mxu0 0.0
  %1392 = vmatpush1.msra.mxu0 0.0
  %1393 = vmatprep.subr.mxu0 0.0
  %1394 = vmatpush1.msra.mxu0 0.0
  %1395 = vmatprep.subr.mxu0 0.0
  %1396 = vmatpush1.msra.mxu0 0.0
  %1397 = vmatprep.subr.mxu0 0.0
  %1398 = vmatpush1.msra.mxu0 0.0
  %1399 = vmatprep.subr.mxu0 0.0
  %1400 = vmatpush1.msra.mxu0 0.0
  %1401 = vmatprep.subr.mxu0 0.0
  %1402 = vmatpush1.msra.mxu0 0.0
  %1403 = vmatprep.subr.mxu0 0.0
  %1404 = vmatpush1.msra.mxu0 0.0
  %1405 = vmatprep.subr.mxu0 0.0
  %1406 = vmatpush1.msra.mxu0 0.0
  %1407 = vmatprep.subr.mxu0 0.0
  %1408 = vmatpush1.msra.mxu0 0.0
  %1409 = vmatprep.subr.mxu0 0.0
  %1410 = vmatpush1.msra.mxu0 0.0
  %1411 = vmatprep.subr.mxu0 0.0
  %1412 = vmatpush1.msra.mxu0 0.0
  %1413 = vmatprep.subr.mxu0 0.0
  %1414 = vmatpush1.msra.mxu0 0.0
  %1415 = vmatprep.subr.mxu0 0.0
  %1416 = vmatpush1.msra.mxu0 0.0
  %1417 = vmatprep.subr.mxu0 0.0
  %1418 = vmatpush1.msra.mxu0 0.0
  %1419 = vmatprep.subr.mxu0 0.0
  %1420 = vmatpush1.msra.mxu0 0.0
  %1421 = vmatprep.subr.mxu0 0.0
  %1422 = vmatpush1.msra.mxu0 0.0
  %1423 = vmatprep.mubr.f32.mxu0 0.0
  %1424 = vmatmul.mubr.f32.gmra.mrb[0].mxu0 %v1347
  %v1425 = vpop.f32.mrb[0].mxu0
  %v1426 = vadd.f32 0.0, %v1425
  %v1427 = vpop.f32.mrb[0].mxu0
  %v1428 = vadd.f32 0.0, %v1427
  %1429 = vdwg.mxu0
  %1430 = vmatprep.subr.mxu0 %v24
  %1431 = vmatpush1.msra.mxu0 %v23
  %1432 = vmatprep.subr.mxu0 %v28
  %1433 = vmatpush1.msra.mxu0 %v27
  %1434 = vmatprep.subr.mxu0 %v32
  %1435 = vmatpush1.msra.mxu0 %v31
  %1436 = vmatprep.subr.mxu0 %v36
  %1437 = vmatpush1.msra.mxu0 %v35
  %1438 = vmatprep.subr.mxu0 %v40
  %1439 = vmatpush1.msra.mxu0 %v39
  %1440 = vmatprep.subr.mxu0 %v44
  %1441 = vmatpush1.msra.mxu0 %v43
  %1442 = vmatprep.subr.mxu0 %v48
  %1443 = vmatpush1.msra.mxu0 %v47
  %1444 = vmatprep.subr.mxu0 %v52
  %1445 = vmatpush1.msra.mxu0 %v51
  %1446 = vmatprep.subr.mxu0 %v56
  %1447 = vmatpush1.msra.mxu0 %v55
  %1448 = vmatprep.subr.mxu0 %v60
  %1449 = vmatpush1.msra.mxu0 %v59
  %1450 = vmatprep.subr.mxu0 %v64
  %1451 = vmatpush1.msra.mxu0 %v63
  %1452 = vmatprep.subr.mxu0 %v68
  %1453 = vmatpush1.msra.mxu0 %v67
  %1454 = vmatprep.subr.mxu0 %v72
  %1455 = vmatpush1.msra.mxu0 %v71
  %1456 = vmatprep.subr.mxu0 %v76
  %1457 = vmatpush1.msra.mxu0 %v75
  %1458 = vmatprep.subr.mxu0 %v80
  %1459 = vmatpush1.msra.mxu0 %v79
  %1460 = vmatprep.subr.mxu0 %v84
  %1461 = vmatpush1.msra.mxu0 %v83
  %1462 = vmatprep.subr.mxu0 0.0
  %1463 = vmatpush1.msra.mxu0 0.0
  %1464 = vmatprep.subr.mxu0 0.0
  %1465 = vmatpush1.msra.mxu0 0.0
  %1466 = vmatprep.subr.mxu0 0.0
  %1467 = vmatpush1.msra.mxu0 0.0
  %1468 = vmatprep.subr.mxu0 0.0
  %1469 = vmatpush1.msra.mxu0 0.0
  %1470 = vmatprep.subr.mxu0 0.0
  %1471 = vmatpush1.msra.mxu0 0.0
  %1472 = vmatprep.subr.mxu0 0.0
  %1473 = vmatpush1.msra.mxu0 0.0
  %1474 = vmatprep.subr.mxu0 0.0
  %1475 = vmatpush1.msra.mxu0 0.0
  %1476 = vmatprep.subr.mxu0 0.0
  %1477 = vmatpush1.msra.mxu0 0.0
  %1478 = vmatprep.subr.mxu0 0.0
  %1479 = vmatpush1.msra.mxu0 0.0
  %1480 = vmatprep.subr.mxu0 0.0
  %1481 = vmatpush1.msra.mxu0 0.0
  %1482 = vmatprep.subr.mxu0 0.0
  %1483 = vmatpush1.msra.mxu0 0.0
  %1484 = vmatprep.subr.mxu0 0.0
  %1485 = vmatpush1.msra.mxu0 0.0
  %1486 = vmatprep.subr.mxu0 0.0
  %1487 = vmatpush1.msra.mxu0 0.0
  %1488 = vmatprep.subr.mxu0 0.0
  %1489 = vmatpush1.msra.mxu0 0.0
  %1490 = vmatprep.subr.mxu0 0.0
  %1491 = vmatpush1.msra.mxu0 0.0
  %1492 = vmatprep.subr.mxu0 0.0
  %1493 = vmatpush1.msra.mxu0 0.0
  %1494 = vmatprep.mubr.f32.mxu0 0.0
  %1495 = vmatmul.mubr.f32.gmra.mrb[0].mxu0 %v1347
  %v1496 = vpop.f32.mrb[0].mxu0
  %v1497 = vadd.f32 0.0, %v1496
  %v1498 = vpop.f32.mrb[0].mxu0
  %v1499 = vadd.f32 0.0, %v1498
  %1500 = vdwg.mxu0
  %v1501 = vadd.f32 %v1355, %v1426
  %v1502 = vadd.f32 %v1356, %v1428
  %v1503 = vadd.f32 %v1357, %v1497
  %v1504 = vadd.f32 %v1358, %v1499
  %v1505 = vxor.u32 %v1501, 2147483648
  %v1506 = vmul.f32 %v1505, 1.442695
  %v1507 = vpow.pop %v1506
  %v1508 = vadd.f32 %v1507, 1.0
  %v1509 = vrcp.pop %v1508
  %v1510 = vmul.f32 1.0, %v1509
  %v1511 = vxor.u32 %v1502, 2147483648
  %v1512 = vmul.f32 %v1511, 1.442695
  %v1513 = vpow.pop %v1512
  %v1514 = vadd.f32 %v1513, 1.0
  %v1515 = vrcp.pop %v1514
  %v1516 = vmul.f32 1.0, %v1515
  %v1517 = vtanh.pop %v1503
  %v1518 = vxor.u32 %v1504, 2147483648
  %v1519 = vmul.f32 %v1518, 1.442695
  %v1520 = vpow.pop %v1519
  %v1521 = vadd.f32 %v1520, 1.0
  %v1522 = vrcp.pop %v1521
  %v1523 = vmul.f32 1.0, %v1522
  %v1524 = vmul.f32 %v1516, %v1345
  %v1525 = vmul.f32 %v1510, %v1517
  %v1526 = vadd.f32 %v1524, %v1525
  %v1527 = vtanh.pop %v1526
  %v1528 = vmul.f32 %v1523, %v1527
  %s1529 = scalar_lea.vmem %s3, 56
  %1530 = vst [vmem:[%s1529] sm:$0xff] %v1528
  %1531 = vst [vmem:[%s4] sm:$0xff] %v1528
  %1532 = vst [vmem:[%s5] sm:$0xff] %v1526
  // Predicated region
  $region14: #{speaker_forward.6} parent=0 // pred_check
    _
  $region15: #{speaker_forward.6} parent=0 // pred_check_branch
    %1534 = sbr.rel (0) target = $region17
  $region16: #{speaker_forward.6} parent=0 // pred_region
    _
  $region17: #{speaker_forward.6} parent=0 // pred_fallthru
    _
  // Predicated region
  $region18: #{speaker_forward.6} parent=0 // pred_check
    _
  $region19: #{speaker_forward.6} parent=0 // pred_check_branch
    %1536 = sbr.rel (0) target = $region21
  $region20: #{speaker_forward.6} parent=0 // pred_region
    _
  $region21: #{speaker_forward.6} parent=0 // pred_fallthru
    _
  // Predicated region
  $region22: #{speaker_forward.6} parent=0 // pred_check
    _
  $region23: #{speaker_forward.6} parent=0 // pred_check_branch
    %1538 = sbr.rel (0) target = $region25
  $region24: #{speaker_forward.6} parent=0 // pred_region
    _
  $region25: #{speaker_forward.6} parent=0 // pred_fallthru
    _
  // Predicated region
  $region26: #{speaker_forward.6} parent=0 // pred_check
    _
  $region27: #{speaker_forward.6} parent=0 // pred_check_branch
    %1540 = sbr.rel (0) target = $region29
  $region28: #{speaker_forward.6} parent=0 // pred_region
    _
  $region29: #{speaker_forward.6} parent=0 // pred_fallthru
    _
  // Predicated region
  $region30: #{speaker_forward.6} parent=0 // pred_check
    _
  $region31: #{speaker_forward.6} parent=0 // pred_check_branch
    %1542 = sbr.rel (0) target = $region33
  $region32: #{speaker_forward.6} parent=0 // pred_region
    _
  $region33: #{speaker_forward.6} parent=0 // pred_fallthru
    _
  // Predicated region
  $region34: #{speaker_forward.6} parent=0 // pred_check
    _
  $region35: #{speaker_forward.6} parent=0 // pred_check_branch
    %1544 = sbr.rel (0) target = $region37
  $region36: #{speaker_forward.6} parent=0 // pred_region
    _
  $region37: #{speaker_forward.6} parent=0 // pred_fallthru
    _

</llo_original>
